<compile_context>
chip_gen: v7x
topology: tpu7x:2x2x1
jax: 0.10.0
libtpu: 0.0.40
codegen_flags: <defaults>
</compile_context>

<pallas_src>
import jax
import jax.numpy as jnp
from jax.experimental import pallas as pl
from jax.experimental.pallas import tpu as pltpu

# --- static config -----------------------------------------------------------
B = 2                      # batch
C_IN = 8                   # cfg.input_ch
EXPAND = 4                 # cfg.expand_ratio
C_EXP = C_IN * EXPAND      # expanded channels = 32
C_OUT = 8                  # cfg.output_ch (== input_ch -> pure residual add)
C_SQ = max(1, int(C_IN * 0.25))   # SE squeezed channels = 2
H = W = 16                 # spatial
HW = H * W                 # 256 (lane-dense)
KSIZE = 3                  # cfg.kernel_size
NORM_EPS = 1e-5            # ConfigurableNorm / InstanceNorm2d eps

assert (W & (W - 1)) == 0, "W must be a power of two for the bitmask trick"

# packed-parameter slab: 128-aligned blocks, 6 lane tiles total
SLAB_COLS = 6 * 128
OFF_VEC, OFF_WE, OFF_WD, OFF_WR, OFF_WX, OFF_WP = 0, 128, 256, 384, 512, 640

MXU_PRECISION = jax.lax.Precision.HIGHEST


# --- fused kernel (one batch element per grid step) --------------------------
def mbconv_kernel(x_ref, p_ref, o_ref):
    """x_ref: (1, C_IN, HW); p_ref: (C_EXP, 768); o_ref: (1, C_OUT, HW)."""
    # ---- unpack parameter slab (static, 128-aligned blocks) ----
    g0 = p_ref[0:C_IN, OFF_VEC + 0:OFF_VEC + 1]
    b0 = p_ref[0:C_IN, OFF_VEC + 1:OFF_VEC + 2]
    g1 = p_ref[:, OFF_VEC + 2:OFF_VEC + 3]
    b1 = p_ref[:, OFF_VEC + 3:OFF_VEC + 4]
    g2 = p_ref[:, OFF_VEC + 4:OFF_VEC + 5]
    b2 = p_ref[:, OFF_VEC + 5:OFF_VEC + 6]
    br = p_ref[:, OFF_VEC + 6:OFF_VEC + 7]          # SE reduce bias (rows >= C_SQ zero)
    bx = p_ref[:, OFF_VEC + 7:OFF_VEC + 8]          # SE expand bias
    w_e = p_ref[:, OFF_WE:OFF_WE + C_IN]            # (C_EXP, C_IN)  expand 1x1
    w_dw = p_ref[:, OFF_WD:OFF_WD + KSIZE * KSIZE]  # (C_EXP, 9)     depthwise taps
    w_r = p_ref[:, OFF_WR:OFF_WR + C_EXP]           # (C_EXP, C_EXP) SE reduce (rows >= C_SQ zero)
    w_x = p_ref[:, OFF_WX:OFF_WX + C_EXP]           # (C_EXP, C_EXP) SE expand (cols >= C_SQ zero)
    w_p = p_ref[0:C_OUT, OFF_WP:OFF_WP + C_EXP]     # (C_OUT, C_EXP) project 1x1

    taps = [w_dw[:, k:k + 1] for k in range(KSIZE * KSIZE)]   # hoisted (C_EXP,1) columns

    # depthwise-conv boundary masks from a flat iota (no pad scratch, no concats)
    col = jax.lax.broadcasted_iota(jnp.int32, (C_EXP, HW), 1)
    jj = col & (W - 1)                               # column index within a row
    i_ok = {-1: col >= W, 0: None, 1: col < (H - 1) * W}
    j_ok = {-1: jj >= 1, 0: None, 1: jj <= W - 2}

    def inorm(a, gain, bias):
        # InstanceNorm2d (biased variance over spatial) + affine.
        # Two independent lane reductions; var = E[x^2] - mean^2; rsqrt on EUP.
        mean = jnp.mean(a, axis=1, keepdims=True)
        mean_sq = jnp.mean(a * a, axis=1, keepdims=True)
        var = mean_sq - mean * mean
        return (a - mean) * jax.lax.rsqrt(var + NORM_EPS) * gain + bias

    def swish(a):
        return a * jax.nn.sigmoid(a)

    def dot32(a, b):
        return jnp.dot(a, b, preferred_element_type=jnp.float32,
                       precision=MXU_PRECISION)

    x = x_ref[0]                                     # (C_IN, HW) residual source

    # _bn0 + swish
    a = swish(inorm(x, g0, b0))

    # _expand_conv (1x1, no bias): (C_EXP, C_IN) @ (C_IN, HW)
    e = dot32(w_e, a)

    # _bn1 + swish
    e = swish(inorm(e, g1, b1))

    # _depthwise_conv (3x3, padding=1): lane rotations + masked MACs
    acc = e * taps[4]                                # centre tap (dy=dx=0)
    for dy in (-1, 0, 1):
        for dx in (-1, 0, 1):
            if dy == 0 and dx == 0:
                continue
            k = (dy + 1) * 3 + (dx + 1)
            shift = (-(dy * W + dx)) % HW            # rolled[p] = e[p + dy*W + dx]
            t = pltpu.roll(e, shift=shift, axis=1)
            m = i_ok[dy]
            if j_ok[dx] is not None:
                m = j_ok[dx] if m is None else (m & j_ok[dx])
            t = jnp.where(m, t, 0.0)
            acc = acc + t * taps[k]

    # _bn2 + swish
    d = swish(inorm(acc, g2, b2))

    # squeeze-and-excite: avg pool -> reduce -> swish -> expand -> sigmoid -> scale
    pooled = jnp.mean(d, axis=1, keepdims=True)      # (C_EXP, 1)
    s1 = swish(dot32(w_r, pooled) + br)              # rows >= C_SQ stay 0 (swish(0)=0)
    s2 = jax.nn.sigmoid(dot32(w_x, s1) + bx)
    d = d * s2

    # _project_conv (1x1, no bias) + residual (add_concat with output_ch == input_ch)
    o_ref[0] = dot32(w_p, d) + x


# --- wrapper -----------------------------------------------------------------
def mbconv_gblock(inputs, packed_params):
    """inputs: (B, C_IN, H, W) NCHW, same convention as the PyTorch module.

    position_ch / seq / masks / counts are unused for this cfg (see TODO above).
    """
    Bq, C, Hq, Wq = inputs.shape
    hw = Hq * Wq
    x3 = inputs.reshape(Bq, C, hw)                   # lane-dense spatial (wrapper plumbing)

    cost = pl.CostEstimate(
        flops=1_100_000,
        transcendentals=40_000,
        bytes_accessed=x3.size * 4 + packed_params.size * 4 + Bq * C_OUT * hw * 4,
    )

    out3 = pl.pallas_call(
        mbconv_kernel,
        out_shape=jax.ShapeDtypeStruct((Bq, C_OUT, hw), jnp.float32),
        grid_spec=pltpu.PrefetchScalarGridSpec(
            num_scalar_prefetch=0,
            grid=(Bq,),                              # batch axis -> TC-parallel on v7x
            in_specs=[
                pl.BlockSpec((1, C, hw), lambda b: (b, 0, 0)),
                pl.BlockSpec((C_EXP, SLAB_COLS), lambda b: (0, 0)),   # fetched once
            ],
            out_specs=pl.BlockSpec((1, C_OUT, hw), lambda b: (b, 0, 0)),
        ),
        compiler_params=pltpu.CompilerParams(dimension_semantics=("parallel",)),
        cost_estimate=cost,
    )(x3, packed_params)

    return out3.reshape(Bq, C_OUT, Hq, Wq)


# --- parameters --------------------------------------------------------------
def make_params(key):
    """Deterministic synthetic parameters (torch Conv2d-style uniform init)."""
    ks = jax.random.split(key, 12)

    def u(k, shape, fan_in):
        bound = 1.0 / jnp.sqrt(jnp.float32(fan_in))
        return jax.random.uniform(k, shape, jnp.float32, -bound, bound)

    return dict(
        w_e=u(ks[0], (C_EXP, C_IN), C_IN),                     # _expand_conv (O, I)
        w_dw=u(ks[1], (C_EXP, KSIZE, KSIZE), KSIZE * KSIZE),   # _depthwise_conv (O, kH, kW)
        w_r=u(ks[2], (C_SQ, C_EXP), C_EXP),                    # _se_reduce weight
        b_r=u(ks[3], (C_SQ,), C_EXP),                          # _se_reduce bias
        w_x=u(ks[4], (C_EXP, C_SQ), C_SQ),                     # _se_expand weight
        b_x=u(ks[5], (C_EXP,), C_SQ),                          # _se_expand bias
        w_p=u(ks[6], (C_OUT, C_EXP), C_EXP),                   # _project_conv
        # ConfigurableNorm gains/biases (module init is ones/zeros; randomized to
        # exercise the affine math -- kernel and reference use the same values).
        g0=1.0 + 0.1 * jax.random.normal(ks[7], (C_IN,), jnp.float32),
        b0=0.1 * jax.random.normal(ks[8], (C_IN,), jnp.float32),
        g1=1.0 + 0.1 * jax.random.normal(ks[9], (C_EXP,), jnp.float32),
        b1=0.1 * jax.random.normal(ks[10], (C_EXP,), jnp.float32),
        g2=1.0 + 0.1 * jax.random.normal(ks[11], (C_EXP,), jnp.float32),
        b2=jnp.zeros((C_EXP,), jnp.float32),
    )


def pack_params(pp):
    """Pack everything into one lane-dense (32, 768) f32 slab, 128-aligned blocks."""
    def col(v):
        return jnp.pad(v, (0, C_EXP - v.shape[0])).reshape(C_EXP, 1)

    def tile(mat):
        t = jnp.zeros((C_EXP, 128), jnp.float32)
        r, c = mat.shape
        return t.at[:r, :c].set(mat)

    vecs = jnp.concatenate(
        [col(pp['g0']), col(pp['b0']), col(pp['g1']), col(pp['b1']),
         col(pp['g2']), col(pp['b2']), col(pp['b_r']), col(pp['b_x'])], axis=1)  # (32, 8)
    tile0 = jnp.zeros((C_EXP, 128), jnp.float32).at[:, 0:8].set(vecs)

    slab = jnp.concatenate(
        [tile0,
         tile(pp['w_e']),                                   # cols 128:136
         tile(pp['w_dw'].reshape(C_EXP, KSIZE * KSIZE)),    # cols 256:265
         tile(pp['w_r']),                                   # cols 384:416 (rows 0:C_SQ)
         tile(pp['w_x']),                                   # cols 512:514
         tile(pp['w_p'])], axis=1)                          # cols 640:672 (rows 0:C_OUT)
    assert slab.shape == (C_EXP, SLAB_COLS)
    return slab


# --- pure-JAX reference (mirrors the PyTorch forward for this cfg) -----------
def ref_mbconv(x, pp):
    hp = jax.lax.Precision.HIGHEST

    def inorm(t, g, bta):
        u = t.mean(axis=(2, 3), keepdims=True)
        v = ((t - u) ** 2).mean(axis=(2, 3), keepdims=True)
        tn = (t - u) / jnp.sqrt(v + NORM_EPS)
        return tn * g.reshape(1, -1, 1, 1) + bta.reshape(1, -1, 1, 1)

    def swish(t):
        return t * jax.nn.sigmoid(t)

    a = swish(inorm(x, pp['g0'], pp['b0']))
    e = jnp.einsum('oi,bihw->bohw', pp['w_e'], a, precision=hp)
    e = swish(inorm(e, pp['g1'], pp['b1']))
    d = jax.lax.conv_general_dilated(
        e, pp['w_dw'].reshape(C_EXP, 1, KSIZE, KSIZE),
        window_strides=(1, 1), padding='SAME',
        dimension_numbers=('NCHW', 'OIHW', 'NCHW'),
        feature_group_count=C_EXP, precision=hp)
    d = swish(inorm(d, pp['g2'], pp['b2']))
    pooled = d.mean(axis=(2, 3), keepdims=True)                  # (B, C_EXP, 1, 1)
    s1 = swish(jnp.einsum('oi,bihw->bohw', pp['w_r'], pooled, precision=hp)
               + pp['b_r'].reshape(1, -1, 1, 1))
    s2 = jax.nn.sigmoid(jnp.einsum('oi,bihw->bohw', pp['w_x'], s1, precision=hp)
                        + pp['b_x'].reshape(1, -1, 1, 1))
    d = d * s2
    proj = jnp.einsum('oi,bihw->bohw', pp['w_p'], d, precision=hp)
    return proj + x[:, :C_OUT]


# -----------------------------------------------------------------------------
if __name__ == "__main__":
    key = jax.random.PRNGKey(0)
    k_x, k_p = jax.random.split(key)

    x = jax.random.normal(k_x, (B, C_IN, H, W), jnp.float32)
    pp = make_params(k_p)
    slab = pack_params(pp)

    out = mbconv_gblock(x, slab)
    out = jax.block_until_ready(out)

    ref = ref_mbconv(x, pp)
    assert out.shape == (B, C_OUT, H, W)
    assert bool(jnp.all(jnp.isfinite(out)))
    assert bool(jnp.allclose(out, ref, rtol=2e-3, atol=2e-3))

    print("KERNEL_OK")
</pallas_src>

<mosaic_0001>
module attributes {stable_mosaic.version = 11 : i64} {
  func.func @mbconv_kernel(%arg0: i32, %arg1: memref<1x8x256xf32, #tpu.memory_space<vmem>>, %arg2: memref<32x768xf32, #tpu.memory_space<vmem>>, %arg3: memref<1x8x256xf32, #tpu.memory_space<vmem>>) attributes {dimension_semantics = [#tpu.dimension_semantics<parallel>], iteration_bounds = array<i64: 2>, scalar_prefetch = 0 : i64, scratch_operands = 0 : i64, tpu.core_type = #tpu.core_type<tc>, window_params = [{transform_indices = @transform_0, window_bounds = array<i64: 1, 8, 256>}, {pipeline_mode = #tpu.pipeline_mode<synchronous>, transform_indices = @transform_1, window_bounds = array<i64: 32, 768>}, {transform_indices = @transform_2, window_bounds = array<i64: 1, 8, 256>}]} {
    %c0 = arith.constant 0 : index
    %c0_0 = arith.constant 0 : index
    %0 = vector.load %arg2[%c0, %c0_0] : memref<32x768xf32, #tpu.memory_space<vmem>>, vector<8x1xf32>
    %c0_1 = arith.constant 0 : index
    %c1 = arith.constant 1 : index
    %1 = vector.load %arg2[%c0_1, %c1] : memref<32x768xf32, #tpu.memory_space<vmem>>, vector<8x1xf32>
    %c0_2 = arith.constant 0 : index
    %c2 = arith.constant 2 : index
    %2 = vector.load %arg2[%c0_2, %c2] : memref<32x768xf32, #tpu.memory_space<vmem>>, vector<32x1xf32>
    %c0_3 = arith.constant 0 : index
    %c3 = arith.constant 3 : index
    %3 = vector.load %arg2[%c0_3, %c3] : memref<32x768xf32, #tpu.memory_space<vmem>>, vector<32x1xf32>
    %c0_4 = arith.constant 0 : index
    %c4 = arith.constant 4 : index
    %4 = vector.load %arg2[%c0_4, %c4] : memref<32x768xf32, #tpu.memory_space<vmem>>, vector<32x1xf32>
    %c0_5 = arith.constant 0 : index
    %c5 = arith.constant 5 : index
    %5 = vector.load %arg2[%c0_5, %c5] : memref<32x768xf32, #tpu.memory_space<vmem>>, vector<32x1xf32>
    %c0_6 = arith.constant 0 : index
    %c6 = arith.constant 6 : index
    %6 = vector.load %arg2[%c0_6, %c6] : memref<32x768xf32, #tpu.memory_space<vmem>>, vector<32x1xf32>
    %c0_7 = arith.constant 0 : index
    %c7 = arith.constant 7 : index
    %7 = vector.load %arg2[%c0_7, %c7] : memref<32x768xf32, #tpu.memory_space<vmem>>, vector<32x1xf32>
    %c0_8 = arith.constant 0 : index
    %c128 = arith.constant 128 : index
    %8 = vector.load %arg2[%c0_8, %c128] : memref<32x768xf32, #tpu.memory_space<vmem>>, vector<32x8xf32>
    %c0_9 = arith.constant 0 : index
    %c256 = arith.constant 256 : index
    %9 = vector.load %arg2[%c0_9, %c256] : memref<32x768xf32, #tpu.memory_space<vmem>>, vector<32x9xf32>
    %c0_10 = arith.constant 0 : index
    %c384 = arith.constant 384 : index
    %10 = vector.load %arg2[%c0_10, %c384] : memref<32x768xf32, #tpu.memory_space<vmem>>, vector<32x32xf32>
    %c0_11 = arith.constant 0 : index
    %c512 = arith.constant 512 : index
    %11 = vector.load %arg2[%c0_11, %c512] : memref<32x768xf32, #tpu.memory_space<vmem>>, vector<32x32xf32>
    %c0_12 = arith.constant 0 : index
    %c640 = arith.constant 640 : index
    %12 = vector.load %arg2[%c0_12, %c640] : memref<32x768xf32, #tpu.memory_space<vmem>>, vector<8x32xf32>
    %13 = vector.extract_strided_slice %9 {offsets = [0, 0], sizes = [32, 1], strides = [1, 1]} : vector<32x9xf32> to vector<32x1xf32>
    %14 = vector.extract_strided_slice %9 {offsets = [0, 1], sizes = [32, 1], strides = [1, 1]} : vector<32x9xf32> to vector<32x1xf32>
    %15 = vector.extract_strided_slice %9 {offsets = [0, 2], sizes = [32, 1], strides = [1, 1]} : vector<32x9xf32> to vector<32x1xf32>
    %16 = vector.extract_strided_slice %9 {offsets = [0, 3], sizes = [32, 1], strides = [1, 1]} : vector<32x9xf32> to vector<32x1xf32>
    %17 = vector.extract_strided_slice %9 {offsets = [0, 4], sizes = [32, 1], strides = [1, 1]} : vector<32x9xf32> to vector<32x1xf32>
    %18 = vector.extract_strided_slice %9 {offsets = [0, 5], sizes = [32, 1], strides = [1, 1]} : vector<32x9xf32> to vector<32x1xf32>
    %19 = vector.extract_strided_slice %9 {offsets = [0, 6], sizes = [32, 1], strides = [1, 1]} : vector<32x9xf32> to vector<32x1xf32>
    %20 = vector.extract_strided_slice %9 {offsets = [0, 7], sizes = [32, 1], strides = [1, 1]} : vector<32x9xf32> to vector<32x1xf32>
    %21 = vector.extract_strided_slice %9 {offsets = [0, 8], sizes = [32, 1], strides = [1, 1]} : vector<32x9xf32> to vector<32x1xf32>
    %22 = tpu.iota {dimensions = array<i32: 1>} : vector<32x256xi32>
    %c15_i32 = arith.constant 15 : i32
    %23 = vector.broadcast %c15_i32 : i32 to vector<32x256xi32>
    %24 = arith.andi %22, %23 : vector<32x256xi32>
    %c16_i32 = arith.constant 16 : i32
    %25 = vector.broadcast %c16_i32 : i32 to vector<32x256xi32>
    %26 = arith.cmpi sge, %22, %25 : vector<32x256xi32>
    %c240_i32 = arith.constant 240 : i32
    %27 = vector.broadcast %c240_i32 : i32 to vector<32x256xi32>
    %28 = arith.cmpi slt, %22, %27 : vector<32x256xi32>
    %c1_i32 = arith.constant 1 : i32
    %29 = vector.broadcast %c1_i32 : i32 to vector<32x256xi32>
    %30 = arith.cmpi sge, %24, %29 : vector<32x256xi32>
    %c14_i32 = arith.constant 14 : i32
    %31 = vector.broadcast %c14_i32 : i32 to vector<32x256xi32>
    %32 = arith.cmpi sle, %24, %31 : vector<32x256xi32>
    %c0_13 = arith.constant 0 : index
    %c0_14 = arith.constant 0 : index
    %c0_15 = arith.constant 0 : index
    %33 = vector.load %arg1[%c0_13, %c0_14, %c0_15] : memref<1x8x256xf32, #tpu.memory_space<vmem>>, vector<1x8x256xf32>
    %34 = vector.shape_cast %33 : vector<1x8x256xf32> to vector<8x256xf32>
    %cst = arith.constant dense<0.000000e+00> : vector<8xf32>
    %35 = vector.multi_reduction <add>, %34, %cst [1] : vector<8x256xf32> to vector<8xf32>
    %36 = vector.shape_cast %35 : vector<8xf32> to vector<8x1xf32>
    %cst_16 = arith.constant 2.560000e+02 : f32
    %37 = vector.broadcast %cst_16 : f32 to vector<8x1xf32>
    %38 = arith.divf %36, %37 : vector<8x1xf32>
    %39 = arith.mulf %34, %34 : vector<8x256xf32>
    %cst_17 = arith.constant dense<0.000000e+00> : vector<8xf32>
    %40 = vector.multi_reduction <add>, %39, %cst_17 [1] : vector<8x256xf32> to vector<8xf32>
    %41 = vector.shape_cast %40 : vector<8xf32> to vector<8x1xf32>
    %cst_18 = arith.constant 2.560000e+02 : f32
    %42 = vector.broadcast %cst_18 : f32 to vector<8x1xf32>
    %43 = arith.divf %41, %42 : vector<8x1xf32>
    %44 = arith.mulf %38, %38 : vector<8x1xf32>
    %45 = arith.subf %43, %44 : vector<8x1xf32>
    %46 = vector.broadcast %38 : vector<8x1xf32> to vector<8x256xf32>
    %47 = arith.subf %34, %46 : vector<8x256xf32>
    %cst_19 = arith.constant 9.99999974E-6 : f32
    %48 = vector.broadcast %cst_19 : f32 to vector<8x1xf32>
    %49 = arith.addf %45, %48 : vector<8x1xf32>
    %50 = math.rsqrt %49 : vector<8x1xf32>
    %51 = vector.broadcast %50 : vector<8x1xf32> to vector<8x256xf32>
    %52 = arith.mulf %47, %51 : vector<8x256xf32>
    %53 = vector.broadcast %0 : vector<8x1xf32> to vector<8x256xf32>
    %54 = arith.mulf %52, %53 : vector<8x256xf32>
    %55 = vector.broadcast %1 : vector<8x1xf32> to vector<8x256xf32>
    %56 = arith.addf %54, %55 : vector<8x256xf32>
    %57 = arith.negf %56 : vector<8x256xf32>
    %58 = math.exp %57 : vector<8x256xf32>
    %cst_20 = arith.constant 1.000000e+00 : f32
    %59 = vector.broadcast %cst_20 : f32 to vector<8x256xf32>
    %60 = arith.addf %59, %58 : vector<8x256xf32>
    %61 = arith.divf %59, %60 : vector<8x256xf32>
    %62 = arith.mulf %56, %61 : vector<8x256xf32>
    %cst_21 = arith.constant dense<0.000000e+00> : vector<32x256xf32>
    %63 = tpu.matmul %8, %62, %cst_21 {dimension_numbers = #tpu.dot_dimension_numbers<[1], [0], [0], [1], [0, 0, 1, 1], [], []>, precision = #tpu.contract_precision<fp32>} : vector<32x8xf32>, vector<8x256xf32>, vector<32x256xf32> -> vector<32x256xf32>
    %cst_22 = arith.constant dense<0.000000e+00> : vector<32xf32>
    %64 = vector.multi_reduction <add>, %63, %cst_22 [1] : vector<32x256xf32> to vector<32xf32>
    %65 = vector.shape_cast %64 : vector<32xf32> to vector<32x1xf32>
    %cst_23 = arith.constant 2.560000e+02 : f32
    %66 = vector.broadcast %cst_23 : f32 to vector<32x1xf32>
    %67 = arith.divf %65, %66 : vector<32x1xf32>
    %68 = arith.mulf %63, %63 : vector<32x256xf32>
    %cst_24 = arith.constant dense<0.000000e+00> : vector<32xf32>
    %69 = vector.multi_reduction <add>, %68, %cst_24 [1] : vector<32x256xf32> to vector<32xf32>
    %70 = vector.shape_cast %69 : vector<32xf32> to vector<32x1xf32>
    %cst_25 = arith.constant 2.560000e+02 : f32
    %71 = vector.broadcast %cst_25 : f32 to vector<32x1xf32>
    %72 = arith.divf %70, %71 : vector<32x1xf32>
    %73 = arith.mulf %67, %67 : vector<32x1xf32>
    %74 = arith.subf %72, %73 : vector<32x1xf32>
    %75 = vector.broadcast %67 : vector<32x1xf32> to vector<32x256xf32>
    %76 = arith.subf %63, %75 : vector<32x256xf32>
    %cst_26 = arith.constant 9.99999974E-6 : f32
    %77 = vector.broadcast %cst_26 : f32 to vector<32x1xf32>
    %78 = arith.addf %74, %77 : vector<32x1xf32>
    %79 = math.rsqrt %78 : vector<32x1xf32>
    %80 = vector.broadcast %79 : vector<32x1xf32> to vector<32x256xf32>
    %81 = arith.mulf %76, %80 : vector<32x256xf32>
    %82 = vector.broadcast %2 : vector<32x1xf32> to vector<32x256xf32>
    %83 = arith.mulf %81, %82 : vector<32x256xf32>
    %84 = vector.broadcast %3 : vector<32x1xf32> to vector<32x256xf32>
    %85 = arith.addf %83, %84 : vector<32x256xf32>
    %86 = arith.negf %85 : vector<32x256xf32>
    %87 = math.exp %86 : vector<32x256xf32>
    %cst_27 = arith.constant 1.000000e+00 : f32
    %88 = vector.broadcast %cst_27 : f32 to vector<32x256xf32>
    %89 = arith.addf %88, %87 : vector<32x256xf32>
    %90 = arith.divf %88, %89 : vector<32x256xf32>
    %91 = arith.mulf %85, %90 : vector<32x256xf32>
    %92 = vector.broadcast %17 : vector<32x1xf32> to vector<32x256xf32>
    %93 = arith.mulf %91, %92 : vector<32x256xf32>
    %c17_i32 = arith.constant 17 : i32
    %94 = tpu.dynamic_rotate %91 by %c17_i32 dim 1 : vector<32x256xf32>, i32 -> vector<32x256xf32>
    %95 = arith.andi %26, %30 : vector<32x256xi1>
    %cst_28 = arith.constant 0.000000e+00 : f32
    %96 = vector.broadcast %cst_28 : f32 to vector<32x256xf32>
    %97 = arith.select %95, %94, %96 : vector<32x256xi1>, vector<32x256xf32>
    %98 = vector.broadcast %13 : vector<32x1xf32> to vector<32x256xf32>
    %99 = arith.mulf %97, %98 : vector<32x256xf32>
    %100 = arith.addf %93, %99 : vector<32x256xf32>
    %c16_i32_29 = arith.constant 16 : i32
    %101 = tpu.dynamic_rotate %91 by %c16_i32_29 dim 1 : vector<32x256xf32>, i32 -> vector<32x256xf32>
    %cst_30 = arith.constant 0.000000e+00 : f32
    %102 = vector.broadcast %cst_30 : f32 to vector<32x256xf32>
    %103 = arith.select %26, %101, %102 : vector<32x256xi1>, vector<32x256xf32>
    %104 = vector.broadcast %14 : vector<32x1xf32> to vector<32x256xf32>
    %105 = arith.mulf %103, %104 : vector<32x256xf32>
    %106 = arith.addf %100, %105 : vector<32x256xf32>
    %c15_i32_31 = arith.constant 15 : i32
    %107 = tpu.dynamic_rotate %91 by %c15_i32_31 dim 1 : vector<32x256xf32>, i32 -> vector<32x256xf32>
    %108 = arith.andi %26, %32 : vector<32x256xi1>
    %cst_32 = arith.constant 0.000000e+00 : f32
    %109 = vector.broadcast %cst_32 : f32 to vector<32x256xf32>
    %110 = arith.select %108, %107, %109 : vector<32x256xi1>, vector<32x256xf32>
    %111 = vector.broadcast %15 : vector<32x1xf32> to vector<32x256xf32>
    %112 = arith.mulf %110, %111 : vector<32x256xf32>
    %113 = arith.addf %106, %112 : vector<32x256xf32>
    %c1_i32_33 = arith.constant 1 : i32
    %114 = tpu.dynamic_rotate %91 by %c1_i32_33 dim 1 : vector<32x256xf32>, i32 -> vector<32x256xf32>
    %cst_34 = arith.constant 0.000000e+00 : f32
    %115 = vector.broadcast %cst_34 : f32 to vector<32x256xf32>
    %116 = arith.select %30, %114, %115 : vector<32x256xi1>, vector<32x256xf32>
    %117 = vector.broadcast %16 : vector<32x1xf32> to vector<32x256xf32>
    %118 = arith.mulf %116, %117 : vector<32x256xf32>
    %119 = arith.addf %113, %118 : vector<32x256xf32>
    %c255_i32 = arith.constant 255 : i32
    %120 = tpu.dynamic_rotate %91 by %c255_i32 dim 1 : vector<32x256xf32>, i32 -> vector<32x256xf32>
    %cst_35 = arith.constant 0.000000e+00 : f32
    %121 = vector.broadcast %cst_35 : f32 to vector<32x256xf32>
    %122 = arith.select %32, %120, %121 : vector<32x256xi1>, vector<32x256xf32>
    %123 = vector.broadcast %18 : vector<32x1xf32> to vector<32x256xf32>
    %124 = arith.mulf %122, %123 : vector<32x256xf32>
    %125 = arith.addf %119, %124 : vector<32x256xf32>
    %c241_i32 = arith.constant 241 : i32
    %126 = tpu.dynamic_rotate %91 by %c241_i32 dim 1 : vector<32x256xf32>, i32 -> vector<32x256xf32>
    %127 = arith.andi %28, %30 : vector<32x256xi1>
    %cst_36 = arith.constant 0.000000e+00 : f32
    %128 = vector.broadcast %cst_36 : f32 to vector<32x256xf32>
    %129 = arith.select %127, %126, %128 : vector<32x256xi1>, vector<32x256xf32>
    %130 = vector.broadcast %19 : vector<32x1xf32> to vector<32x256xf32>
    %131 = arith.mulf %129, %130 : vector<32x256xf32>
    %132 = arith.addf %125, %131 : vector<32x256xf32>
    %c240_i32_37 = arith.constant 240 : i32
    %133 = tpu.dynamic_rotate %91 by %c240_i32_37 dim 1 : vector<32x256xf32>, i32 -> vector<32x256xf32>
    %cst_38 = arith.constant 0.000000e+00 : f32
    %134 = vector.broadcast %cst_38 : f32 to vector<32x256xf32>
    %135 = arith.select %28, %133, %134 : vector<32x256xi1>, vector<32x256xf32>
    %136 = vector.broadcast %20 : vector<32x1xf32> to vector<32x256xf32>
    %137 = arith.mulf %135, %136 : vector<32x256xf32>
    %138 = arith.addf %132, %137 : vector<32x256xf32>
    %c239_i32 = arith.constant 239 : i32
    %139 = tpu.dynamic_rotate %91 by %c239_i32 dim 1 : vector<32x256xf32>, i32 -> vector<32x256xf32>
    %140 = arith.andi %28, %32 : vector<32x256xi1>
    %cst_39 = arith.constant 0.000000e+00 : f32
    %141 = vector.broadcast %cst_39 : f32 to vector<32x256xf32>
    %142 = arith.select %140, %139, %141 : vector<32x256xi1>, vector<32x256xf32>
    %143 = vector.broadcast %21 : vector<32x1xf32> to vector<32x256xf32>
    %144 = arith.mulf %142, %143 : vector<32x256xf32>
    %145 = arith.addf %138, %144 : vector<32x256xf32>
    %cst_40 = arith.constant dense<0.000000e+00> : vector<32xf32>
    %146 = vector.multi_reduction <add>, %145, %cst_40 [1] : vector<32x256xf32> to vector<32xf32>
    %147 = vector.shape_cast %146 : vector<32xf32> to vector<32x1xf32>
    %cst_41 = arith.constant 2.560000e+02 : f32
    %148 = vector.broadcast %cst_41 : f32 to vector<32x1xf32>
    %149 = arith.divf %147, %148 : vector<32x1xf32>
    %150 = arith.mulf %145, %145 : vector<32x256xf32>
    %cst_42 = arith.constant dense<0.000000e+00> : vector<32xf32>
    %151 = vector.multi_reduction <add>, %150, %cst_42 [1] : vector<32x256xf32> to vector<32xf32>
    %152 = vector.shape_cast %151 : vector<32xf32> to vector<32x1xf32>
    %cst_43 = arith.constant 2.560000e+02 : f32
    %153 = vector.broadcast %cst_43 : f32 to vector<32x1xf32>
    %154 = arith.divf %152, %153 : vector<32x1xf32>
    %155 = arith.mulf %149, %149 : vector<32x1xf32>
    %156 = arith.subf %154, %155 : vector<32x1xf32>
    %157 = vector.broadcast %149 : vector<32x1xf32> to vector<32x256xf32>
    %158 = arith.subf %145, %157 : vector<32x256xf32>
    %cst_44 = arith.constant 9.99999974E-6 : f32
    %159 = vector.broadcast %cst_44 : f32 to vector<32x1xf32>
    %160 = arith.addf %156, %159 : vector<32x1xf32>
    %161 = math.rsqrt %160 : vector<32x1xf32>
    %162 = vector.broadcast %161 : vector<32x1xf32> to vector<32x256xf32>
    %163 = arith.mulf %158, %162 : vector<32x256xf32>
    %164 = vector.broadcast %4 : vector<32x1xf32> to vector<32x256xf32>
    %165 = arith.mulf %163, %164 : vector<32x256xf32>
    %166 = vector.broadcast %5 : vector<32x1xf32> to vector<32x256xf32>
    %167 = arith.addf %165, %166 : vector<32x256xf32>
    %168 = arith.negf %167 : vector<32x256xf32>
    %169 = math.exp %168 : vector<32x256xf32>
    %cst_45 = arith.constant 1.000000e+00 : f32
    %170 = vector.broadcast %cst_45 : f32 to vector<32x256xf32>
    %171 = arith.addf %170, %169 : vector<32x256xf32>
    %172 = arith.divf %170, %171 : vector<32x256xf32>
    %173 = arith.mulf %167, %172 : vector<32x256xf32>
    %cst_46 = arith.constant dense<0.000000e+00> : vector<32xf32>
    %174 = vector.multi_reduction <add>, %173, %cst_46 [1] : vector<32x256xf32> to vector<32xf32>
    %175 = vector.shape_cast %174 : vector<32xf32> to vector<32x1xf32>
    %cst_47 = arith.constant 2.560000e+02 : f32
    %176 = vector.broadcast %cst_47 : f32 to vector<32x1xf32>
    %177 = arith.divf %175, %176 : vector<32x1xf32>
    %cst_48 = arith.constant dense<0.000000e+00> : vector<32x1xf32>
    %178 = tpu.matmul %10, %177, %cst_48 {dimension_numbers = #tpu.dot_dimension_numbers<[1], [0], [0], [1], [0, 0, 1, 1], [], []>, precision = #tpu.contract_precision<fp32>} : vector<32x32xf32>, vector<32x1xf32>, vector<32x1xf32> -> vector<32x1xf32>
    %179 = arith.addf %178, %6 : vector<32x1xf32>
    %180 = arith.negf %179 : vector<32x1xf32>
    %181 = math.exp %180 : vector<32x1xf32>
    %cst_49 = arith.constant 1.000000e+00 : f32
    %182 = vector.broadcast %cst_49 : f32 to vector<32x1xf32>
    %183 = arith.addf %182, %181 : vector<32x1xf32>
    %184 = arith.divf %182, %183 : vector<32x1xf32>
    %185 = arith.mulf %179, %184 : vector<32x1xf32>
    %cst_50 = arith.constant dense<0.000000e+00> : vector<32x1xf32>
    %186 = tpu.matmul %11, %185, %cst_50 {dimension_numbers = #tpu.dot_dimension_numbers<[1], [0], [0], [1], [0, 0, 1, 1], [], []>, precision = #tpu.contract_precision<fp32>} : vector<32x32xf32>, vector<32x1xf32>, vector<32x1xf32> -> vector<32x1xf32>
    %187 = arith.addf %186, %7 : vector<32x1xf32>
    %188 = arith.negf %187 : vector<32x1xf32>
    %189 = math.exp %188 : vector<32x1xf32>
    %cst_51 = arith.constant 1.000000e+00 : f32
    %190 = vector.broadcast %cst_51 : f32 to vector<32x1xf32>
    %191 = arith.addf %190, %189 : vector<32x1xf32>
    %192 = arith.divf %190, %191 : vector<32x1xf32>
    %193 = vector.broadcast %192 : vector<32x1xf32> to vector<32x256xf32>
    %194 = arith.mulf %173, %193 : vector<32x256xf32>
    %cst_52 = arith.constant dense<0.000000e+00> : vector<8x256xf32>
    %195 = tpu.matmul %12, %194, %cst_52 {dimension_numbers = #tpu.dot_dimension_numbers<[1], [0], [0], [1], [0, 0, 1, 1], [], []>, precision = #tpu.contract_precision<fp32>} : vector<8x32xf32>, vector<32x256xf32>, vector<8x256xf32> -> vector<8x256xf32>
    %196 = arith.addf %195, %34 : vector<8x256xf32>
    %c0_53 = arith.constant 0 : index
    %c0_54 = arith.constant 0 : index
    %c0_55 = arith.constant 0 : index
    %197 = vector.load %arg3[%c0_53, %c0_54, %c0_55] : memref<1x8x256xf32, #tpu.memory_space<vmem>>, vector<1x8x256xf32>
    %198 = vector.shape_cast %197 : vector<1x8x256xf32> to vector<8x256xf32>
    %199 = vector.shape_cast %196 : vector<8x256xf32> to vector<1x8x256xf32>
    tpu.vector_store %arg3[%c0_53, %c0_54, %c0_55], %199 {strides = array<i32>} : memref<1x8x256xf32, #tpu.memory_space<vmem>>, vector<1x8x256xf32>,
    return
  }
  func.func @transform_0(%arg0: i32) -> (i32, i32, i32) {
    %c0_i32 = arith.constant 0 : i32
    %c0_i32_0 = arith.constant 0 : i32
    %c0_i32_1 = arith.constant 0 : i32
    return %arg0, %c0_i32, %c0_i32_0 : i32, i32, i32
  }
  func.func @transform_1(%arg0: i32) -> (i32, i32) {
    %c0_i32 = arith.constant 0 : i32
    %c0_i32_0 = arith.constant 0 : i32
    %c0_i32_1 = arith.constant 0 : i32
    return %c0_i32, %c0_i32_0 : i32, i32
  }
  func.func @transform_2(%arg0: i32) -> (i32, i32, i32) {
    %c0_i32 = arith.constant 0 : i32
    %c0_i32_0 = arith.constant 0 : i32
    %c0_i32_1 = arith.constant 0 : i32
    return %arg0, %c0_i32, %c0_i32_0 : i32, i32, i32
  }
}

</mosaic_0001>

<llo_original>
// kernel: tpu_custom_call.1
$region0: #{tpu_custom_call.1}
  #allocation0 [shape = 'u32[]', space=smem, size = 0x4, offset = 0x4, fixed_abs, tag = 'smem constant byte address 0x4 - core index']
  #allocation1 [shape = 'u32[144,128]{1,0:T(1,128)}', space=vmem, size = 0x12000, scoped, tag = 'internal scratch']
  %s0 = inlined_call_operand.hbm [shape: f32[2,8,256], index: 0, kind: input, shape index: {}]
  %s1 = inlined_call_operand.hbm [shape: f32[32,768], index: 1, kind: input, shape index: {}]
  %s2 = inlined_call_operand.hbm [shape: f32[2,8,256], index: 2, kind: output, shape index: {}]
  %s3 = sld [smem:[#allocation0]]
  $region49: #{tpu_custom_call.1} parent=0
    _
  %s5 = ssub.s32 1, %s3
  %s6 = scalar_select 0, %s5, %s3
  $region1: #{tpu_custom_call.1} parent=0
    #allocation2 [shape = 'u8[16384]{0}', space=vmem, size = 0x4000, scoped, tag = 'input window, operand 0']
    #allocation3 [shape = 's32[2]{0}', space=sflag, size = 0x8, scoped, tag = 'scoped memory for tpu_custom_call.1']
    #allocation4 [shape = 's32[2]{0}', space=sflag, size = 0x8, scoped, tag = 'scoped memory for tpu_custom_call.1']
    #allocation5 [shape = 'u8[98304]{0}', space=vmem, size = 0x18000, scoped, tag = 'input window, operand 1, single buffered']
    #allocation6 [shape = 's32[1]{0}', space=sflag, size = 0x4, scoped, tag = 'scoped memory for tpu_custom_call.1']
    #allocation7 [shape = 'u8[16384]{0}', space=vmem, size = 0x4000, scoped, tag = 'output window, operand 0']
    %7 = vsyncpa [#allocation3], 0
    %s8 = scalar_lea.sflag [#allocation3], 1
    %9 = vsyncpa %s8, 0
    %10 = vsyncpa [#allocation6], 0
    %11 = vsyncpa [#allocation4], 0
    %s12 = scalar_lea.sflag [#allocation4], 1
    %13 = vsyncpa %s12, 0
    loop: start=0, step=1, limit=4
    $region2: #{tpu_custom_call.1} parent=1 // loop_pre_header
      _
    $region3: #{tpu_custom_call.1} parent=1 // loop_header
      %s15 = sphi 0, %s19
      %p16 = scmp.ge.s32.totalorder %s15, 4
      %s25 = sphi 0, %s27
      %s28 = sphi 0, %s25
      %s29 = sphi 0, %s28
      %s45 = sphi 0, %s29
      %s49 = sphi 0, %s49
      %s51 = sphi 0, %s49
      %s52 = sphi 0, %s51
      %s66 = sphi 0, %s52
      %s72 = sphi 0, %s74
      %s75 = sphi 0, %s72
      %s76 = sphi 0, %s75
      %s92 = sphi 0, %s76
    $region4: #{tpu_custom_call.1} parent=1 // loop_header_branch
      %18 = sbr.rel (%p16) target = $region8
    $region5: #{tpu_custom_call.1} parent=1 // loop_body
      %s20 = ssub.s32 %s15, 1
      %s21 = ssub.s32 %s15, 2
      %s22 = sadd.s32 %s15, 1
      %s23 = ssub.s32 %s15, %s22
      %p24 = scmp.eq.s32.totalorder %s23, 0
      %s26 = sadd.s32 %s25, 1
      %s27 = scalar_select %p24, %s25, %s26
      %p30 = pneg %p24
      %p31 = scmp.eq.s32.totalorder %s15, 1
      %p32 = por %p30, %p31
      %p33 = scmp.ne.s32.totalorder %s25, %s28
      %p34 = scmp.eq.s32.totalorder %s15, 0
      %p35 = por %p33, %p34
      %p36 = scmp.ne.s32.totalorder %s25, %s28
      %p37 = scmp.eq.s32.totalorder %s20, 1
      %p38 = por %p36, %p37
      %p39 = scmp.ne.s32.totalorder %s28, %s29
      %p40 = scmp.eq.s32.totalorder %s20, 0
      %p41 = por %p39, %p40
      %p42 = scmp.ne.s32.totalorder %s28, %s29
      %p43 = scmp.eq.s32.totalorder %s21, 1
      %p44 = por %p42, %p43
      %p46 = scmp.ne.s32.totalorder %s29, %s45
      %p47 = scmp.eq.s32.totalorder %s21, 0
      %p48 = por %p46, %p47
      %s50 = sadd.s32 %s49, 1
      %p53 = scmp.eq.s32.totalorder %s15, 1
      %p54 = scmp.ne.s32.totalorder %s49, %s51
      %p55 = scmp.eq.s32.totalorder %s15, 0
      %p56 = por %p54, %p55
      %p57 = scmp.ne.s32.totalorder %s49, %s51
      %p58 = scmp.eq.s32.totalorder %s20, 1
      %p59 = por %p57, %p58
      %p60 = scmp.ne.s32.totalorder %s51, %s52
      %p61 = scmp.eq.s32.totalorder %s20, 0
      %p62 = por %p60, %p61
      %p63 = scmp.ne.s32.totalorder %s51, %s52
      %p64 = scmp.eq.s32.totalorder %s21, 1
      %p65 = por %p63, %p64
      %p67 = scmp.ne.s32.totalorder %s52, %s66
      %p68 = scmp.eq.s32.totalorder %s21, 0
      %p69 = por %p67, %p68
      %s70 = ssub.s32 %s15, %s22
      %p71 = scmp.eq.s32.totalorder %s70, 0
      %s73 = sadd.s32 %s72, 1
      %s74 = scalar_select %p71, %s72, %s73
      %p77 = pneg %p71
      %p78 = scmp.eq.s32.totalorder %s15, 1
      %p79 = por %p77, %p78
      %p80 = scmp.ne.s32.totalorder %s72, %s75
      %p81 = scmp.eq.s32.totalorder %s15, 0
      %p82 = por %p80, %p81
      %p83 = scmp.ne.s32.totalorder %s72, %s75
      %p84 = scmp.eq.s32.totalorder %s20, 1
      %p85 = por %p83, %p84
      %p86 = scmp.ne.s32.totalorder %s75, %s76
      %p87 = scmp.eq.s32.totalorder %s20, 0
      %p88 = por %p86, %p87
      %p89 = scmp.ne.s32.totalorder %s75, %s76
      %p90 = scmp.eq.s32.totalorder %s21, 1
      %p91 = por %p89, %p90
      %p93 = scmp.ne.s32.totalorder %s76, %s92
      %p94 = scmp.eq.s32.totalorder %s21, 0
      %p95 = por %p93, %p94
      %p96 = scmp.le.s32.totalorder 1, %s15
      %p97 = scmp.lt.s32.totalorder %s15, 3
      %p98 = pnand %p96, %p97
      %p99 = pneg %p98
      // Predicated region
      $region9: #{tpu_custom_call.1} parent=5 // pred_check
        _
      $region10: #{tpu_custom_call.1} parent=5 // pred_check_branch
        %101 = sbr.rel (%p98) target = $region12
      $region11: #{tpu_custom_call.1} parent=5 // pred_region
        %s102 = ssub.s32 %s15, 1
        // Predicated region
        $region13: #{tpu_custom_call.1} parent=11 // pred_check
          %p103 = pneg %p62
        $region14: #{tpu_custom_call.1} parent=11 // pred_check_branch
          %105 = sbr.rel (%p103) target = $region16
        $region15: #{tpu_custom_call.1} parent=11 // pred_region
          %s107 = ssub.s32 3072, 3072
          %108 = vsyncadd [#allocation6], %s107
          %s109 = sshll.u32 [#allocation5], 4
          %s110 = int_to_ptr.vmem [resolvable:$true] %s109
          %115 = dma.hbm_to_vmem [thread:$0]  %s1, 3072, %s110, [#allocation6], 768, 768, 48
        $region16: #{tpu_custom_call.1} parent=11 // pred_fallthru
          _
      $region12: #{tpu_custom_call.1} parent=5 // pred_fallthru
        _
      %p116 = scmp.lt.s32.totalorder %s15, 2
      // Predicated region
      $region17: #{tpu_custom_call.1} parent=5 // pred_check
        %p117 = pneg %p116
      $region18: #{tpu_custom_call.1} parent=5 // pred_check_branch
        %119 = sbr.rel (%p117) target = $region20
      $region19: #{tpu_custom_call.1} parent=5 // pred_region
        // Predicated region
        $region21: #{tpu_custom_call.1} parent=19 // pred_check
          %p120 = pneg %p35
        $region22: #{tpu_custom_call.1} parent=19 // pred_check_branch
          %122 = sbr.rel (%p120) target = $region24
        $region23: #{tpu_custom_call.1} parent=19 // pred_region
          %s123 = sand.u32 %s25, 1
          %s124 = scalar_lea.sflag [#allocation3], %s123
          %s125 = sand.u32 %s25, 1
          %s126 = smul.addr %s125, 16
          %s127 = scalar_lea.vmem [#allocation2], %s126
          %s129 = ssub.s32 256, 256
          %130 = vsyncadd %s124, %s129
          %s131 = smul.addr %s15, 2
          %s132 = smul.addr %s131, 128
          %s133 = scalar_lea.hbm %s0, %s132
          %s135 = sshll.u32 %s127, 4
          %s136 = int_to_ptr.vmem [resolvable:$true] %s135
          %138 = dma.hbm_to_vmem [thread:$0]  %s133, 256, %s136, %s124
        $region24: #{tpu_custom_call.1} parent=19 // pred_fallthru
          _
      $region20: #{tpu_custom_call.1} parent=5 // pred_fallthru
        _
      %p139 = scmp.le.s32.totalorder 1, %s15
      %p140 = scmp.lt.s32.totalorder %s15, 3
      %p141 = pnand %p139, %p140
      %p142 = pneg %p141
      // Predicated region
      $region25: #{tpu_custom_call.1} parent=5 // pred_check
        _
      $region26: #{tpu_custom_call.1} parent=5 // pred_check_branch
        %144 = sbr.rel (%p141) target = $region28
      $region27: #{tpu_custom_call.1} parent=5 // pred_region
        %s145 = ssub.s32 %s15, 1
        %s146 = sand.u32 %s28, 1
        %s147 = scalar_lea.sflag [#allocation3], %s146
        %s148 = sand.u32 %s28, 1
        %s149 = smul.addr %s148, 16
        %s150 = scalar_lea.vmem [#allocation2], %s149
        // Predicated region
        $region29: #{tpu_custom_call.1} parent=27 // pred_check
          %p151 = pneg %p41
        $region30: #{tpu_custom_call.1} parent=27 // pred_check_branch
          %153 = sbr.rel (%p151) target = $region32
        $region31: #{tpu_custom_call.1} parent=27 // pred_region
          %154 = dma.done %s147, 256
        $region32: #{tpu_custom_call.1} parent=27 // pred_fallthru
          _
        // Predicated region
        $region33: #{tpu_custom_call.1} parent=27 // pred_check
          %p155 = pneg %p62
        $region34: #{tpu_custom_call.1} parent=27 // pred_check_branch
          %157 = sbr.rel (%p155) target = $region36
        $region35: #{tpu_custom_call.1} parent=27 // pred_region
          %158 = dma.done [#allocation6], 3072
        $region36: #{tpu_custom_call.1} parent=27 // pred_fallthru
          _
        %s159 = sand.u32 %s28, 1
        %s160 = scalar_lea.sflag [#allocation3], %s159
        %s161 = sand.u32 %s28, 1
        %s162 = smul.addr %s161, 16
        %s163 = scalar_lea.vmem [#allocation2], %s162
        %p164 = pneg %p41
        %p165 = pneg %p38
        %p166 = pneg %p62
        %p167 = pneg %p59
        %p168 = pneg %p88
        %p169 = pneg %p85
        %s170 = sand.u32 %s75, 1
        %s171 = scalar_lea.sflag [#allocation4], %s170
        %s172 = sand.u32 %s75, 1
        %s173 = smul.addr %s172, 16
        %s174 = scalar_lea.vmem [#allocation7], %s173
        %v175 = vld [vmem:[#allocation5] sm:$0xff]
        %v176 = vld [vmem:[#allocation5 + $0x30] sm:$0xff]
        %v177 = vld [vmem:[#allocation5 + $0x60] sm:$0xff]
        %v178 = vld [vmem:[#allocation5 + $0x90] sm:$0xff]
        %v179 = vld [vmem:[#allocation5 + $0x8] sm:$0xff]
        %v180 = vld [vmem:[#allocation5 + $0x38] sm:$0xff]
        %v181 = vld [vmem:[#allocation5 + $0x68] sm:$0xff]
        %v182 = vld [vmem:[#allocation5 + $0x98] sm:$0xff]
        %v183 = vld [vmem:[#allocation5 + $0x10] sm:$0xff]
        %v184 = vld [vmem:[#allocation5 + $0x40] sm:$0xff]
        %v185 = vld [vmem:[#allocation5 + $0x70] sm:$0xff]
        %v186 = vld [vmem:[#allocation5 + $0xa0] sm:$0xff]
        %v187 = vld [vmem:[#allocation5 + $0x18] sm:$0xff]
        %v188 = vld [vmem:[#allocation5 + $0x48] sm:$0xff]
        %v189 = vld [vmem:[#allocation5 + $0x78] sm:$0xff]
        %v190 = vld [vmem:[#allocation5 + $0xa8] sm:$0xff]
        %v191 = vld [vmem:[#allocation5 + $0x20] sm:$0xff]
        %v192 = vld [vmem:[#allocation5 + $0x50] sm:$0xff]
        %v193 = vld [vmem:[#allocation5 + $0x80] sm:$0xff]
        %v194 = vld [vmem:[#allocation5 + $0xb0] sm:$0xff]
        %v195 = vld [vmem:[#allocation5 + $0x28] sm:$0xff]
        %v196 = vlaneseq
        %v197 = vand.u32 %v196, 127
        %v198 = vadd.s32 %v197, 128
        %v199 = vand.u32 %v197, 15
        %v200 = vand.u32 %v198, 15
        %vm201 = vcmp.ge.s32.totalorder %v197, 16
        %vm202 = vcmp.ge.s32.totalorder %v198, 16
        %vm203 = vcmp.lt.s32.totalorder %v197, 240
        %vm204 = vcmp.lt.s32.totalorder %v198, 240
        %vm205 = vcmp.ge.s32.totalorder %v199, 1
        %vm206 = vcmp.ge.s32.totalorder %v200, 1
        %vm207 = vcmp.le.s32.totalorder %v199, 14
        %vm208 = vcmp.le.s32.totalorder %v200, 14
        %v209 = vld [vmem:[%s150] sm:$0xff]
        %v210 = vld [vmem:[%s150 + $0x8] sm:$0xff]
        %v211 = vadd.f32 %v209, %v210
        %212 = vadd.xlane.f32.xlu0 %v211
        %v213 = vpop.xlane.xlu0 %212
        %v214 = vrcp.pop 256.0
        %v215 = vmul.f32 %v213, %v214
        %v216 = vmul.f32 %v209, %v209
        %v217 = vmul.f32 %v210, %v210
        %v218 = vadd.f32 %v216, %v217
        %219 = vadd.xlane.f32.xlu0 %v218
        %v220 = vpop.xlane.xlu0 %219
        %v221 = vmul.f32 %v220, %v214
        %v222 = vmul.f32 %v215, %v215
        %v223 = vsub.f32 %v221, %v222
        %v224 = vsub.f32 %v209, %v215
        %v225 = vsub.f32 %v210, %v215
        %v226 = vadd.f32 %v223, 1e-05
        %v227 = vrsqrt.pop %v226
        %v228 = vmul.f32 %v224, %v227
        %v229 = vmul.f32 %v225, %v227
        %231 = vset.pattern.permute.xlu0 0
        %232 = vperm.xlu0 %231, %v175
        %v233 = vpop.permute.xlu0 %232
        %v235 = vmul.f32 %v228, %v233
        %v236 = vmul.f32 %v229, %v233
        %237 = vset.pattern.permute.xlu0 1
        %238 = vperm.xlu0 %237, %v175
        %v239 = vpop.permute.xlu0 %238
        %v241 = vadd.f32 %v235, %v239
        %v242 = vadd.f32 %v236, %v239
        %v243 = vxor.u32 %v241, 2147483648
        %v244 = vxor.u32 %v242, 2147483648
        %v245 = vmul.f32 %v243, 1.442695
        %v246 = vpow.pop %v245
        %v247 = vmul.f32 %v244, 1.442695
        %v248 = vpow.pop %v247
        %v249 = vadd.f32 %v246, 1.0
        %v250 = vadd.f32 %v248, 1.0
        %v251 = vrcp.pop %v249
        %v252 = vmul.f32 1.0, %v251
        %v253 = vrcp.pop %v250
        %v254 = vmul.f32 1.0, %v253
        %v255 = vmul.f32 %v241, %v252
        %v256 = vmul.f32 %v242, %v254
        %vm257 = vcmask 64512
        %v259 = vsel %vm257, %v179, 0
        %v262 = vsel %vm257, %v180, 0
        %v265 = vsel %vm257, %v181, 0
        %v268 = vsel %vm257, %v182, 0
        %v270 = vand.u32 %v256, 4294901760
        %271 = vmatprep.subr.mxu0 %v270
        %v272 = vand.u32 %v255, 4294901760
        %273 = vmatpush1.msra.mxu0 %v272
        %274 = vmatprep.subr.mxu0 0.0
        %275 = vmatpush1.msra.mxu0 0.0
        %276 = vmatprep.subr.mxu0 0.0
        %277 = vmatpush1.msra.mxu0 0.0
        %278 = vmatprep.subr.mxu0 0.0
        %279 = vmatpush1.msra.mxu0 0.0
        %280 = vmatprep.subr.mxu0 0.0
        %281 = vmatpush1.msra.mxu0 0.0
        %282 = vmatprep.subr.mxu0 0.0
        %283 = vmatpush1.msra.mxu0 0.0
        %284 = vmatprep.subr.mxu0 0.0
        %285 = vmatpush1.msra.mxu0 0.0
        %286 = vmatprep.subr.mxu0 0.0
        %287 = vmatpush1.msra.mxu0 0.0
        %288 = vmatprep.subr.mxu0 0.0
        %289 = vmatpush1.msra.mxu0 0.0
        %290 = vmatprep.subr.mxu0 0.0
        %291 = vmatpush1.msra.mxu0 0.0
        %292 = vmatprep.subr.mxu0 0.0
        %293 = vmatpush1.msra.mxu0 0.0
        %294 = vmatprep.subr.mxu0 0.0
        %295 = vmatpush1.msra.mxu0 0.0
        %296 = vmatprep.subr.mxu0 0.0
        %297 = vmatpush1.msra.mxu0 0.0
        %298 = vmatprep.subr.mxu0 0.0
        %299 = vmatpush1.msra.mxu0 0.0
        %300 = vmatprep.subr.mxu0 0.0
        %301 = vmatpush1.msra.mxu0 0.0
        %302 = vmatprep.subr.mxu0 0.0
        %303 = vmatpush1.msra.mxu0 0.0
        %304 = vmatprep.subr.mxu0 0.0
        %305 = vmatpush1.msra.mxu0 0.0
        %306 = vmatprep.subr.mxu0 0.0
        %307 = vmatpush1.msra.mxu0 0.0
        %308 = vmatprep.subr.mxu0 0.0
        %309 = vmatpush1.msra.mxu0 0.0
        %310 = vmatprep.subr.mxu0 0.0
        %311 = vmatpush1.msra.mxu0 0.0
        %312 = vmatprep.subr.mxu0 0.0
        %313 = vmatpush1.msra.mxu0 0.0
        %314 = vmatprep.subr.mxu0 0.0
        %315 = vmatpush1.msra.mxu0 0.0
        %316 = vmatprep.subr.mxu0 0.0
        %317 = vmatpush1.msra.mxu0 0.0
        %318 = vmatprep.subr.mxu0 0.0
        %319 = vmatpush1.msra.mxu0 0.0
        %320 = vmatprep.subr.mxu0 0.0
        %321 = vmatpush1.msra.mxu0 0.0
        %322 = vmatprep.subr.mxu0 0.0
        %323 = vmatpush1.msra.mxu0 0.0
        %324 = vmatprep.subr.mxu0 0.0
        %325 = vmatpush1.msra.mxu0 0.0
        %326 = vmatprep.subr.mxu0 0.0
        %327 = vmatpush1.msra.mxu0 0.0
        %328 = vmatprep.subr.mxu0 0.0
        %329 = vmatpush1.msra.mxu0 0.0
        %330 = vmatprep.subr.mxu0 0.0
        %331 = vmatpush1.msra.mxu0 0.0
        %332 = vmatprep.subr.mxu0 0.0
        %333 = vmatpush1.msra.mxu0 0.0
        %334 = vmatprep.subr.mxu0 0.0
        %335 = vmatpush1.msra.mxu0 0.0
        %336 = vmatprep.mubr.f32.mxu0 0.0
        %v337 = vand.u32 %v259, 4294901760
        %v338 = vsub.f32 %v259, %v337
        %v339 = vand.u32 %v338, 4294901760
        %v340 = vsub.f32 %v338, %v339
        %v341 = vand.u32 %v340, 4294901760
        %342 = vmatmul.mubr.f32.gmra.mrb[0].mxu0 %v341
        %v343 = vpop.f32.mrb[0].mxu0
        %v344 = vadd.f32 0.0, %v343
        %v345 = vpop.f32.mrb[0].mxu0
        %v346 = vadd.f32 0.0, %v345
        %347 = vmatprep.mubr.f32.mxu0 0.0
        %v348 = vand.u32 %v262, 4294901760
        %v349 = vsub.f32 %v262, %v348
        %v350 = vand.u32 %v349, 4294901760
        %v351 = vsub.f32 %v349, %v350
        %v352 = vand.u32 %v351, 4294901760
        %353 = vmatmul.mubr.f32.gmra.mrb[0].mxu0 %v352
        %v354 = vpop.f32.mrb[0].mxu0
        %v355 = vadd.f32 0.0, %v354
        %v356 = vpop.f32.mrb[0].mxu0
        %v357 = vadd.f32 0.0, %v356
        %358 = vmatprep.mubr.f32.mxu0 0.0
        %v359 = vand.u32 %v265, 4294901760
        %v360 = vsub.f32 %v265, %v359
        %v361 = vand.u32 %v360, 4294901760
        %v362 = vsub.f32 %v360, %v361
        %v363 = vand.u32 %v362, 4294901760
        %364 = vmatmul.mubr.f32.gmra.mrb[0].mxu0 %v363
        %v365 = vpop.f32.mrb[0].mxu0
        %v366 = vadd.f32 0.0, %v365
        %v367 = vpop.f32.mrb[0].mxu0
        %v368 = vadd.f32 0.0, %v367
        %369 = vmatprep.mubr.f32.mxu0 0.0
        %v370 = vand.u32 %v268, 4294901760
        %v371 = vsub.f32 %v268, %v370
        %v372 = vand.u32 %v371, 4294901760
        %v373 = vsub.f32 %v371, %v372
        %v374 = vand.u32 %v373, 4294901760
        %375 = vmatmul.mubr.f32.gmra.mrb[0].mxu0 %v374
        %v376 = vpop.f32.mrb[0].mxu0
        %v377 = vadd.f32 0.0, %v376
        %v378 = vpop.f32.mrb[0].mxu0
        %v379 = vadd.f32 0.0, %v378
        %380 = vdwg.mxu0
        %v381 = vand.u32 %v256, 4294901760
        %v382 = vsub.f32 %v256, %v381
        %v383 = vand.u32 %v382, 4294901760
        %v384 = vsub.f32 %v382, %v383
        %v385 = vand.u32 %v384, 4294901760
        %386 = vmatprep.subr.mxu0 %v385
        %v387 = vand.u32 %v255, 4294901760
        %v388 = vsub.f32 %v255, %v387
        %v389 = vand.u32 %v388, 4294901760
        %v390 = vsub.f32 %v388, %v389
        %v391 = vand.u32 %v390, 4294901760
        %392 = vmatpush1.msra.mxu0 %v391
        %393 = vmatprep.subr.mxu0 0.0
        %394 = vmatpush1.msra.mxu0 0.0
        %395 = vmatprep.subr.mxu0 0.0
        %396 = vmatpush1.msra.mxu0 0.0
        %397 = vmatprep.subr.mxu0 0.0
        %398 = vmatpush1.msra.mxu0 0.0
        %399 = vmatprep.subr.mxu0 0.0
        %400 = vmatpush1.msra.mxu0 0.0
        %401 = vmatprep.subr.mxu0 0.0
        %402 = vmatpush1.msra.mxu0 0.0
        %403 = vmatprep.subr.mxu0 0.0
        %404 = vmatpush1.msra.mxu0 0.0
        %405 = vmatprep.subr.mxu0 0.0
        %406 = vmatpush1.msra.mxu0 0.0
        %407 = vmatprep.subr.mxu0 0.0
        %408 = vmatpush1.msra.mxu0 0.0
        %409 = vmatprep.subr.mxu0 0.0
        %410 = vmatpush1.msra.mxu0 0.0
        %411 = vmatprep.subr.mxu0 0.0
        %412 = vmatpush1.msra.mxu0 0.0
        %413 = vmatprep.subr.mxu0 0.0
        %414 = vmatpush1.msra.mxu0 0.0
        %415 = vmatprep.subr.mxu0 0.0
        %416 = vmatpush1.msra.mxu0 0.0
        %417 = vmatprep.subr.mxu0 0.0
        %418 = vmatpush1.msra.mxu0 0.0
        %419 = vmatprep.subr.mxu0 0.0
        %420 = vmatpush1.msra.mxu0 0.0
        %421 = vmatprep.subr.mxu0 0.0
        %422 = vmatpush1.msra.mxu0 0.0
        %423 = vmatprep.subr.mxu0 0.0
        %424 = vmatpush1.msra.mxu0 0.0
        %425 = vmatprep.subr.mxu0 0.0
        %426 = vmatpush1.msra.mxu0 0.0
        %427 = vmatprep.subr.mxu0 0.0
        %428 = vmatpush1.msra.mxu0 0.0
        %429 = vmatprep.subr.mxu0 0.0
        %430 = vmatpush1.msra.mxu0 0.0
        %431 = vmatprep.subr.mxu0 0.0
        %432 = vmatpush1.msra.mxu0 0.0
        %433 = vmatprep.subr.mxu0 0.0
        %434 = vmatpush1.msra.mxu0 0.0
        %435 = vmatprep.subr.mxu0 0.0
        %436 = vmatpush1.msra.mxu0 0.0
        %437 = vmatprep.subr.mxu0 0.0
        %438 = vmatpush1.msra.mxu0 0.0
        %439 = vmatprep.subr.mxu0 0.0
        %440 = vmatpush1.msra.mxu0 0.0
        %441 = vmatprep.subr.mxu0 0.0
        %442 = vmatpush1.msra.mxu0 0.0
        %443 = vmatprep.subr.mxu0 0.0
        %444 = vmatpush1.msra.mxu0 0.0
        %445 = vmatprep.subr.mxu0 0.0
        %446 = vmatpush1.msra.mxu0 0.0
        %447 = vmatprep.subr.mxu0 0.0
        %448 = vmatpush1.msra.mxu0 0.0
        %449 = vmatprep.subr.mxu0 0.0
        %450 = vmatpush1.msra.mxu0 0.0
        %451 = vmatprep.subr.mxu0 0.0
        %452 = vmatpush1.msra.mxu0 0.0
        %453 = vmatprep.subr.mxu0 0.0
        %454 = vmatpush1.msra.mxu0 0.0
        %455 = vmatprep.mubr.f32.mxu0 0.0
        %v456 = vand.u32 %v259, 4294901760
        %457 = vmatmul.mubr.f32.gmra.mrb[0].mxu0 %v456
        %v458 = vpop.f32.mrb[0].mxu0
        %v459 = vadd.f32 %v344, %v458
        %v460 = vpop.f32.mrb[0].mxu0
        %v461 = vadd.f32 %v346, %v460
        %462 = vmatprep.mubr.f32.mxu0 0.0
        %v463 = vand.u32 %v262, 4294901760
        %464 = vmatmul.mubr.f32.gmra.mrb[0].mxu0 %v463
        %v465 = vpop.f32.mrb[0].mxu0
        %v466 = vadd.f32 %v355, %v465
        %v467 = vpop.f32.mrb[0].mxu0
        %v468 = vadd.f32 %v357, %v467
        %469 = vmatprep.mubr.f32.mxu0 0.0
        %v470 = vand.u32 %v265, 4294901760
        %471 = vmatmul.mubr.f32.gmra.mrb[0].mxu0 %v470
        %v472 = vpop.f32.mrb[0].mxu0
        %v473 = vadd.f32 %v366, %v472
        %v474 = vpop.f32.mrb[0].mxu0
        %v475 = vadd.f32 %v368, %v474
        %476 = vmatprep.mubr.f32.mxu0 0.0
        %v477 = vand.u32 %v268, 4294901760
        %478 = vmatmul.mubr.f32.gmra.mrb[0].mxu0 %v477
        %v479 = vpop.f32.mrb[0].mxu0
        %v480 = vadd.f32 %v377, %v479
        %v481 = vpop.f32.mrb[0].mxu0
        %v482 = vadd.f32 %v379, %v481
        %483 = vdwg.mxu0
        %v484 = vand.u32 %v256, 4294901760
        %v485 = vsub.f32 %v256, %v484
        %486 = vmatprep.subr.mxu0 %v485
        %v487 = vand.u32 %v255, 4294901760
        %v488 = vsub.f32 %v255, %v487
        %489 = vmatpush1.msra.mxu0 %v488
        %490 = vmatprep.subr.mxu0 0.0
        %491 = vmatpush1.msra.mxu0 0.0
        %492 = vmatprep.subr.mxu0 0.0
        %493 = vmatpush1.msra.mxu0 0.0
        %494 = vmatprep.subr.mxu0 0.0
        %495 = vmatpush1.msra.mxu0 0.0
        %496 = vmatprep.subr.mxu0 0.0
        %497 = vmatpush1.msra.mxu0 0.0
        %498 = vmatprep.subr.mxu0 0.0
        %499 = vmatpush1.msra.mxu0 0.0
        %500 = vmatprep.subr.mxu0 0.0
        %501 = vmatpush1.msra.mxu0 0.0
        %502 = vmatprep.subr.mxu0 0.0
        %503 = vmatpush1.msra.mxu0 0.0
        %504 = vmatprep.subr.mxu0 0.0
        %505 = vmatpush1.msra.mxu0 0.0
        %506 = vmatprep.subr.mxu0 0.0
        %507 = vmatpush1.msra.mxu0 0.0
        %508 = vmatprep.subr.mxu0 0.0
        %509 = vmatpush1.msra.mxu0 0.0
        %510 = vmatprep.subr.mxu0 0.0
        %511 = vmatpush1.msra.mxu0 0.0
        %512 = vmatprep.subr.mxu0 0.0
        %513 = vmatpush1.msra.mxu0 0.0
        %514 = vmatprep.subr.mxu0 0.0
        %515 = vmatpush1.msra.mxu0 0.0
        %516 = vmatprep.subr.mxu0 0.0
        %517 = vmatpush1.msra.mxu0 0.0
        %518 = vmatprep.subr.mxu0 0.0
        %519 = vmatpush1.msra.mxu0 0.0
        %520 = vmatprep.subr.mxu0 0.0
        %521 = vmatpush1.msra.mxu0 0.0
        %522 = vmatprep.subr.mxu0 0.0
        %523 = vmatpush1.msra.mxu0 0.0
        %524 = vmatprep.subr.mxu0 0.0
        %525 = vmatpush1.msra.mxu0 0.0
        %526 = vmatprep.subr.mxu0 0.0
        %527 = vmatpush1.msra.mxu0 0.0
        %528 = vmatprep.subr.mxu0 0.0
        %529 = vmatpush1.msra.mxu0 0.0
        %530 = vmatprep.subr.mxu0 0.0
        %531 = vmatpush1.msra.mxu0 0.0
        %532 = vmatprep.subr.mxu0 0.0
        %533 = vmatpush1.msra.mxu0 0.0
        %534 = vmatprep.subr.mxu0 0.0
        %535 = vmatpush1.msra.mxu0 0.0
        %536 = vmatprep.subr.mxu0 0.0
        %537 = vmatpush1.msra.mxu0 0.0
        %538 = vmatprep.subr.mxu0 0.0
        %539 = vmatpush1.msra.mxu0 0.0
        %540 = vmatprep.subr.mxu0 0.0
        %541 = vmatpush1.msra.mxu0 0.0
        %542 = vmatprep.subr.mxu0 0.0
        %543 = vmatpush1.msra.mxu0 0.0
        %544 = vmatprep.subr.mxu0 0.0
        %545 = vmatpush1.msra.mxu0 0.0
        %546 = vmatprep.subr.mxu0 0.0
        %547 = vmatpush1.msra.mxu0 0.0
        %548 = vmatprep.subr.mxu0 0.0
        %549 = vmatpush1.msra.mxu0 0.0
        %550 = vmatprep.subr.mxu0 0.0
        %551 = vmatpush1.msra.mxu0 0.0
        %552 = vmatprep.mubr.f32.mxu0 0.0
        %v553 = vand.u32 %v259, 4294901760
        %v554 = vsub.f32 %v259, %v553
        %555 = vmatmul.mubr.f32.gmra.mrb[0].mxu0 %v554
        %v556 = vpop.f32.mrb[0].mxu0
        %v557 = vadd.f32 %v459, %v556
        %v558 = vpop.f32.mrb[0].mxu0
        %v559 = vadd.f32 %v461, %v558
        %560 = vmatprep.mubr.f32.mxu0 0.0
        %v561 = vand.u32 %v262, 4294901760
        %v562 = vsub.f32 %v262, %v561
        %563 = vmatmul.mubr.f32.gmra.mrb[0].mxu0 %v562
        %v564 = vpop.f32.mrb[0].mxu0
        %v565 = vadd.f32 %v466, %v564
        %v566 = vpop.f32.mrb[0].mxu0
        %v567 = vadd.f32 %v468, %v566
        %568 = vmatprep.mubr.f32.mxu0 0.0
        %v569 = vand.u32 %v265, 4294901760
        %v570 = vsub.f32 %v265, %v569
        %571 = vmatmul.mubr.f32.gmra.mrb[0].mxu0 %v570
        %v572 = vpop.f32.mrb[0].mxu0
        %v573 = vadd.f32 %v473, %v572
        %v574 = vpop.f32.mrb[0].mxu0
        %v575 = vadd.f32 %v475, %v574
        %576 = vmatprep.mubr.f32.mxu0 0.0
        %v577 = vand.u32 %v268, 4294901760
        %v578 = vsub.f32 %v268, %v577
        %579 = vmatmul.mubr.f32.gmra.mrb[0].mxu0 %v578
        %v580 = vpop.f32.mrb[0].mxu0
        %v581 = vadd.f32 %v480, %v580
        %v582 = vpop.f32.mrb[0].mxu0
        %v583 = vadd.f32 %v482, %v582
        %584 = vdwg.mxu0
        %v585 = vand.u32 %v256, 4294901760
        %586 = vmatprep.subr.mxu0 %v585
        %v587 = vand.u32 %v255, 4294901760
        %588 = vmatpush1.msra.mxu0 %v587
        %589 = vmatprep.subr.mxu0 0.0
        %590 = vmatpush1.msra.mxu0 0.0
        %591 = vmatprep.subr.mxu0 0.0
        %592 = vmatpush1.msra.mxu0 0.0
        %593 = vmatprep.subr.mxu0 0.0
        %594 = vmatpush1.msra.mxu0 0.0
        %595 = vmatprep.subr.mxu0 0.0
        %596 = vmatpush1.msra.mxu0 0.0
        %597 = vmatprep.subr.mxu0 0.0
        %598 = vmatpush1.msra.mxu0 0.0
        %599 = vmatprep.subr.mxu0 0.0
        %600 = vmatpush1.msra.mxu0 0.0
        %601 = vmatprep.subr.mxu0 0.0
        %602 = vmatpush1.msra.mxu0 0.0
        %603 = vmatprep.subr.mxu0 0.0
        %604 = vmatpush1.msra.mxu0 0.0
        %605 = vmatprep.subr.mxu0 0.0
        %606 = vmatpush1.msra.mxu0 0.0
        %607 = vmatprep.subr.mxu0 0.0
        %608 = vmatpush1.msra.mxu0 0.0
        %609 = vmatprep.subr.mxu0 0.0
        %610 = vmatpush1.msra.mxu0 0.0
        %611 = vmatprep.subr.mxu0 0.0
        %612 = vmatpush1.msra.mxu0 0.0
        %613 = vmatprep.subr.mxu0 0.0
        %614 = vmatpush1.msra.mxu0 0.0
        %615 = vmatprep.subr.mxu0 0.0
        %616 = vmatpush1.msra.mxu0 0.0
        %617 = vmatprep.subr.mxu0 0.0
        %618 = vmatpush1.msra.mxu0 0.0
        %619 = vmatprep.subr.mxu0 0.0
        %620 = vmatpush1.msra.mxu0 0.0
        %621 = vmatprep.subr.mxu0 0.0
        %622 = vmatpush1.msra.mxu0 0.0
        %623 = vmatprep.subr.mxu0 0.0
        %624 = vmatpush1.msra.mxu0 0.0
        %625 = vmatprep.subr.mxu0 0.0
        %626 = vmatpush1.msra.mxu0 0.0
        %627 = vmatprep.subr.mxu0 0.0
        %628 = vmatpush1.msra.mxu0 0.0
        %629 = vmatprep.subr.mxu0 0.0
        %630 = vmatpush1.msra.mxu0 0.0
        %631 = vmatprep.subr.mxu0 0.0
        %632 = vmatpush1.msra.mxu0 0.0
        %633 = vmatprep.subr.mxu0 0.0
        %634 = vmatpush1.msra.mxu0 0.0
        %635 = vmatprep.subr.mxu0 0.0
        %636 = vmatpush1.msra.mxu0 0.0
        %637 = vmatprep.subr.mxu0 0.0
        %638 = vmatpush1.msra.mxu0 0.0
        %639 = vmatprep.subr.mxu0 0.0
        %640 = vmatpush1.msra.mxu0 0.0
        %641 = vmatprep.subr.mxu0 0.0
        %642 = vmatpush1.msra.mxu0 0.0
        %643 = vmatprep.subr.mxu0 0.0
        %644 = vmatpush1.msra.mxu0 0.0
        %645 = vmatprep.subr.mxu0 0.0
        %646 = vmatpush1.msra.mxu0 0.0
        %647 = vmatprep.subr.mxu0 0.0
        %648 = vmatpush1.msra.mxu0 0.0
        %649 = vmatprep.subr.mxu0 0.0
        %650 = vmatpush1.msra.mxu0 0.0
        %651 = vmatprep.mubr.f32.mxu0 0.0
        %v652 = vand.u32 %v259, 4294901760
        %v653 = vsub.f32 %v259, %v652
        %v654 = vand.u32 %v653, 4294901760
        %655 = vmatmul.mubr.f32.gmra.mrb[0].mxu0 %v654
        %v656 = vpop.f32.mrb[0].mxu0
        %v657 = vadd.f32 %v557, %v656
        %v658 = vpop.f32.mrb[0].mxu0
        %v659 = vadd.f32 %v559, %v658
        %660 = vmatprep.mubr.f32.mxu0 0.0
        %v661 = vand.u32 %v262, 4294901760
        %v662 = vsub.f32 %v262, %v661
        %v663 = vand.u32 %v662, 4294901760
        %664 = vmatmul.mubr.f32.gmra.mrb[0].mxu0 %v663
        %v665 = vpop.f32.mrb[0].mxu0
        %v666 = vadd.f32 %v565, %v665
        %v667 = vpop.f32.mrb[0].mxu0
        %v668 = vadd.f32 %v567, %v667
        %669 = vmatprep.mubr.f32.mxu0 0.0
        %v670 = vand.u32 %v265, 4294901760
        %v671 = vsub.f32 %v265, %v670
        %v672 = vand.u32 %v671, 4294901760
        %673 = vmatmul.mubr.f32.gmra.mrb[0].mxu0 %v672
        %v674 = vpop.f32.mrb[0].mxu0
        %v675 = vadd.f32 %v573, %v674
        %v676 = vpop.f32.mrb[0].mxu0
        %v677 = vadd.f32 %v575, %v676
        %678 = vmatprep.mubr.f32.mxu0 0.0
        %v679 = vand.u32 %v268, 4294901760
        %v680 = vsub.f32 %v268, %v679
        %v681 = vand.u32 %v680, 4294901760
        %682 = vmatmul.mubr.f32.gmra.mrb[0].mxu0 %v681
        %v683 = vpop.f32.mrb[0].mxu0
        %v684 = vadd.f32 %v581, %v683
        %v685 = vpop.f32.mrb[0].mxu0
        %v686 = vadd.f32 %v583, %v685
        %687 = vdwg.mxu0
        %v688 = vand.u32 %v256, 4294901760
        %v689 = vsub.f32 %v256, %v688
        %v690 = vand.u32 %v689, 4294901760
        %691 = vmatprep.subr.mxu0 %v690
        %v692 = vand.u32 %v255, 4294901760
        %v693 = vsub.f32 %v255, %v692
        %v694 = vand.u32 %v693, 4294901760
        %695 = vmatpush1.msra.mxu0 %v694
        %696 = vmatprep.subr.mxu0 0.0
        %697 = vmatpush1.msra.mxu0 0.0
        %698 = vmatprep.subr.mxu0 0.0
        %699 = vmatpush1.msra.mxu0 0.0
        %700 = vmatprep.subr.mxu0 0.0
        %701 = vmatpush1.msra.mxu0 0.0
        %702 = vmatprep.subr.mxu0 0.0
        %703 = vmatpush1.msra.mxu0 0.0
        %704 = vmatprep.subr.mxu0 0.0
        %705 = vmatpush1.msra.mxu0 0.0
        %706 = vmatprep.subr.mxu0 0.0
        %707 = vmatpush1.msra.mxu0 0.0
        %708 = vmatprep.subr.mxu0 0.0
        %709 = vmatpush1.msra.mxu0 0.0
        %710 = vmatprep.subr.mxu0 0.0
        %711 = vmatpush1.msra.mxu0 0.0
        %712 = vmatprep.subr.mxu0 0.0
        %713 = vmatpush1.msra.mxu0 0.0
        %714 = vmatprep.subr.mxu0 0.0
        %715 = vmatpush1.msra.mxu0 0.0
        %716 = vmatprep.subr.mxu0 0.0
        %717 = vmatpush1.msra.mxu0 0.0
        %718 = vmatprep.subr.mxu0 0.0
        %719 = vmatpush1.msra.mxu0 0.0
        %720 = vmatprep.subr.mxu0 0.0
        %721 = vmatpush1.msra.mxu0 0.0
        %722 = vmatprep.subr.mxu0 0.0
        %723 = vmatpush1.msra.mxu0 0.0
        %724 = vmatprep.subr.mxu0 0.0
        %725 = vmatpush1.msra.mxu0 0.0
        %726 = vmatprep.subr.mxu0 0.0
        %727 = vmatpush1.msra.mxu0 0.0
        %728 = vmatprep.subr.mxu0 0.0
        %729 = vmatpush1.msra.mxu0 0.0
        %730 = vmatprep.subr.mxu0 0.0
        %731 = vmatpush1.msra.mxu0 0.0
        %732 = vmatprep.subr.mxu0 0.0
        %733 = vmatpush1.msra.mxu0 0.0
        %734 = vmatprep.subr.mxu0 0.0
        %735 = vmatpush1.msra.mxu0 0.0
        %736 = vmatprep.subr.mxu0 0.0
        %737 = vmatpush1.msra.mxu0 0.0
        %738 = vmatprep.subr.mxu0 0.0
        %739 = vmatpush1.msra.mxu0 0.0
        %740 = vmatprep.subr.mxu0 0.0
        %741 = vmatpush1.msra.mxu0 0.0
        %742 = vmatprep.subr.mxu0 0.0
        %743 = vmatpush1.msra.mxu0 0.0
        %744 = vmatprep.subr.mxu0 0.0
        %745 = vmatpush1.msra.mxu0 0.0
        %746 = vmatprep.subr.mxu0 0.0
        %747 = vmatpush1.msra.mxu0 0.0
        %748 = vmatprep.subr.mxu0 0.0
        %749 = vmatpush1.msra.mxu0 0.0
        %750 = vmatprep.subr.mxu0 0.0
        %751 = vmatpush1.msra.mxu0 0.0
        %752 = vmatprep.subr.mxu0 0.0
        %753 = vmatpush1.msra.mxu0 0.0
        %754 = vmatprep.subr.mxu0 0.0
        %755 = vmatpush1.msra.mxu0 0.0
        %756 = vmatprep.subr.mxu0 0.0
        %757 = vmatpush1.msra.mxu0 0.0
        %758 = vmatprep.mubr.f32.mxu0 0.0
        %v759 = vand.u32 %v259, 4294901760
        %760 = vmatmul.mubr.f32.gmra.mrb[0].mxu0 %v759
        %v761 = vpop.f32.mrb[0].mxu0
        %v762 = vadd.f32 %v657, %v761
        %v763 = vpop.f32.mrb[0].mxu0
        %v764 = vadd.f32 %v659, %v763
        %765 = vmatprep.mubr.f32.mxu0 0.0
        %v766 = vand.u32 %v262, 4294901760
        %767 = vmatmul.mubr.f32.gmra.mrb[0].mxu0 %v766
        %v768 = vpop.f32.mrb[0].mxu0
        %v769 = vadd.f32 %v666, %v768
        %v770 = vpop.f32.mrb[0].mxu0
        %v771 = vadd.f32 %v668, %v770
        %772 = vmatprep.mubr.f32.mxu0 0.0
        %v773 = vand.u32 %v265, 4294901760
        %774 = vmatmul.mubr.f32.gmra.mrb[0].mxu0 %v773
        %v775 = vpop.f32.mrb[0].mxu0
        %v776 = vadd.f32 %v675, %v775
        %v777 = vpop.f32.mrb[0].mxu0
        %v778 = vadd.f32 %v677, %v777
        %779 = vmatprep.mubr.f32.mxu0 0.0
        %v780 = vand.u32 %v268, 4294901760
        %781 = vmatmul.mubr.f32.gmra.mrb[0].mxu0 %v780
        %v782 = vpop.f32.mrb[0].mxu0
        %v783 = vadd.f32 %v684, %v782
        %v784 = vpop.f32.mrb[0].mxu0
        %v785 = vadd.f32 %v686, %v784
        %786 = vdwg.mxu0
        %v787 = vand.u32 %v256, 4294901760
        %788 = vmatprep.subr.mxu0 %v787
        %v789 = vand.u32 %v255, 4294901760
        %790 = vmatpush1.msra.mxu0 %v789
        %791 = vmatprep.subr.mxu0 0.0
        %792 = vmatpush1.msra.mxu0 0.0
        %793 = vmatprep.subr.mxu0 0.0
        %794 = vmatpush1.msra.mxu0 0.0
        %795 = vmatprep.subr.mxu0 0.0
        %796 = vmatpush1.msra.mxu0 0.0
        %797 = vmatprep.subr.mxu0 0.0
        %798 = vmatpush1.msra.mxu0 0.0
        %799 = vmatprep.subr.mxu0 0.0
        %800 = vmatpush1.msra.mxu0 0.0
        %801 = vmatprep.subr.mxu0 0.0
        %802 = vmatpush1.msra.mxu0 0.0
        %803 = vmatprep.subr.mxu0 0.0
        %804 = vmatpush1.msra.mxu0 0.0
        %805 = vmatprep.subr.mxu0 0.0
        %806 = vmatpush1.msra.mxu0 0.0
        %807 = vmatprep.subr.mxu0 0.0
        %808 = vmatpush1.msra.mxu0 0.0
        %809 = vmatprep.subr.mxu0 0.0
        %810 = vmatpush1.msra.mxu0 0.0
        %811 = vmatprep.subr.mxu0 0.0
        %812 = vmatpush1.msra.mxu0 0.0
        %813 = vmatprep.subr.mxu0 0.0
        %814 = vmatpush1.msra.mxu0 0.0
        %815 = vmatprep.subr.mxu0 0.0
        %816 = vmatpush1.msra.mxu0 0.0
        %817 = vmatprep.subr.mxu0 0.0
        %818 = vmatpush1.msra.mxu0 0.0
        %819 = vmatprep.subr.mxu0 0.0
        %820 = vmatpush1.msra.mxu0 0.0
        %821 = vmatprep.subr.mxu0 0.0
        %822 = vmatpush1.msra.mxu0 0.0
        %823 = vmatprep.subr.mxu0 0.0
        %824 = vmatpush1.msra.mxu0 0.0
        %825 = vmatprep.subr.mxu0 0.0
        %826 = vmatpush1.msra.mxu0 0.0
        %827 = vmatprep.subr.mxu0 0.0
        %828 = vmatpush1.msra.mxu0 0.0
        %829 = vmatprep.subr.mxu0 0.0
        %830 = vmatpush1.msra.mxu0 0.0
        %831 = vmatprep.subr.mxu0 0.0
        %832 = vmatpush1.msra.mxu0 0.0
        %833 = vmatprep.subr.mxu0 0.0
        %834 = vmatpush1.msra.mxu0 0.0
        %835 = vmatprep.subr.mxu0 0.0
        %836 = vmatpush1.msra.mxu0 0.0
        %837 = vmatprep.subr.mxu0 0.0
        %838 = vmatpush1.msra.mxu0 0.0
        %839 = vmatprep.subr.mxu0 0.0
        %840 = vmatpush1.msra.mxu0 0.0
        %841 = vmatprep.subr.mxu0 0.0
        %842 = vmatpush1.msra.mxu0 0.0
        %843 = vmatprep.subr.mxu0 0.0
        %844 = vmatpush1.msra.mxu0 0.0
        %845 = vmatprep.subr.mxu0 0.0
        %846 = vmatpush1.msra.mxu0 0.0
        %847 = vmatprep.subr.mxu0 0.0
        %848 = vmatpush1.msra.mxu0 0.0
        %849 = vmatprep.subr.mxu0 0.0
        %850 = vmatpush1.msra.mxu0 0.0
        %851 = vmatprep.subr.mxu0 0.0
        %852 = vmatpush1.msra.mxu0 0.0
        %853 = vmatprep.mubr.f32.mxu0 0.0
        %v854 = vand.u32 %v259, 4294901760
        %855 = vmatmul.mubr.f32.gmra.mrb[0].mxu0 %v854
        %v856 = vpop.f32.mrb[0].mxu0
        %v857 = vadd.f32 %v762, %v856
        %v858 = vpop.f32.mrb[0].mxu0
        %v859 = vadd.f32 %v764, %v858
        %860 = vmatprep.mubr.f32.mxu0 0.0
        %v861 = vand.u32 %v262, 4294901760
        %862 = vmatmul.mubr.f32.gmra.mrb[0].mxu0 %v861
        %v863 = vpop.f32.mrb[0].mxu0
        %v864 = vadd.f32 %v769, %v863
        %v865 = vpop.f32.mrb[0].mxu0
        %v866 = vadd.f32 %v771, %v865
        %867 = vmatprep.mubr.f32.mxu0 0.0
        %v868 = vand.u32 %v265, 4294901760
        %869 = vmatmul.mubr.f32.gmra.mrb[0].mxu0 %v868
        %v870 = vpop.f32.mrb[0].mxu0
        %v871 = vadd.f32 %v776, %v870
        %v872 = vpop.f32.mrb[0].mxu0
        %v873 = vadd.f32 %v778, %v872
        %874 = vmatprep.mubr.f32.mxu0 0.0
        %v875 = vand.u32 %v268, 4294901760
        %876 = vmatmul.mubr.f32.gmra.mrb[0].mxu0 %v875
        %v877 = vpop.f32.mrb[0].mxu0
        %v878 = vadd.f32 %v783, %v877
        %v879 = vpop.f32.mrb[0].mxu0
        %v880 = vadd.f32 %v785, %v879
        %881 = vdwg.mxu0
        %v882 = vadd.f32 %v857, %v859
        %883 = vadd.xlane.f32.xlu0 %v882
        %v884 = vpop.xlane.xlu0 %883
        %v885 = vadd.f32 %v864, %v866
        %886 = vadd.xlane.f32.xlu0 %v885
        %v887 = vpop.xlane.xlu0 %886
        %v888 = vadd.f32 %v871, %v873
        %889 = vadd.xlane.f32.xlu0 %v888
        %v890 = vpop.xlane.xlu0 %889
        %v891 = vadd.f32 %v878, %v880
        %892 = vadd.xlane.f32.xlu0 %v891
        %v893 = vpop.xlane.xlu0 %892
        %v894 = vmul.f32 %v884, %v214
        %v895 = vmul.f32 %v887, %v214
        %v896 = vmul.f32 %v890, %v214
        %v897 = vmul.f32 %v893, %v214
        %v898 = vmul.f32 %v857, %v857
        %v899 = vmul.f32 %v859, %v859
        %v900 = vmul.f32 %v864, %v864
        %v901 = vmul.f32 %v866, %v866
        %v902 = vmul.f32 %v871, %v871
        %v903 = vmul.f32 %v873, %v873
        %v904 = vmul.f32 %v878, %v878
        %v905 = vmul.f32 %v880, %v880
        %v906 = vadd.f32 %v898, %v899
        %907 = vadd.xlane.f32.xlu0 %v906
        %v908 = vpop.xlane.xlu0 %907
        %v909 = vadd.f32 %v900, %v901
        %910 = vadd.xlane.f32.xlu0 %v909
        %v911 = vpop.xlane.xlu0 %910
        %v912 = vadd.f32 %v902, %v903
        %913 = vadd.xlane.f32.xlu0 %v912
        %v914 = vpop.xlane.xlu0 %913
        %v915 = vadd.f32 %v904, %v905
        %916 = vadd.xlane.f32.xlu0 %v915
        %v917 = vpop.xlane.xlu0 %916
        %v918 = vmul.f32 %v908, %v214
        %v919 = vmul.f32 %v911, %v214
        %v920 = vmul.f32 %v914, %v214
        %v921 = vmul.f32 %v917, %v214
        %v922 = vmul.f32 %v894, %v894
        %v923 = vmul.f32 %v895, %v895
        %v924 = vmul.f32 %v896, %v896
        %v925 = vmul.f32 %v897, %v897
        %v926 = vsub.f32 %v918, %v922
        %v927 = vsub.f32 %v919, %v923
        %v928 = vsub.f32 %v920, %v924
        %v929 = vsub.f32 %v921, %v925
        %v930 = vsub.f32 %v857, %v894
        %v931 = vsub.f32 %v859, %v894
        %v932 = vsub.f32 %v864, %v895
        %v933 = vsub.f32 %v866, %v895
        %v934 = vsub.f32 %v871, %v896
        %v935 = vsub.f32 %v873, %v896
        %v936 = vsub.f32 %v878, %v897
        %v937 = vsub.f32 %v880, %v897
        %v938 = vadd.f32 %v926, 1e-05
        %v939 = vadd.f32 %v927, 1e-05
        %v940 = vadd.f32 %v928, 1e-05
        %v941 = vadd.f32 %v929, 1e-05
        %v942 = vrsqrt.pop %v938
        %v943 = vrsqrt.pop %v939
        %v944 = vrsqrt.pop %v940
        %v945 = vrsqrt.pop %v941
        %v946 = vmul.f32 %v930, %v942
        %v947 = vmul.f32 %v931, %v942
        %v948 = vmul.f32 %v932, %v943
        %v949 = vmul.f32 %v933, %v943
        %v950 = vmul.f32 %v934, %v944
        %v951 = vmul.f32 %v935, %v944
        %v952 = vmul.f32 %v936, %v945
        %v953 = vmul.f32 %v937, %v945
        %954 = vset.pattern.permute.xlu0 2
        %955 = vperm.xlu0 %954, %v175
        %v956 = vpop.permute.xlu0 %955
        %959 = vset.pattern.permute.xlu0 2
        %960 = vperm.xlu0 %959, %v176
        %v961 = vpop.permute.xlu0 %960
        %964 = vset.pattern.permute.xlu0 2
        %965 = vperm.xlu0 %964, %v177
        %v966 = vpop.permute.xlu0 %965
        %969 = vset.pattern.permute.xlu0 2
        %970 = vperm.xlu0 %969, %v178
        %v971 = vpop.permute.xlu0 %970
        %v973 = vmul.f32 %v946, %v956
        %v974 = vmul.f32 %v947, %v956
        %v975 = vmul.f32 %v948, %v961
        %v976 = vmul.f32 %v949, %v961
        %v977 = vmul.f32 %v950, %v966
        %v978 = vmul.f32 %v951, %v966
        %v979 = vmul.f32 %v952, %v971
        %v980 = vmul.f32 %v953, %v971
        %981 = vset.pattern.permute.xlu0 3
        %982 = vperm.xlu0 %981, %v175
        %v983 = vpop.permute.xlu0 %982
        %985 = vset.pattern.permute.xlu0 3
        %986 = vperm.xlu0 %985, %v176
        %v987 = vpop.permute.xlu0 %986
        %989 = vset.pattern.permute.xlu0 3
        %990 = vperm.xlu0 %989, %v177
        %v991 = vpop.permute.xlu0 %990
        %993 = vset.pattern.permute.xlu0 3
        %994 = vperm.xlu0 %993, %v178
        %v995 = vpop.permute.xlu0 %994
        %v997 = vadd.f32 %v973, %v983
        %v998 = vadd.f32 %v974, %v983
        %v999 = vadd.f32 %v975, %v987
        %v1000 = vadd.f32 %v976, %v987
        %v1001 = vadd.f32 %v977, %v991
        %v1002 = vadd.f32 %v978, %v991
        %v1003 = vadd.f32 %v979, %v995
        %v1004 = vadd.f32 %v980, %v995
        %v1005 = vxor.u32 %v997, 2147483648
        %v1006 = vxor.u32 %v998, 2147483648
        %v1007 = vxor.u32 %v999, 2147483648
        %v1008 = vxor.u32 %v1000, 2147483648
        %v1009 = vxor.u32 %v1001, 2147483648
        %v1010 = vxor.u32 %v1002, 2147483648
        %v1011 = vxor.u32 %v1003, 2147483648
        %v1012 = vxor.u32 %v1004, 2147483648
        %v1013 = vmul.f32 %v1005, 1.442695
        %v1014 = vpow.pop %v1013
        %v1015 = vmul.f32 %v1006, 1.442695
        %v1016 = vpow.pop %v1015
        %v1017 = vmul.f32 %v1007, 1.442695
        %v1018 = vpow.pop %v1017
        %v1019 = vmul.f32 %v1008, 1.442695
        %v1020 = vpow.pop %v1019
        %v1021 = vmul.f32 %v1009, 1.442695
        %v1022 = vpow.pop %v1021
        %v1023 = vmul.f32 %v1010, 1.442695
        %v1024 = vpow.pop %v1023
        %v1025 = vmul.f32 %v1011, 1.442695
        %v1026 = vpow.pop %v1025
        %v1027 = vmul.f32 %v1012, 1.442695
        %v1028 = vpow.pop %v1027
        %v1029 = vadd.f32 %v1014, 1.0
        %v1030 = vadd.f32 %v1016, 1.0
        %v1031 = vadd.f32 %v1018, 1.0
        %v1032 = vadd.f32 %v1020, 1.0
        %v1033 = vadd.f32 %v1022, 1.0
        %v1034 = vadd.f32 %v1024, 1.0
        %v1035 = vadd.f32 %v1026, 1.0
        %v1036 = vadd.f32 %v1028, 1.0
        %v1037 = vrcp.pop %v1029
        %v1038 = vmul.f32 1.0, %v1037
        %v1039 = vrcp.pop %v1030
        %v1040 = vmul.f32 1.0, %v1039
        %v1041 = vrcp.pop %v1031
        %v1042 = vmul.f32 1.0, %v1041
        %v1043 = vrcp.pop %v1032
        %v1044 = vmul.f32 1.0, %v1043
        %v1045 = vrcp.pop %v1033
        %v1046 = vmul.f32 1.0, %v1045
        %v1047 = vrcp.pop %v1034
        %v1048 = vmul.f32 1.0, %v1047
        %v1049 = vrcp.pop %v1035
        %v1050 = vmul.f32 1.0, %v1049
        %v1051 = vrcp.pop %v1036
        %v1052 = vmul.f32 1.0, %v1051
        %v1053 = vmul.f32 %v997, %v1038
        %v1054 = vmul.f32 %v998, %v1040
        %v1055 = vmul.f32 %v999, %v1042
        %v1056 = vmul.f32 %v1000, %v1044
        %v1057 = vmul.f32 %v1001, %v1046
        %v1058 = vmul.f32 %v1002, %v1048
        %v1059 = vmul.f32 %v1003, %v1050
        %v1060 = vmul.f32 %v1004, %v1052
        %1062 = vset.pattern.permute.xlu0 4
        %1063 = vperm.xlu0 %1062, %v183
        %v1064 = vpop.permute.xlu0 %1063
        %1067 = vset.pattern.permute.xlu0 4
        %1068 = vperm.xlu0 %1067, %v184
        %v1069 = vpop.permute.xlu0 %1068
        %1072 = vset.pattern.permute.xlu0 4
        %1073 = vperm.xlu0 %1072, %v185
        %v1074 = vpop.permute.xlu0 %1073
        %1077 = vset.pattern.permute.xlu0 4
        %1078 = vperm.xlu0 %1077, %v186
        %v1079 = vpop.permute.xlu0 %1078
        %v1081 = vmul.f32 %v1053, %v1064
        %v1082 = vmul.f32 %v1054, %v1064
        %v1083 = vmul.f32 %v1055, %v1069
        %v1084 = vmul.f32 %v1056, %v1069
        %v1085 = vmul.f32 %v1057, %v1074
        %v1086 = vmul.f32 %v1058, %v1074
        %v1087 = vmul.f32 %v1059, %v1079
        %v1088 = vmul.f32 %v1060, %v1079
        %1089 = vrot.lane.b32.xlu0 %v1053, 17
        %v1090 = vpop.permute.xlu0 %1089
        %1091 = vrot.lane.b32.xlu0 %v1055, 17
        %v1092 = vpop.permute.xlu0 %1091
        %1093 = vrot.lane.b32.xlu0 %v1057, 17
        %v1094 = vpop.permute.xlu0 %1093
        %1095 = vrot.lane.b32.xlu0 %v1059, 17
        %v1096 = vpop.permute.xlu0 %1095
        %1097 = vrot.lane.b32.xlu0 %v1054, 17
        %v1098 = vpop.permute.xlu0 %1097
        %1099 = vrot.lane.b32.xlu0 %v1056, 17
        %v1100 = vpop.permute.xlu0 %1099
        %1101 = vrot.lane.b32.xlu0 %v1058, 17
        %v1102 = vpop.permute.xlu0 %1101
        %1103 = vrot.lane.b32.xlu0 %v1060, 17
        %v1104 = vpop.permute.xlu0 %1103
        %vm1105 = vcmp.lt.s32.totalorder %v197, 17
        %v1106 = vsel %vm1105, %v1090, %v1098
        %v1107 = vsel %vm1105, %v1092, %v1100
        %v1108 = vsel %vm1105, %v1094, %v1102
        %v1109 = vsel %vm1105, %v1096, %v1104
        %v1110 = vsel %vm1105, %v1098, %v1090
        %v1111 = vsel %vm1105, %v1100, %v1092
        %v1112 = vsel %vm1105, %v1102, %v1094
        %v1113 = vsel %vm1105, %v1104, %v1096
        %vm1114 = vmand %vm201, %vm205
        %vm1115 = vmand %vm202, %vm206
        %v1116 = vsel %vm1114, %v1110, 0.0
        %v1117 = vsel %vm1115, %v1106, 0.0
        %v1118 = vsel %vm1114, %v1111, 0.0
        %v1119 = vsel %vm1115, %v1107, 0.0
        %v1120 = vsel %vm1114, %v1112, 0.0
        %v1121 = vsel %vm1115, %v1108, 0.0
        %v1122 = vsel %vm1114, %v1113, 0.0
        %v1123 = vsel %vm1115, %v1109, 0.0
        %1124 = vset.pattern.permute.xlu0 0
        %1125 = vperm.xlu0 %1124, %v183
        %v1126 = vpop.permute.xlu0 %1125
        %1128 = vset.pattern.permute.xlu0 0
        %1129 = vperm.xlu0 %1128, %v184
        %v1130 = vpop.permute.xlu0 %1129
        %1132 = vset.pattern.permute.xlu0 0
        %1133 = vperm.xlu0 %1132, %v185
        %v1134 = vpop.permute.xlu0 %1133
        %1136 = vset.pattern.permute.xlu0 0
        %1137 = vperm.xlu0 %1136, %v186
        %v1138 = vpop.permute.xlu0 %1137
        %v1140 = vmul.f32 %v1116, %v1126
        %v1141 = vmul.f32 %v1117, %v1126
        %v1142 = vmul.f32 %v1118, %v1130
        %v1143 = vmul.f32 %v1119, %v1130
        %v1144 = vmul.f32 %v1120, %v1134
        %v1145 = vmul.f32 %v1121, %v1134
        %v1146 = vmul.f32 %v1122, %v1138
        %v1147 = vmul.f32 %v1123, %v1138
        %v1148 = vadd.f32 %v1081, %v1140
        %v1149 = vadd.f32 %v1082, %v1141
        %v1150 = vadd.f32 %v1083, %v1142
        %v1151 = vadd.f32 %v1084, %v1143
        %v1152 = vadd.f32 %v1085, %v1144
        %v1153 = vadd.f32 %v1086, %v1145
        %v1154 = vadd.f32 %v1087, %v1146
        %v1155 = vadd.f32 %v1088, %v1147
        %1156 = vrot.lane.b32.xlu0 %v1053, 16
        %v1157 = vpop.permute.xlu0 %1156
        %1158 = vrot.lane.b32.xlu0 %v1055, 16
        %v1159 = vpop.permute.xlu0 %1158
        %1160 = vrot.lane.b32.xlu0 %v1057, 16
        %v1161 = vpop.permute.xlu0 %1160
        %1162 = vrot.lane.b32.xlu0 %v1059, 16
        %v1163 = vpop.permute.xlu0 %1162
        %1164 = vrot.lane.b32.xlu0 %v1054, 16
        %v1165 = vpop.permute.xlu0 %1164
        %1166 = vrot.lane.b32.xlu0 %v1056, 16
        %v1167 = vpop.permute.xlu0 %1166
        %1168 = vrot.lane.b32.xlu0 %v1058, 16
        %v1169 = vpop.permute.xlu0 %1168
        %1170 = vrot.lane.b32.xlu0 %v1060, 16
        %v1171 = vpop.permute.xlu0 %1170
        %vm1172 = vcmp.lt.s32.totalorder %v197, 16
        %v1173 = vsel %vm1172, %v1157, %v1165
        %v1174 = vsel %vm1172, %v1159, %v1167
        %v1175 = vsel %vm1172, %v1161, %v1169
        %v1176 = vsel %vm1172, %v1163, %v1171
        %v1177 = vsel %vm1172, %v1165, %v1157
        %v1178 = vsel %vm1172, %v1167, %v1159
        %v1179 = vsel %vm1172, %v1169, %v1161
        %v1180 = vsel %vm1172, %v1171, %v1163
        %v1181 = vsel %vm201, %v1177, 0.0
        %v1182 = vsel %vm202, %v1173, 0.0
        %v1183 = vsel %vm201, %v1178, 0.0
        %v1184 = vsel %vm202, %v1174, 0.0
        %v1185 = vsel %vm201, %v1179, 0.0
        %v1186 = vsel %vm202, %v1175, 0.0
        %v1187 = vsel %vm201, %v1180, 0.0
        %v1188 = vsel %vm202, %v1176, 0.0
        %1189 = vset.pattern.permute.xlu0 1
        %1190 = vperm.xlu0 %1189, %v183
        %v1191 = vpop.permute.xlu0 %1190
        %1193 = vset.pattern.permute.xlu0 1
        %1194 = vperm.xlu0 %1193, %v184
        %v1195 = vpop.permute.xlu0 %1194
        %1197 = vset.pattern.permute.xlu0 1
        %1198 = vperm.xlu0 %1197, %v185
        %v1199 = vpop.permute.xlu0 %1198
        %1201 = vset.pattern.permute.xlu0 1
        %1202 = vperm.xlu0 %1201, %v186
        %v1203 = vpop.permute.xlu0 %1202
        %v1205 = vmul.f32 %v1181, %v1191
        %v1206 = vmul.f32 %v1182, %v1191
        %v1207 = vmul.f32 %v1183, %v1195
        %v1208 = vmul.f32 %v1184, %v1195
        %v1209 = vmul.f32 %v1185, %v1199
        %v1210 = vmul.f32 %v1186, %v1199
        %v1211 = vmul.f32 %v1187, %v1203
        %v1212 = vmul.f32 %v1188, %v1203
        %v1213 = vadd.f32 %v1148, %v1205
        %v1214 = vadd.f32 %v1149, %v1206
        %v1215 = vadd.f32 %v1150, %v1207
        %v1216 = vadd.f32 %v1151, %v1208
        %v1217 = vadd.f32 %v1152, %v1209
        %v1218 = vadd.f32 %v1153, %v1210
        %v1219 = vadd.f32 %v1154, %v1211
        %v1220 = vadd.f32 %v1155, %v1212
        %1221 = vrot.lane.b32.xlu0 %v1053, 15
        %v1222 = vpop.permute.xlu0 %1221
        %1223 = vrot.lane.b32.xlu0 %v1055, 15
        %v1224 = vpop.permute.xlu0 %1223
        %1225 = vrot.lane.b32.xlu0 %v1057, 15
        %v1226 = vpop.permute.xlu0 %1225
        %1227 = vrot.lane.b32.xlu0 %v1059, 15
        %v1228 = vpop.permute.xlu0 %1227
        %1229 = vrot.lane.b32.xlu0 %v1054, 15
        %v1230 = vpop.permute.xlu0 %1229
        %1231 = vrot.lane.b32.xlu0 %v1056, 15
        %v1232 = vpop.permute.xlu0 %1231
        %1233 = vrot.lane.b32.xlu0 %v1058, 15
        %v1234 = vpop.permute.xlu0 %1233
        %1235 = vrot.lane.b32.xlu0 %v1060, 15
        %v1236 = vpop.permute.xlu0 %1235
        %vm1237 = vcmp.lt.s32.totalorder %v197, 15
        %v1238 = vsel %vm1237, %v1222, %v1230
        %v1239 = vsel %vm1237, %v1224, %v1232
        %v1240 = vsel %vm1237, %v1226, %v1234
        %v1241 = vsel %vm1237, %v1228, %v1236
        %v1242 = vsel %vm1237, %v1230, %v1222
        %v1243 = vsel %vm1237, %v1232, %v1224
        %v1244 = vsel %vm1237, %v1234, %v1226
        %v1245 = vsel %vm1237, %v1236, %v1228
        %vm1246 = vmand %vm201, %vm207
        %vm1247 = vmand %vm202, %vm208
        %v1248 = vsel %vm1246, %v1242, 0.0
        %v1249 = vsel %vm1247, %v1238, 0.0
        %v1250 = vsel %vm1246, %v1243, 0.0
        %v1251 = vsel %vm1247, %v1239, 0.0
        %v1252 = vsel %vm1246, %v1244, 0.0
        %v1253 = vsel %vm1247, %v1240, 0.0
        %v1254 = vsel %vm1246, %v1245, 0.0
        %v1255 = vsel %vm1247, %v1241, 0.0
        %1256 = vset.pattern.permute.xlu0 2
        %1257 = vperm.xlu0 %1256, %v183
        %v1258 = vpop.permute.xlu0 %1257
        %1260 = vset.pattern.permute.xlu0 2
        %1261 = vperm.xlu0 %1260, %v184
        %v1262 = vpop.permute.xlu0 %1261
        %1264 = vset.pattern.permute.xlu0 2
        %1265 = vperm.xlu0 %1264, %v185
        %v1266 = vpop.permute.xlu0 %1265
        %1268 = vset.pattern.permute.xlu0 2
        %1269 = vperm.xlu0 %1268, %v186
        %v1270 = vpop.permute.xlu0 %1269
        %v1272 = vmul.f32 %v1248, %v1258
        %v1273 = vmul.f32 %v1249, %v1258
        %v1274 = vmul.f32 %v1250, %v1262
        %v1275 = vmul.f32 %v1251, %v1262
        %v1276 = vmul.f32 %v1252, %v1266
        %v1277 = vmul.f32 %v1253, %v1266
        %v1278 = vmul.f32 %v1254, %v1270
        %v1279 = vmul.f32 %v1255, %v1270
        %v1280 = vadd.f32 %v1213, %v1272
        %v1281 = vadd.f32 %v1214, %v1273
        %v1282 = vadd.f32 %v1215, %v1274
        %v1283 = vadd.f32 %v1216, %v1275
        %v1284 = vadd.f32 %v1217, %v1276
        %v1285 = vadd.f32 %v1218, %v1277
        %v1286 = vadd.f32 %v1219, %v1278
        %v1287 = vadd.f32 %v1220, %v1279
        %1288 = vrot.lane.b32.xlu0 %v1053, 1
        %v1289 = vpop.permute.xlu0 %1288
        %1290 = vrot.lane.b32.xlu0 %v1055, 1
        %v1291 = vpop.permute.xlu0 %1290
        %1292 = vrot.lane.b32.xlu0 %v1057, 1
        %v1293 = vpop.permute.xlu0 %1292
        %1294 = vrot.lane.b32.xlu0 %v1059, 1
        %v1295 = vpop.permute.xlu0 %1294
        %1296 = vrot.lane.b32.xlu0 %v1054, 1
        %v1297 = vpop.permute.xlu0 %1296
        %1298 = vrot.lane.b32.xlu0 %v1056, 1
        %v1299 = vpop.permute.xlu0 %1298
        %1300 = vrot.lane.b32.xlu0 %v1058, 1
        %v1301 = vpop.permute.xlu0 %1300
        %1302 = vrot.lane.b32.xlu0 %v1060, 1
        %v1303 = vpop.permute.xlu0 %1302
        %vm1304 = vcmp.lt.s32.totalorder %v197, 1
        %v1305 = vsel %vm1304, %v1289, %v1297
        %v1306 = vsel %vm1304, %v1291, %v1299
        %v1307 = vsel %vm1304, %v1293, %v1301
        %v1308 = vsel %vm1304, %v1295, %v1303
        %v1309 = vsel %vm1304, %v1297, %v1289
        %v1310 = vsel %vm1304, %v1299, %v1291
        %v1311 = vsel %vm1304, %v1301, %v1293
        %v1312 = vsel %vm1304, %v1303, %v1295
        %v1313 = vsel %vm205, %v1309, 0.0
        %v1314 = vsel %vm206, %v1305, 0.0
        %v1315 = vsel %vm205, %v1310, 0.0
        %v1316 = vsel %vm206, %v1306, 0.0
        %v1317 = vsel %vm205, %v1311, 0.0
        %v1318 = vsel %vm206, %v1307, 0.0
        %v1319 = vsel %vm205, %v1312, 0.0
        %v1320 = vsel %vm206, %v1308, 0.0
        %1321 = vset.pattern.permute.xlu0 3
        %1322 = vperm.xlu0 %1321, %v183
        %v1323 = vpop.permute.xlu0 %1322
        %1325 = vset.pattern.permute.xlu0 3
        %1326 = vperm.xlu0 %1325, %v184
        %v1327 = vpop.permute.xlu0 %1326
        %1329 = vset.pattern.permute.xlu0 3
        %1330 = vperm.xlu0 %1329, %v185
        %v1331 = vpop.permute.xlu0 %1330
        %1333 = vset.pattern.permute.xlu0 3
        %1334 = vperm.xlu0 %1333, %v186
        %v1335 = vpop.permute.xlu0 %1334
        %v1337 = vmul.f32 %v1313, %v1323
        %v1338 = vmul.f32 %v1314, %v1323
        %v1339 = vmul.f32 %v1315, %v1327
        %v1340 = vmul.f32 %v1316, %v1327
        %v1341 = vmul.f32 %v1317, %v1331
        %v1342 = vmul.f32 %v1318, %v1331
        %v1343 = vmul.f32 %v1319, %v1335
        %v1344 = vmul.f32 %v1320, %v1335
        %v1345 = vadd.f32 %v1280, %v1337
        %v1346 = vadd.f32 %v1281, %v1338
        %v1347 = vadd.f32 %v1282, %v1339
        %v1348 = vadd.f32 %v1283, %v1340
        %v1349 = vadd.f32 %v1284, %v1341
        %v1350 = vadd.f32 %v1285, %v1342
        %v1351 = vadd.f32 %v1286, %v1343
        %v1352 = vadd.f32 %v1287, %v1344
        %1353 = vrot.lane.b32.xlu0 %v1053, 127
        %v1354 = vpop.permute.xlu0 %1353
        %1355 = vrot.lane.b32.xlu0 %v1055, 127
        %v1356 = vpop.permute.xlu0 %1355
        %1357 = vrot.lane.b32.xlu0 %v1057, 127
        %v1358 = vpop.permute.xlu0 %1357
        %1359 = vrot.lane.b32.xlu0 %v1059, 127
        %v1360 = vpop.permute.xlu0 %1359
        %1361 = vrot.lane.b32.xlu0 %v1054, 127
        %v1362 = vpop.permute.xlu0 %1361
        %1363 = vrot.lane.b32.xlu0 %v1056, 127
        %v1364 = vpop.permute.xlu0 %1363
        %1365 = vrot.lane.b32.xlu0 %v1058, 127
        %v1366 = vpop.permute.xlu0 %1365
        %1367 = vrot.lane.b32.xlu0 %v1060, 127
        %v1368 = vpop.permute.xlu0 %1367
        %vm1369 = vcmp.lt.s32.totalorder %v197, 127
        %v1370 = vsel %vm1369, %v1354, %v1362
        %v1371 = vsel %vm1369, %v1356, %v1364
        %v1372 = vsel %vm1369, %v1358, %v1366
        %v1373 = vsel %vm1369, %v1360, %v1368
        %v1374 = vsel %vm1369, %v1362, %v1354
        %v1375 = vsel %vm1369, %v1364, %v1356
        %v1376 = vsel %vm1369, %v1366, %v1358
        %v1377 = vsel %vm1369, %v1368, %v1360
        %v1378 = vsel %vm207, %v1370, 0.0
        %v1379 = vsel %vm208, %v1374, 0.0
        %v1380 = vsel %vm207, %v1371, 0.0
        %v1381 = vsel %vm208, %v1375, 0.0
        %v1382 = vsel %vm207, %v1372, 0.0
        %v1383 = vsel %vm208, %v1376, 0.0
        %v1384 = vsel %vm207, %v1373, 0.0
        %v1385 = vsel %vm208, %v1377, 0.0
        %1386 = vset.pattern.permute.xlu0 5
        %1387 = vperm.xlu0 %1386, %v183
        %v1388 = vpop.permute.xlu0 %1387
        %1390 = vset.pattern.permute.xlu0 5
        %1391 = vperm.xlu0 %1390, %v184
        %v1392 = vpop.permute.xlu0 %1391
        %1394 = vset.pattern.permute.xlu0 5
        %1395 = vperm.xlu0 %1394, %v185
        %v1396 = vpop.permute.xlu0 %1395
        %1398 = vset.pattern.permute.xlu0 5
        %1399 = vperm.xlu0 %1398, %v186
        %v1400 = vpop.permute.xlu0 %1399
        %v1402 = vmul.f32 %v1378, %v1388
        %v1403 = vmul.f32 %v1379, %v1388
        %v1404 = vmul.f32 %v1380, %v1392
        %v1405 = vmul.f32 %v1381, %v1392
        %v1406 = vmul.f32 %v1382, %v1396
        %v1407 = vmul.f32 %v1383, %v1396
        %v1408 = vmul.f32 %v1384, %v1400
        %v1409 = vmul.f32 %v1385, %v1400
        %v1410 = vadd.f32 %v1345, %v1402
        %v1411 = vadd.f32 %v1346, %v1403
        %v1412 = vadd.f32 %v1347, %v1404
        %v1413 = vadd.f32 %v1348, %v1405
        %v1414 = vadd.f32 %v1349, %v1406
        %v1415 = vadd.f32 %v1350, %v1407
        %v1416 = vadd.f32 %v1351, %v1408
        %v1417 = vadd.f32 %v1352, %v1409
        %1418 = vrot.lane.b32.xlu0 %v1053, 113
        %v1419 = vpop.permute.xlu0 %1418
        %1420 = vrot.lane.b32.xlu0 %v1055, 113
        %v1421 = vpop.permute.xlu0 %1420
        %1422 = vrot.lane.b32.xlu0 %v1057, 113
        %v1423 = vpop.permute.xlu0 %1422
        %1424 = vrot.lane.b32.xlu0 %v1059, 113
        %v1425 = vpop.permute.xlu0 %1424
        %1426 = vrot.lane.b32.xlu0 %v1054, 113
        %v1427 = vpop.permute.xlu0 %1426
        %1428 = vrot.lane.b32.xlu0 %v1056, 113
        %v1429 = vpop.permute.xlu0 %1428
        %1430 = vrot.lane.b32.xlu0 %v1058, 113
        %v1431 = vpop.permute.xlu0 %1430
        %1432 = vrot.lane.b32.xlu0 %v1060, 113
        %v1433 = vpop.permute.xlu0 %1432
        %vm1434 = vcmp.lt.s32.totalorder %v197, 113
        %v1435 = vsel %vm1434, %v1419, %v1427
        %v1436 = vsel %vm1434, %v1421, %v1429
        %v1437 = vsel %vm1434, %v1423, %v1431
        %v1438 = vsel %vm1434, %v1425, %v1433
        %v1439 = vsel %vm1434, %v1427, %v1419
        %v1440 = vsel %vm1434, %v1429, %v1421
        %v1441 = vsel %vm1434, %v1431, %v1423
        %v1442 = vsel %vm1434, %v1433, %v1425
        %vm1443 = vmand %vm203, %vm205
        %vm1444 = vmand %vm204, %vm206
        %v1445 = vsel %vm1443, %v1435, 0.0
        %v1446 = vsel %vm1444, %v1439, 0.0
        %v1447 = vsel %vm1443, %v1436, 0.0
        %v1448 = vsel %vm1444, %v1440, 0.0
        %v1449 = vsel %vm1443, %v1437, 0.0
        %v1450 = vsel %vm1444, %v1441, 0.0
        %v1451 = vsel %vm1443, %v1438, 0.0
        %v1452 = vsel %vm1444, %v1442, 0.0
        %1453 = vset.pattern.permute.xlu0 6
        %1454 = vperm.xlu0 %1453, %v183
        %v1455 = vpop.permute.xlu0 %1454
        %1457 = vset.pattern.permute.xlu0 6
        %1458 = vperm.xlu0 %1457, %v184
        %v1459 = vpop.permute.xlu0 %1458
        %1461 = vset.pattern.permute.xlu0 6
        %1462 = vperm.xlu0 %1461, %v185
        %v1463 = vpop.permute.xlu0 %1462
        %1465 = vset.pattern.permute.xlu0 6
        %1466 = vperm.xlu0 %1465, %v186
        %v1467 = vpop.permute.xlu0 %1466
        %v1469 = vmul.f32 %v1445, %v1455
        %v1470 = vmul.f32 %v1446, %v1455
        %v1471 = vmul.f32 %v1447, %v1459
        %v1472 = vmul.f32 %v1448, %v1459
        %v1473 = vmul.f32 %v1449, %v1463
        %v1474 = vmul.f32 %v1450, %v1463
        %v1475 = vmul.f32 %v1451, %v1467
        %v1476 = vmul.f32 %v1452, %v1467
        %v1477 = vadd.f32 %v1410, %v1469
        %v1478 = vadd.f32 %v1411, %v1470
        %v1479 = vadd.f32 %v1412, %v1471
        %v1480 = vadd.f32 %v1413, %v1472
        %v1481 = vadd.f32 %v1414, %v1473
        %v1482 = vadd.f32 %v1415, %v1474
        %v1483 = vadd.f32 %v1416, %v1475
        %v1484 = vadd.f32 %v1417, %v1476
        %1485 = vrot.lane.b32.xlu0 %v1053, 112
        %v1486 = vpop.permute.xlu0 %1485
        %1487 = vrot.lane.b32.xlu0 %v1055, 112
        %v1488 = vpop.permute.xlu0 %1487
        %1489 = vrot.lane.b32.xlu0 %v1057, 112
        %v1490 = vpop.permute.xlu0 %1489
        %1491 = vrot.lane.b32.xlu0 %v1059, 112
        %v1492 = vpop.permute.xlu0 %1491
        %1493 = vrot.lane.b32.xlu0 %v1054, 112
        %v1494 = vpop.permute.xlu0 %1493
        %1495 = vrot.lane.b32.xlu0 %v1056, 112
        %v1496 = vpop.permute.xlu0 %1495
        %1497 = vrot.lane.b32.xlu0 %v1058, 112
        %v1498 = vpop.permute.xlu0 %1497
        %1499 = vrot.lane.b32.xlu0 %v1060, 112
        %v1500 = vpop.permute.xlu0 %1499
        %vm1501 = vcmp.lt.s32.totalorder %v197, 112
        %v1502 = vsel %vm1501, %v1486, %v1494
        %v1503 = vsel %vm1501, %v1488, %v1496
        %v1504 = vsel %vm1501, %v1490, %v1498
        %v1505 = vsel %vm1501, %v1492, %v1500
        %v1506 = vsel %vm1501, %v1494, %v1486
        %v1507 = vsel %vm1501, %v1496, %v1488
        %v1508 = vsel %vm1501, %v1498, %v1490
        %v1509 = vsel %vm1501, %v1500, %v1492
        %v1510 = vsel %vm203, %v1502, 0.0
        %v1511 = vsel %vm204, %v1506, 0.0
        %v1512 = vsel %vm203, %v1503, 0.0
        %v1513 = vsel %vm204, %v1507, 0.0
        %v1514 = vsel %vm203, %v1504, 0.0
        %v1515 = vsel %vm204, %v1508, 0.0
        %v1516 = vsel %vm203, %v1505, 0.0
        %v1517 = vsel %vm204, %v1509, 0.0
        %1518 = vset.pattern.permute.xlu0 7
        %1519 = vperm.xlu0 %1518, %v183
        %v1520 = vpop.permute.xlu0 %1519
        %1522 = vset.pattern.permute.xlu0 7
        %1523 = vperm.xlu0 %1522, %v184
        %v1524 = vpop.permute.xlu0 %1523
        %1526 = vset.pattern.permute.xlu0 7
        %1527 = vperm.xlu0 %1526, %v185
        %v1528 = vpop.permute.xlu0 %1527
        %1530 = vset.pattern.permute.xlu0 7
        %1531 = vperm.xlu0 %1530, %v186
        %v1532 = vpop.permute.xlu0 %1531
        %v1534 = vmul.f32 %v1510, %v1520
        %v1535 = vmul.f32 %v1511, %v1520
        %v1536 = vmul.f32 %v1512, %v1524
        %v1537 = vmul.f32 %v1513, %v1524
        %v1538 = vmul.f32 %v1514, %v1528
        %v1539 = vmul.f32 %v1515, %v1528
        %v1540 = vmul.f32 %v1516, %v1532
        %v1541 = vmul.f32 %v1517, %v1532
        %v1542 = vadd.f32 %v1477, %v1534
        %v1543 = vadd.f32 %v1478, %v1535
        %v1544 = vadd.f32 %v1479, %v1536
        %v1545 = vadd.f32 %v1480, %v1537
        %v1546 = vadd.f32 %v1481, %v1538
        %v1547 = vadd.f32 %v1482, %v1539
        %v1548 = vadd.f32 %v1483, %v1540
        %v1549 = vadd.f32 %v1484, %v1541
        %1550 = vrot.lane.b32.xlu0 %v1053, 111
        %v1551 = vpop.permute.xlu0 %1550
        %1552 = vrot.lane.b32.xlu0 %v1055, 111
        %v1553 = vpop.permute.xlu0 %1552
        %1554 = vrot.lane.b32.xlu0 %v1057, 111
        %v1555 = vpop.permute.xlu0 %1554
        %1556 = vrot.lane.b32.xlu0 %v1059, 111
        %v1557 = vpop.permute.xlu0 %1556
        %1558 = vrot.lane.b32.xlu0 %v1054, 111
        %v1559 = vpop.permute.xlu0 %1558
        %1560 = vrot.lane.b32.xlu0 %v1056, 111
        %v1561 = vpop.permute.xlu0 %1560
        %1562 = vrot.lane.b32.xlu0 %v1058, 111
        %v1563 = vpop.permute.xlu0 %1562
        %1564 = vrot.lane.b32.xlu0 %v1060, 111
        %v1565 = vpop.permute.xlu0 %1564
        %vm1566 = vcmp.lt.s32.totalorder %v197, 111
        %v1567 = vsel %vm1566, %v1551, %v1559
        %v1568 = vsel %vm1566, %v1553, %v1561
        %v1569 = vsel %vm1566, %v1555, %v1563
        %v1570 = vsel %vm1566, %v1557, %v1565
        %v1571 = vsel %vm1566, %v1559, %v1551
        %v1572 = vsel %vm1566, %v1561, %v1553
        %v1573 = vsel %vm1566, %v1563, %v1555
        %v1574 = vsel %vm1566, %v1565, %v1557
        %vm1575 = vmand %vm203, %vm207
        %vm1576 = vmand %vm204, %vm208
        %v1577 = vsel %vm1575, %v1567, 0.0
        %v1578 = vsel %vm1576, %v1571, 0.0
        %v1579 = vsel %vm1575, %v1568, 0.0
        %v1580 = vsel %vm1576, %v1572, 0.0
        %v1581 = vsel %vm1575, %v1569, 0.0
        %v1582 = vsel %vm1576, %v1573, 0.0
        %v1583 = vsel %vm1575, %v1570, 0.0
        %v1584 = vsel %vm1576, %v1574, 0.0
        %1585 = vset.pattern.permute.xlu0 8
        %1586 = vperm.xlu0 %1585, %v183
        %v1587 = vpop.permute.xlu0 %1586
        %1589 = vset.pattern.permute.xlu0 8
        %1590 = vperm.xlu0 %1589, %v184
        %v1591 = vpop.permute.xlu0 %1590
        %1593 = vset.pattern.permute.xlu0 8
        %1594 = vperm.xlu0 %1593, %v185
        %v1595 = vpop.permute.xlu0 %1594
        %1597 = vset.pattern.permute.xlu0 8
        %1598 = vperm.xlu0 %1597, %v186
        %v1599 = vpop.permute.xlu0 %1598
        %v1601 = vmul.f32 %v1577, %v1587
        %v1602 = vmul.f32 %v1578, %v1587
        %v1603 = vmul.f32 %v1579, %v1591
        %v1604 = vmul.f32 %v1580, %v1591
        %v1605 = vmul.f32 %v1581, %v1595
        %v1606 = vmul.f32 %v1582, %v1595
        %v1607 = vmul.f32 %v1583, %v1599
        %v1608 = vmul.f32 %v1584, %v1599
        %v1609 = vadd.f32 %v1542, %v1601
        %v1610 = vadd.f32 %v1543, %v1602
        %v1611 = vadd.f32 %v1544, %v1603
        %v1612 = vadd.f32 %v1545, %v1604
        %v1613 = vadd.f32 %v1546, %v1605
        %v1614 = vadd.f32 %v1547, %v1606
        %v1615 = vadd.f32 %v1548, %v1607
        %v1616 = vadd.f32 %v1549, %v1608
        %v1617 = vadd.f32 %v1609, %v1610
        %1618 = vadd.xlane.f32.xlu0 %v1617
        %v1619 = vpop.xlane.xlu0 %1618
        %v1620 = vadd.f32 %v1611, %v1612
        %1621 = vadd.xlane.f32.xlu0 %v1620
        %v1622 = vpop.xlane.xlu0 %1621
        %v1623 = vadd.f32 %v1613, %v1614
        %1624 = vadd.xlane.f32.xlu0 %v1623
        %v1625 = vpop.xlane.xlu0 %1624
        %v1626 = vadd.f32 %v1615, %v1616
        %1627 = vadd.xlane.f32.xlu0 %v1626
        %v1628 = vpop.xlane.xlu0 %1627
        %v1629 = vmul.f32 %v1619, %v214
        %v1630 = vmul.f32 %v1622, %v214
        %v1631 = vmul.f32 %v1625, %v214
        %v1632 = vmul.f32 %v1628, %v214
        %v1633 = vmul.f32 %v1609, %v1609
        %v1634 = vmul.f32 %v1610, %v1610
        %v1635 = vmul.f32 %v1611, %v1611
        %v1636 = vmul.f32 %v1612, %v1612
        %v1637 = vmul.f32 %v1613, %v1613
        %v1638 = vmul.f32 %v1614, %v1614
        %v1639 = vmul.f32 %v1615, %v1615
        %v1640 = vmul.f32 %v1616, %v1616
        %v1641 = vadd.f32 %v1633, %v1634
        %1642 = vadd.xlane.f32.xlu0 %v1641
        %v1643 = vpop.xlane.xlu0 %1642
        %v1644 = vadd.f32 %v1635, %v1636
        %1645 = vadd.xlane.f32.xlu0 %v1644
        %v1646 = vpop.xlane.xlu0 %1645
        %v1647 = vadd.f32 %v1637, %v1638
        %1648 = vadd.xlane.f32.xlu0 %v1647
        %v1649 = vpop.xlane.xlu0 %1648
        %v1650 = vadd.f32 %v1639, %v1640
        %1651 = vadd.xlane.f32.xlu0 %v1650
        %v1652 = vpop.xlane.xlu0 %1651
        %v1653 = vmul.f32 %v1643, %v214
        %v1654 = vmul.f32 %v1646, %v214
        %v1655 = vmul.f32 %v1649, %v214
        %v1656 = vmul.f32 %v1652, %v214
        %v1657 = vmul.f32 %v1629, %v1629
        %v1658 = vmul.f32 %v1630, %v1630
        %v1659 = vmul.f32 %v1631, %v1631
        %v1660 = vmul.f32 %v1632, %v1632
        %v1661 = vsub.f32 %v1653, %v1657
        %v1662 = vsub.f32 %v1654, %v1658
        %v1663 = vsub.f32 %v1655, %v1659
        %v1664 = vsub.f32 %v1656, %v1660
        %v1665 = vsub.f32 %v1609, %v1629
        %v1666 = vsub.f32 %v1610, %v1629
        %v1667 = vsub.f32 %v1611, %v1630
        %v1668 = vsub.f32 %v1612, %v1630
        %v1669 = vsub.f32 %v1613, %v1631
        %v1670 = vsub.f32 %v1614, %v1631
        %v1671 = vsub.f32 %v1615, %v1632
        %v1672 = vsub.f32 %v1616, %v1632
        %v1673 = vadd.f32 %v1661, 1e-05
        %v1674 = vadd.f32 %v1662, 1e-05
        %v1675 = vadd.f32 %v1663, 1e-05
        %v1676 = vadd.f32 %v1664, 1e-05
        %v1677 = vrsqrt.pop %v1673
        %v1678 = vrsqrt.pop %v1674
        %v1679 = vrsqrt.pop %v1675
        %v1680 = vrsqrt.pop %v1676
        %v1681 = vmul.f32 %v1665, %v1677
        %v1682 = vmul.f32 %v1666, %v1677
        %v1683 = vmul.f32 %v1667, %v1678
        %v1684 = vmul.f32 %v1668, %v1678
        %v1685 = vmul.f32 %v1669, %v1679
        %v1686 = vmul.f32 %v1670, %v1679
        %v1687 = vmul.f32 %v1671, %v1680
        %v1688 = vmul.f32 %v1672, %v1680
        %1689 = vset.pattern.permute.xlu0 4
        %1690 = vperm.xlu0 %1689, %v175
        %v1691 = vpop.permute.xlu0 %1690
        %1693 = vset.pattern.permute.xlu0 4
        %1694 = vperm.xlu0 %1693, %v176
        %v1695 = vpop.permute.xlu0 %1694
        %1697 = vset.pattern.permute.xlu0 4
        %1698 = vperm.xlu0 %1697, %v177
        %v1699 = vpop.permute.xlu0 %1698
        %1701 = vset.pattern.permute.xlu0 4
        %1702 = vperm.xlu0 %1701, %v178
        %v1703 = vpop.permute.xlu0 %1702
        %v1705 = vmul.f32 %v1681, %v1691
        %v1706 = vmul.f32 %v1682, %v1691
        %v1707 = vmul.f32 %v1683, %v1695
        %v1708 = vmul.f32 %v1684, %v1695
        %v1709 = vmul.f32 %v1685, %v1699
        %v1710 = vmul.f32 %v1686, %v1699
        %v1711 = vmul.f32 %v1687, %v1703
        %v1712 = vmul.f32 %v1688, %v1703
        %1713 = vset.pattern.permute.xlu0 5
        %1714 = vperm.xlu0 %1713, %v175
        %v1715 = vpop.permute.xlu0 %1714
        %1717 = vset.pattern.permute.xlu0 5
        %1718 = vperm.xlu0 %1717, %v176
        %v1719 = vpop.permute.xlu0 %1718
        %1721 = vset.pattern.permute.xlu0 5
        %1722 = vperm.xlu0 %1721, %v177
        %v1723 = vpop.permute.xlu0 %1722
        %1725 = vset.pattern.permute.xlu0 5
        %1726 = vperm.xlu0 %1725, %v178
        %v1727 = vpop.permute.xlu0 %1726
        %v1729 = vadd.f32 %v1705, %v1715
        %v1730 = vadd.f32 %v1706, %v1715
        %v1731 = vadd.f32 %v1707, %v1719
        %v1732 = vadd.f32 %v1708, %v1719
        %v1733 = vadd.f32 %v1709, %v1723
        %v1734 = vadd.f32 %v1710, %v1723
        %v1735 = vadd.f32 %v1711, %v1727
        %v1736 = vadd.f32 %v1712, %v1727
        %v1737 = vxor.u32 %v1729, 2147483648
        %v1738 = vxor.u32 %v1730, 2147483648
        %v1739 = vxor.u32 %v1731, 2147483648
        %v1740 = vxor.u32 %v1732, 2147483648
        %v1741 = vxor.u32 %v1733, 2147483648
        %v1742 = vxor.u32 %v1734, 2147483648
        %v1743 = vxor.u32 %v1735, 2147483648
        %v1744 = vxor.u32 %v1736, 2147483648
        %v1745 = vmul.f32 %v1737, 1.442695
        %v1746 = vpow.pop %v1745
        %v1747 = vmul.f32 %v1738, 1.442695
        %v1748 = vpow.pop %v1747
        %v1749 = vmul.f32 %v1739, 1.442695
        %v1750 = vpow.pop %v1749
        %v1751 = vmul.f32 %v1740, 1.442695
        %v1752 = vpow.pop %v1751
        %v1753 = vmul.f32 %v1741, 1.442695
        %v1754 = vpow.pop %v1753
        %v1755 = vmul.f32 %v1742, 1.442695
        %v1756 = vpow.pop %v1755
        %v1757 = vmul.f32 %v1743, 1.442695
        %v1758 = vpow.pop %v1757
        %v1759 = vmul.f32 %v1744, 1.442695
        %v1760 = vpow.pop %v1759
        %v1761 = vadd.f32 %v1746, 1.0
        %v1762 = vadd.f32 %v1748, 1.0
        %v1763 = vadd.f32 %v1750, 1.0
        %v1764 = vadd.f32 %v1752, 1.0
        %v1765 = vadd.f32 %v1754, 1.0
        %v1766 = vadd.f32 %v1756, 1.0
        %v1767 = vadd.f32 %v1758, 1.0
        %v1768 = vadd.f32 %v1760, 1.0
        %v1769 = vrcp.pop %v1761
        %v1770 = vmul.f32 1.0, %v1769
        %v1771 = vrcp.pop %v1762
        %v1772 = vmul.f32 1.0, %v1771
        %v1773 = vrcp.pop %v1763
        %v1774 = vmul.f32 1.0, %v1773
        %v1775 = vrcp.pop %v1764
        %v1776 = vmul.f32 1.0, %v1775
        %v1777 = vrcp.pop %v1765
        %v1778 = vmul.f32 1.0, %v1777
        %v1779 = vrcp.pop %v1766
        %v1780 = vmul.f32 1.0, %v1779
        %v1781 = vrcp.pop %v1767
        %v1782 = vmul.f32 1.0, %v1781
        %v1783 = vrcp.pop %v1768
        %v1784 = vmul.f32 1.0, %v1783
        %v1785 = vmul.f32 %v1729, %v1770
        %v1786 = vmul.f32 %v1730, %v1772
        %v1787 = vmul.f32 %v1731, %v1774
        %v1788 = vmul.f32 %v1732, %v1776
        %v1789 = vmul.f32 %v1733, %v1778
        %v1790 = vmul.f32 %v1734, %v1780
        %v1791 = vmul.f32 %v1735, %v1782
        %v1792 = vmul.f32 %v1736, %v1784
        %v1793 = vadd.f32 %v1785, %v1786
        %1794 = vadd.xlane.f32.xlu0 %v1793
        %v1795 = vpop.xlane.xlu0 %1794
        %v1796 = vadd.f32 %v1787, %v1788
        %1797 = vadd.xlane.f32.xlu0 %v1796
        %v1798 = vpop.xlane.xlu0 %1797
        %v1799 = vadd.f32 %v1789, %v1790
        %1800 = vadd.xlane.f32.xlu0 %v1799
        %v1801 = vpop.xlane.xlu0 %1800
        %v1802 = vadd.f32 %v1791, %v1792
        %1803 = vadd.xlane.f32.xlu0 %v1802
        %v1804 = vpop.xlane.xlu0 %1803
        %v1805 = vmul.f32 %v1795, %v214
        %v1806 = vmul.f32 %v1798, %v214
        %v1807 = vmul.f32 %v1801, %v214
        %v1808 = vmul.f32 %v1804, %v214
        %1809 = vrot.lane.b32.xlu0 %v175, 122
        %v1810 = vpop.permute.xlu0 %1809
        %1811 = vrot.lane.b32.xlu0 %v176, 122
        %v1812 = vpop.permute.xlu0 %1811
        %1813 = vrot.lane.b32.xlu0 %v177, 122
        %v1814 = vpop.permute.xlu0 %1813
        %1815 = vrot.lane.b32.xlu0 %v178, 122
        %v1816 = vpop.permute.xlu0 %1815
        %vm1821 = vcmask 261120
        %v1823 = vsel %vm1821, %v187, 0
        %v1826 = vsel %vm1821, %v188, 0
        %v1829 = vsel %vm1821, %v189, 0
        %v1832 = vsel %vm1821, %v190, 0
        %1834 = vmatprep.subr.mxu0 0.0
        %v1835 = vand.u32 %v1805, 4294901760
        %1836 = vmatpush1.msra.mxu0 %v1835
        %1837 = vmatprep.subr.mxu0 0.0
        %v1838 = vand.u32 %v1806, 4294901760
        %1839 = vmatpush1.msra.mxu0 %v1838
        %1840 = vmatprep.subr.mxu0 0.0
        %v1841 = vand.u32 %v1807, 4294901760
        %1842 = vmatpush1.msra.mxu0 %v1841
        %1843 = vmatprep.subr.mxu0 0.0
        %v1844 = vand.u32 %v1808, 4294901760
        %1845 = vmatpush1.msra.mxu0 %v1844
        %1846 = vmatprep.subr.mxu0 0.0
        %1847 = vmatpush1.msra.mxu0 0.0
        %1848 = vmatprep.subr.mxu0 0.0
        %1849 = vmatpush1.msra.mxu0 0.0
        %1850 = vmatprep.subr.mxu0 0.0
        %1851 = vmatpush1.msra.mxu0 0.0
        %1852 = vmatprep.subr.mxu0 0.0
        %1853 = vmatpush1.msra.mxu0 0.0
        %1854 = vmatprep.subr.mxu0 0.0
        %1855 = vmatpush1.msra.mxu0 0.0
        %1856 = vmatprep.subr.mxu0 0.0
        %1857 = vmatpush1.msra.mxu0 0.0
        %1858 = vmatprep.subr.mxu0 0.0
        %1859 = vmatpush1.msra.mxu0 0.0
        %1860 = vmatprep.subr.mxu0 0.0
        %1861 = vmatpush1.msra.mxu0 0.0
        %1862 = vmatprep.subr.mxu0 0.0
        %1863 = vmatpush1.msra.mxu0 0.0
        %1864 = vmatprep.subr.mxu0 0.0
        %1865 = vmatpush1.msra.mxu0 0.0
        %1866 = vmatprep.subr.mxu0 0.0
        %1867 = vmatpush1.msra.mxu0 0.0
        %1868 = vmatprep.subr.mxu0 0.0
        %1869 = vmatpush1.msra.mxu0 0.0
        %1870 = vmatprep.subr.mxu0 0.0
        %1871 = vmatpush1.msra.mxu0 0.0
        %1872 = vmatprep.subr.mxu0 0.0
        %1873 = vmatpush1.msra.mxu0 0.0
        %1874 = vmatprep.subr.mxu0 0.0
        %1875 = vmatpush1.msra.mxu0 0.0
        %1876 = vmatprep.subr.mxu0 0.0
        %1877 = vmatpush1.msra.mxu0 0.0
        %1878 = vmatprep.subr.mxu0 0.0
        %1879 = vmatpush1.msra.mxu0 0.0
        %1880 = vmatprep.subr.mxu0 0.0
        %1881 = vmatpush1.msra.mxu0 0.0
        %1882 = vmatprep.subr.mxu0 0.0
        %1883 = vmatpush1.msra.mxu0 0.0
        %1884 = vmatprep.subr.mxu0 0.0
        %1885 = vmatpush1.msra.mxu0 0.0
        %1886 = vmatprep.subr.mxu0 0.0
        %1887 = vmatpush1.msra.mxu0 0.0
        %1888 = vmatprep.subr.mxu0 0.0
        %1889 = vmatpush1.msra.mxu0 0.0
        %1890 = vmatprep.subr.mxu0 0.0
        %1891 = vmatpush1.msra.mxu0 0.0
        %1892 = vmatprep.subr.mxu0 0.0
        %1893 = vmatpush1.msra.mxu0 0.0
        %1894 = vmatprep.subr.mxu0 0.0
        %1895 = vmatpush1.msra.mxu0 0.0
        %1896 = vmatprep.subr.mxu0 0.0
        %1897 = vmatpush1.msra.mxu0 0.0
        %1898 = vmatprep.subr.mxu0 0.0
        %1899 = vmatpush1.msra.mxu0 0.0
        %1900 = vmatprep.subr.mxu0 0.0
        %1901 = vmatpush1.msra.mxu0 0.0
        %1902 = vmatprep.mubr.f32.mxu0 0.0
        %v1903 = vand.u32 %v1823, 4294901760
        %v1904 = vsub.f32 %v1823, %v1903
        %v1905 = vand.u32 %v1904, 4294901760
        %v1906 = vsub.f32 %v1904, %v1905
        %v1907 = vand.u32 %v1906, 4294901760
        %1908 = vmatmul.mubr.f32.gmra.mrb[0].mxu0 %v1907
        %v1909 = vpop.f32.mrb[0].mxu0
        %v1910 = vadd.f32 %v1810, %v1909
        %v1911 = vpop.f32.mrb[0].mxu0
        %1912 = vmatprep.mubr.f32.mxu0 0.0
        %v1913 = vand.u32 %v1826, 4294901760
        %v1914 = vsub.f32 %v1826, %v1913
        %v1915 = vand.u32 %v1914, 4294901760
        %v1916 = vsub.f32 %v1914, %v1915
        %v1917 = vand.u32 %v1916, 4294901760
        %1918 = vmatmul.mubr.f32.gmra.mrb[0].mxu0 %v1917
        %v1919 = vpop.f32.mrb[0].mxu0
        %v1920 = vadd.f32 %v1812, %v1919
        %v1921 = vpop.f32.mrb[0].mxu0
        %1922 = vmatprep.mubr.f32.mxu0 0.0
        %v1923 = vand.u32 %v1829, 4294901760
        %v1924 = vsub.f32 %v1829, %v1923
        %v1925 = vand.u32 %v1924, 4294901760
        %v1926 = vsub.f32 %v1924, %v1925
        %v1927 = vand.u32 %v1926, 4294901760
        %1928 = vmatmul.mubr.f32.gmra.mrb[0].mxu0 %v1927
        %v1929 = vpop.f32.mrb[0].mxu0
        %v1930 = vadd.f32 %v1814, %v1929
        %v1931 = vpop.f32.mrb[0].mxu0
        %1932 = vmatprep.mubr.f32.mxu0 0.0
        %v1933 = vand.u32 %v1832, 4294901760
        %v1934 = vsub.f32 %v1832, %v1933
        %v1935 = vand.u32 %v1934, 4294901760
        %v1936 = vsub.f32 %v1934, %v1935
        %v1937 = vand.u32 %v1936, 4294901760
        %1938 = vmatmul.mubr.f32.gmra.mrb[0].mxu0 %v1937
        %v1939 = vpop.f32.mrb[0].mxu0
        %v1940 = vadd.f32 %v1816, %v1939
        %v1941 = vpop.f32.mrb[0].mxu0
        %1942 = vdwg.mxu0
        %1943 = vmatprep.subr.mxu0 0.0
        %v1944 = vand.u32 %v1805, 4294901760
        %v1945 = vsub.f32 %v1805, %v1944
        %v1946 = vand.u32 %v1945, 4294901760
        %v1947 = vsub.f32 %v1945, %v1946
        %v1948 = vand.u32 %v1947, 4294901760
        %1949 = vmatpush1.msra.mxu0 %v1948
        %1950 = vmatprep.subr.mxu0 0.0
        %v1951 = vand.u32 %v1806, 4294901760
        %v1952 = vsub.f32 %v1806, %v1951
        %v1953 = vand.u32 %v1952, 4294901760
        %v1954 = vsub.f32 %v1952, %v1953
        %v1955 = vand.u32 %v1954, 4294901760
        %1956 = vmatpush1.msra.mxu0 %v1955
        %1957 = vmatprep.subr.mxu0 0.0
        %v1958 = vand.u32 %v1807, 4294901760
        %v1959 = vsub.f32 %v1807, %v1958
        %v1960 = vand.u32 %v1959, 4294901760
        %v1961 = vsub.f32 %v1959, %v1960
        %v1962 = vand.u32 %v1961, 4294901760
        %1963 = vmatpush1.msra.mxu0 %v1962
        %1964 = vmatprep.subr.mxu0 0.0
        %v1965 = vand.u32 %v1808, 4294901760
        %v1966 = vsub.f32 %v1808, %v1965
        %v1967 = vand.u32 %v1966, 4294901760
        %v1968 = vsub.f32 %v1966, %v1967
        %v1969 = vand.u32 %v1968, 4294901760
        %1970 = vmatpush1.msra.mxu0 %v1969
        %1971 = vmatprep.subr.mxu0 0.0
        %1972 = vmatpush1.msra.mxu0 0.0
        %1973 = vmatprep.subr.mxu0 0.0
        %1974 = vmatpush1.msra.mxu0 0.0
        %1975 = vmatprep.subr.mxu0 0.0
        %1976 = vmatpush1.msra.mxu0 0.0
        %1977 = vmatprep.subr.mxu0 0.0
        %1978 = vmatpush1.msra.mxu0 0.0
        %1979 = vmatprep.subr.mxu0 0.0
        %1980 = vmatpush1.msra.mxu0 0.0
        %1981 = vmatprep.subr.mxu0 0.0
        %1982 = vmatpush1.msra.mxu0 0.0
        %1983 = vmatprep.subr.mxu0 0.0
        %1984 = vmatpush1.msra.mxu0 0.0
        %1985 = vmatprep.subr.mxu0 0.0
        %1986 = vmatpush1.msra.mxu0 0.0
        %1987 = vmatprep.subr.mxu0 0.0
        %1988 = vmatpush1.msra.mxu0 0.0
        %1989 = vmatprep.subr.mxu0 0.0
        %1990 = vmatpush1.msra.mxu0 0.0
        %1991 = vmatprep.subr.mxu0 0.0
        %1992 = vmatpush1.msra.mxu0 0.0
        %1993 = vmatprep.subr.mxu0 0.0
        %1994 = vmatpush1.msra.mxu0 0.0
        %1995 = vmatprep.subr.mxu0 0.0
        %1996 = vmatpush1.msra.mxu0 0.0
        %1997 = vmatprep.subr.mxu0 0.0
        %1998 = vmatpush1.msra.mxu0 0.0
        %1999 = vmatprep.subr.mxu0 0.0
        %2000 = vmatpush1.msra.mxu0 0.0
        %2001 = vmatprep.subr.mxu0 0.0
        %2002 = vmatpush1.msra.mxu0 0.0
        %2003 = vmatprep.subr.mxu0 0.0
        %2004 = vmatpush1.msra.mxu0 0.0
        %2005 = vmatprep.subr.mxu0 0.0
        %2006 = vmatpush1.msra.mxu0 0.0
        %2007 = vmatprep.subr.mxu0 0.0
        %2008 = vmatpush1.msra.mxu0 0.0
        %2009 = vmatprep.subr.mxu0 0.0
        %2010 = vmatpush1.msra.mxu0 0.0
        %2011 = vmatprep.subr.mxu0 0.0
        %2012 = vmatpush1.msra.mxu0 0.0
        %2013 = vmatprep.subr.mxu0 0.0
        %2014 = vmatpush1.msra.mxu0 0.0
        %2015 = vmatprep.subr.mxu0 0.0
        %2016 = vmatpush1.msra.mxu0 0.0
        %2017 = vmatprep.subr.mxu0 0.0
        %2018 = vmatpush1.msra.mxu0 0.0
        %2019 = vmatprep.subr.mxu0 0.0
        %2020 = vmatpush1.msra.mxu0 0.0
        %2021 = vmatprep.subr.mxu0 0.0
        %2022 = vmatpush1.msra.mxu0 0.0
        %2023 = vmatprep.subr.mxu0 0.0
        %2024 = vmatpush1.msra.mxu0 0.0
        %2025 = vmatprep.subr.mxu0 0.0
        %2026 = vmatpush1.msra.mxu0 0.0
        %2027 = vmatprep.mubr.f32.mxu0 0.0
        %v2028 = vand.u32 %v1823, 4294901760
        %2029 = vmatmul.mubr.f32.gmra.mrb[0].mxu0 %v2028
        %v2030 = vpop.f32.mrb[0].mxu0
        %v2031 = vadd.f32 %v1910, %v2030
        %v2032 = vpop.f32.mrb[0].mxu0
        %2033 = vmatprep.mubr.f32.mxu0 0.0
        %v2034 = vand.u32 %v1826, 4294901760
        %2035 = vmatmul.mubr.f32.gmra.mrb[0].mxu0 %v2034
        %v2036 = vpop.f32.mrb[0].mxu0
        %v2037 = vadd.f32 %v1920, %v2036
        %v2038 = vpop.f32.mrb[0].mxu0
        %2039 = vmatprep.mubr.f32.mxu0 0.0
        %v2040 = vand.u32 %v1829, 4294901760
        %2041 = vmatmul.mubr.f32.gmra.mrb[0].mxu0 %v2040
        %v2042 = vpop.f32.mrb[0].mxu0
        %v2043 = vadd.f32 %v1930, %v2042
        %v2044 = vpop.f32.mrb[0].mxu0
        %2045 = vmatprep.mubr.f32.mxu0 0.0
        %v2046 = vand.u32 %v1832, 4294901760
        %2047 = vmatmul.mubr.f32.gmra.mrb[0].mxu0 %v2046
        %v2048 = vpop.f32.mrb[0].mxu0
        %v2049 = vadd.f32 %v1940, %v2048
        %v2050 = vpop.f32.mrb[0].mxu0
        %2051 = vdwg.mxu0
        %2052 = vmatprep.subr.mxu0 0.0
        %v2053 = vand.u32 %v1805, 4294901760
        %v2054 = vsub.f32 %v1805, %v2053
        %2055 = vmatpush1.msra.mxu0 %v2054
        %2056 = vmatprep.subr.mxu0 0.0
        %v2057 = vand.u32 %v1806, 4294901760
        %v2058 = vsub.f32 %v1806, %v2057
        %2059 = vmatpush1.msra.mxu0 %v2058
        %2060 = vmatprep.subr.mxu0 0.0
        %v2061 = vand.u32 %v1807, 4294901760
        %v2062 = vsub.f32 %v1807, %v2061
        %2063 = vmatpush1.msra.mxu0 %v2062
        %2064 = vmatprep.subr.mxu0 0.0
        %v2065 = vand.u32 %v1808, 4294901760
        %v2066 = vsub.f32 %v1808, %v2065
        %2067 = vmatpush1.msra.mxu0 %v2066
        %2068 = vmatprep.subr.mxu0 0.0
        %2069 = vmatpush1.msra.mxu0 0.0
        %2070 = vmatprep.subr.mxu0 0.0
        %2071 = vmatpush1.msra.mxu0 0.0
        %2072 = vmatprep.subr.mxu0 0.0
        %2073 = vmatpush1.msra.mxu0 0.0
        %2074 = vmatprep.subr.mxu0 0.0
        %2075 = vmatpush1.msra.mxu0 0.0
        %2076 = vmatprep.subr.mxu0 0.0
        %2077 = vmatpush1.msra.mxu0 0.0
        %2078 = vmatprep.subr.mxu0 0.0
        %2079 = vmatpush1.msra.mxu0 0.0
        %2080 = vmatprep.subr.mxu0 0.0
        %2081 = vmatpush1.msra.mxu0 0.0
        %2082 = vmatprep.subr.mxu0 0.0
        %2083 = vmatpush1.msra.mxu0 0.0
        %2084 = vmatprep.subr.mxu0 0.0
        %2085 = vmatpush1.msra.mxu0 0.0
        %2086 = vmatprep.subr.mxu0 0.0
        %2087 = vmatpush1.msra.mxu0 0.0
        %2088 = vmatprep.subr.mxu0 0.0
        %2089 = vmatpush1.msra.mxu0 0.0
        %2090 = vmatprep.subr.mxu0 0.0
        %2091 = vmatpush1.msra.mxu0 0.0
        %2092 = vmatprep.subr.mxu0 0.0
        %2093 = vmatpush1.msra.mxu0 0.0
        %2094 = vmatprep.subr.mxu0 0.0
        %2095 = vmatpush1.msra.mxu0 0.0
        %2096 = vmatprep.subr.mxu0 0.0
        %2097 = vmatpush1.msra.mxu0 0.0
        %2098 = vmatprep.subr.mxu0 0.0
        %2099 = vmatpush1.msra.mxu0 0.0
        %2100 = vmatprep.subr.mxu0 0.0
        %2101 = vmatpush1.msra.mxu0 0.0
        %2102 = vmatprep.subr.mxu0 0.0
        %2103 = vmatpush1.msra.mxu0 0.0
        %2104 = vmatprep.subr.mxu0 0.0
        %2105 = vmatpush1.msra.mxu0 0.0
        %2106 = vmatprep.subr.mxu0 0.0
        %2107 = vmatpush1.msra.mxu0 0.0
        %2108 = vmatprep.subr.mxu0 0.0
        %2109 = vmatpush1.msra.mxu0 0.0
        %2110 = vmatprep.subr.mxu0 0.0
        %2111 = vmatpush1.msra.mxu0 0.0
        %2112 = vmatprep.subr.mxu0 0.0
        %2113 = vmatpush1.msra.mxu0 0.0
        %2114 = vmatprep.subr.mxu0 0.0
        %2115 = vmatpush1.msra.mxu0 0.0
        %2116 = vmatprep.subr.mxu0 0.0
        %2117 = vmatpush1.msra.mxu0 0.0
        %2118 = vmatprep.subr.mxu0 0.0
        %2119 = vmatpush1.msra.mxu0 0.0
        %2120 = vmatprep.subr.mxu0 0.0
        %2121 = vmatpush1.msra.mxu0 0.0
        %2122 = vmatprep.subr.mxu0 0.0
        %2123 = vmatpush1.msra.mxu0 0.0
        %2124 = vmatprep.mubr.f32.mxu0 0.0
        %v2125 = vand.u32 %v1823, 4294901760
        %v2126 = vsub.f32 %v1823, %v2125
        %2127 = vmatmul.mubr.f32.gmra.mrb[0].mxu0 %v2126
        %v2128 = vpop.f32.mrb[0].mxu0
        %v2129 = vadd.f32 %v2031, %v2128
        %v2130 = vpop.f32.mrb[0].mxu0
        %2131 = vmatprep.mubr.f32.mxu0 0.0
        %v2132 = vand.u32 %v1826, 4294901760
        %v2133 = vsub.f32 %v1826, %v2132
        %2134 = vmatmul.mubr.f32.gmra.mrb[0].mxu0 %v2133
        %v2135 = vpop.f32.mrb[0].mxu0
        %v2136 = vadd.f32 %v2037, %v2135
        %v2137 = vpop.f32.mrb[0].mxu0
        %2138 = vmatprep.mubr.f32.mxu0 0.0
        %v2139 = vand.u32 %v1829, 4294901760
        %v2140 = vsub.f32 %v1829, %v2139
        %2141 = vmatmul.mubr.f32.gmra.mrb[0].mxu0 %v2140
        %v2142 = vpop.f32.mrb[0].mxu0
        %v2143 = vadd.f32 %v2043, %v2142
        %v2144 = vpop.f32.mrb[0].mxu0
        %2145 = vmatprep.mubr.f32.mxu0 0.0
        %v2146 = vand.u32 %v1832, 4294901760
        %v2147 = vsub.f32 %v1832, %v2146
        %2148 = vmatmul.mubr.f32.gmra.mrb[0].mxu0 %v2147
        %v2149 = vpop.f32.mrb[0].mxu0
        %v2150 = vadd.f32 %v2049, %v2149
        %v2151 = vpop.f32.mrb[0].mxu0
        %2152 = vdwg.mxu0
        %2153 = vmatprep.subr.mxu0 0.0
        %v2154 = vand.u32 %v1805, 4294901760
        %2155 = vmatpush1.msra.mxu0 %v2154
        %2156 = vmatprep.subr.mxu0 0.0
        %v2157 = vand.u32 %v1806, 4294901760
        %2158 = vmatpush1.msra.mxu0 %v2157
        %2159 = vmatprep.subr.mxu0 0.0
        %v2160 = vand.u32 %v1807, 4294901760
        %2161 = vmatpush1.msra.mxu0 %v2160
        %2162 = vmatprep.subr.mxu0 0.0
        %v2163 = vand.u32 %v1808, 4294901760
        %2164 = vmatpush1.msra.mxu0 %v2163
        %2165 = vmatprep.subr.mxu0 0.0
        %2166 = vmatpush1.msra.mxu0 0.0
        %2167 = vmatprep.subr.mxu0 0.0
        %2168 = vmatpush1.msra.mxu0 0.0
        %2169 = vmatprep.subr.mxu0 0.0
        %2170 = vmatpush1.msra.mxu0 0.0
        %2171 = vmatprep.subr.mxu0 0.0
        %2172 = vmatpush1.msra.mxu0 0.0
        %2173 = vmatprep.subr.mxu0 0.0
        %2174 = vmatpush1.msra.mxu0 0.0
        %2175 = vmatprep.subr.mxu0 0.0
        %2176 = vmatpush1.msra.mxu0 0.0
        %2177 = vmatprep.subr.mxu0 0.0
        %2178 = vmatpush1.msra.mxu0 0.0
        %2179 = vmatprep.subr.mxu0 0.0
        %2180 = vmatpush1.msra.mxu0 0.0
        %2181 = vmatprep.subr.mxu0 0.0
        %2182 = vmatpush1.msra.mxu0 0.0
        %2183 = vmatprep.subr.mxu0 0.0
        %2184 = vmatpush1.msra.mxu0 0.0
        %2185 = vmatprep.subr.mxu0 0.0
        %2186 = vmatpush1.msra.mxu0 0.0
        %2187 = vmatprep.subr.mxu0 0.0
        %2188 = vmatpush1.msra.mxu0 0.0
        %2189 = vmatprep.subr.mxu0 0.0
        %2190 = vmatpush1.msra.mxu0 0.0
        %2191 = vmatprep.subr.mxu0 0.0
        %2192 = vmatpush1.msra.mxu0 0.0
        %2193 = vmatprep.subr.mxu0 0.0
        %2194 = vmatpush1.msra.mxu0 0.0
        %2195 = vmatprep.subr.mxu0 0.0
        %2196 = vmatpush1.msra.mxu0 0.0
        %2197 = vmatprep.subr.mxu0 0.0
        %2198 = vmatpush1.msra.mxu0 0.0
        %2199 = vmatprep.subr.mxu0 0.0
        %2200 = vmatpush1.msra.mxu0 0.0
        %2201 = vmatprep.subr.mxu0 0.0
        %2202 = vmatpush1.msra.mxu0 0.0
        %2203 = vmatprep.subr.mxu0 0.0
        %2204 = vmatpush1.msra.mxu0 0.0
        %2205 = vmatprep.subr.mxu0 0.0
        %2206 = vmatpush1.msra.mxu0 0.0
        %2207 = vmatprep.subr.mxu0 0.0
        %2208 = vmatpush1.msra.mxu0 0.0
        %2209 = vmatprep.subr.mxu0 0.0
        %2210 = vmatpush1.msra.mxu0 0.0
        %2211 = vmatprep.subr.mxu0 0.0
        %2212 = vmatpush1.msra.mxu0 0.0
        %2213 = vmatprep.subr.mxu0 0.0
        %2214 = vmatpush1.msra.mxu0 0.0
        %2215 = vmatprep.subr.mxu0 0.0
        %2216 = vmatpush1.msra.mxu0 0.0
        %2217 = vmatprep.subr.mxu0 0.0
        %2218 = vmatpush1.msra.mxu0 0.0
        %2219 = vmatprep.subr.mxu0 0.0
        %2220 = vmatpush1.msra.mxu0 0.0
        %2221 = vmatprep.mubr.f32.mxu0 0.0
        %v2222 = vand.u32 %v1823, 4294901760
        %v2223 = vsub.f32 %v1823, %v2222
        %v2224 = vand.u32 %v2223, 4294901760
        %2225 = vmatmul.mubr.f32.gmra.mrb[0].mxu0 %v2224
        %v2226 = vpop.f32.mrb[0].mxu0
        %v2227 = vadd.f32 %v2129, %v2226
        %v2228 = vpop.f32.mrb[0].mxu0
        %2229 = vmatprep.mubr.f32.mxu0 0.0
        %v2230 = vand.u32 %v1826, 4294901760
        %v2231 = vsub.f32 %v1826, %v2230
        %v2232 = vand.u32 %v2231, 4294901760
        %2233 = vmatmul.mubr.f32.gmra.mrb[0].mxu0 %v2232
        %v2234 = vpop.f32.mrb[0].mxu0
        %v2235 = vadd.f32 %v2136, %v2234
        %v2236 = vpop.f32.mrb[0].mxu0
        %2237 = vmatprep.mubr.f32.mxu0 0.0
        %v2238 = vand.u32 %v1829, 4294901760
        %v2239 = vsub.f32 %v1829, %v2238
        %v2240 = vand.u32 %v2239, 4294901760
        %2241 = vmatmul.mubr.f32.gmra.mrb[0].mxu0 %v2240
        %v2242 = vpop.f32.mrb[0].mxu0
        %v2243 = vadd.f32 %v2143, %v2242
        %v2244 = vpop.f32.mrb[0].mxu0
        %2245 = vmatprep.mubr.f32.mxu0 0.0
        %v2246 = vand.u32 %v1832, 4294901760
        %v2247 = vsub.f32 %v1832, %v2246
        %v2248 = vand.u32 %v2247, 4294901760
        %2249 = vmatmul.mubr.f32.gmra.mrb[0].mxu0 %v2248
        %v2250 = vpop.f32.mrb[0].mxu0
        %v2251 = vadd.f32 %v2150, %v2250
        %v2252 = vpop.f32.mrb[0].mxu0
        %2253 = vdwg.mxu0
        %2254 = vmatprep.subr.mxu0 0.0
        %v2255 = vand.u32 %v1805, 4294901760
        %v2256 = vsub.f32 %v1805, %v2255
        %v2257 = vand.u32 %v2256, 4294901760
        %2258 = vmatpush1.msra.mxu0 %v2257
        %2259 = vmatprep.subr.mxu0 0.0
        %v2260 = vand.u32 %v1806, 4294901760
        %v2261 = vsub.f32 %v1806, %v2260
        %v2262 = vand.u32 %v2261, 4294901760
        %2263 = vmatpush1.msra.mxu0 %v2262
        %2264 = vmatprep.subr.mxu0 0.0
        %v2265 = vand.u32 %v1807, 4294901760
        %v2266 = vsub.f32 %v1807, %v2265
        %v2267 = vand.u32 %v2266, 4294901760
        %2268 = vmatpush1.msra.mxu0 %v2267
        %2269 = vmatprep.subr.mxu0 0.0
        %v2270 = vand.u32 %v1808, 4294901760
        %v2271 = vsub.f32 %v1808, %v2270
        %v2272 = vand.u32 %v2271, 4294901760
        %2273 = vmatpush1.msra.mxu0 %v2272
        %2274 = vmatprep.subr.mxu0 0.0
        %2275 = vmatpush1.msra.mxu0 0.0
        %2276 = vmatprep.subr.mxu0 0.0
        %2277 = vmatpush1.msra.mxu0 0.0
        %2278 = vmatprep.subr.mxu0 0.0
        %2279 = vmatpush1.msra.mxu0 0.0
        %2280 = vmatprep.subr.mxu0 0.0
        %2281 = vmatpush1.msra.mxu0 0.0
        %2282 = vmatprep.subr.mxu0 0.0
        %2283 = vmatpush1.msra.mxu0 0.0
        %2284 = vmatprep.subr.mxu0 0.0
        %2285 = vmatpush1.msra.mxu0 0.0
        %2286 = vmatprep.subr.mxu0 0.0
        %2287 = vmatpush1.msra.mxu0 0.0
        %2288 = vmatprep.subr.mxu0 0.0
        %2289 = vmatpush1.msra.mxu0 0.0
        %2290 = vmatprep.subr.mxu0 0.0
        %2291 = vmatpush1.msra.mxu0 0.0
        %2292 = vmatprep.subr.mxu0 0.0
        %2293 = vmatpush1.msra.mxu0 0.0
        %2294 = vmatprep.subr.mxu0 0.0
        %2295 = vmatpush1.msra.mxu0 0.0
        %2296 = vmatprep.subr.mxu0 0.0
        %2297 = vmatpush1.msra.mxu0 0.0
        %2298 = vmatprep.subr.mxu0 0.0
        %2299 = vmatpush1.msra.mxu0 0.0
        %2300 = vmatprep.subr.mxu0 0.0
        %2301 = vmatpush1.msra.mxu0 0.0
        %2302 = vmatprep.subr.mxu0 0.0
        %2303 = vmatpush1.msra.mxu0 0.0
        %2304 = vmatprep.subr.mxu0 0.0
        %2305 = vmatpush1.msra.mxu0 0.0
        %2306 = vmatprep.subr.mxu0 0.0
        %2307 = vmatpush1.msra.mxu0 0.0
        %2308 = vmatprep.subr.mxu0 0.0
        %2309 = vmatpush1.msra.mxu0 0.0
        %2310 = vmatprep.subr.mxu0 0.0
        %2311 = vmatpush1.msra.mxu0 0.0
        %2312 = vmatprep.subr.mxu0 0.0
        %2313 = vmatpush1.msra.mxu0 0.0
        %2314 = vmatprep.subr.mxu0 0.0
        %2315 = vmatpush1.msra.mxu0 0.0
        %2316 = vmatprep.subr.mxu0 0.0
        %2317 = vmatpush1.msra.mxu0 0.0
        %2318 = vmatprep.subr.mxu0 0.0
        %2319 = vmatpush1.msra.mxu0 0.0
        %2320 = vmatprep.subr.mxu0 0.0
        %2321 = vmatpush1.msra.mxu0 0.0
        %2322 = vmatprep.subr.mxu0 0.0
        %2323 = vmatpush1.msra.mxu0 0.0
        %2324 = vmatprep.subr.mxu0 0.0
        %2325 = vmatpush1.msra.mxu0 0.0
        %2326 = vmatprep.subr.mxu0 0.0
        %2327 = vmatpush1.msra.mxu0 0.0
        %2328 = vmatprep.subr.mxu0 0.0
        %2329 = vmatpush1.msra.mxu0 0.0
        %2330 = vmatprep.mubr.f32.mxu0 0.0
        %v2331 = vand.u32 %v1823, 4294901760
        %2332 = vmatmul.mubr.f32.gmra.mrb[0].mxu0 %v2331
        %v2333 = vpop.f32.mrb[0].mxu0
        %v2334 = vadd.f32 %v2227, %v2333
        %v2335 = vpop.f32.mrb[0].mxu0
        %2336 = vmatprep.mubr.f32.mxu0 0.0
        %v2337 = vand.u32 %v1826, 4294901760
        %2338 = vmatmul.mubr.f32.gmra.mrb[0].mxu0 %v2337
        %v2339 = vpop.f32.mrb[0].mxu0
        %v2340 = vadd.f32 %v2235, %v2339
        %v2341 = vpop.f32.mrb[0].mxu0
        %2342 = vmatprep.mubr.f32.mxu0 0.0
        %v2343 = vand.u32 %v1829, 4294901760
        %2344 = vmatmul.mubr.f32.gmra.mrb[0].mxu0 %v2343
        %v2345 = vpop.f32.mrb[0].mxu0
        %v2346 = vadd.f32 %v2243, %v2345
        %v2347 = vpop.f32.mrb[0].mxu0
        %2348 = vmatprep.mubr.f32.mxu0 0.0
        %v2349 = vand.u32 %v1832, 4294901760
        %2350 = vmatmul.mubr.f32.gmra.mrb[0].mxu0 %v2349
        %v2351 = vpop.f32.mrb[0].mxu0
        %v2352 = vadd.f32 %v2251, %v2351
        %v2353 = vpop.f32.mrb[0].mxu0
        %2354 = vdwg.mxu0
        %2355 = vmatprep.subr.mxu0 0.0
        %v2356 = vand.u32 %v1805, 4294901760
        %2357 = vmatpush1.msra.mxu0 %v2356
        %2358 = vmatprep.subr.mxu0 0.0
        %v2359 = vand.u32 %v1806, 4294901760
        %2360 = vmatpush1.msra.mxu0 %v2359
        %2361 = vmatprep.subr.mxu0 0.0
        %v2362 = vand.u32 %v1807, 4294901760
        %2363 = vmatpush1.msra.mxu0 %v2362
        %2364 = vmatprep.subr.mxu0 0.0
        %v2365 = vand.u32 %v1808, 4294901760
        %2366 = vmatpush1.msra.mxu0 %v2365
        %2367 = vmatprep.subr.mxu0 0.0
        %2368 = vmatpush1.msra.mxu0 0.0
        %2369 = vmatprep.subr.mxu0 0.0
        %2370 = vmatpush1.msra.mxu0 0.0
        %2371 = vmatprep.subr.mxu0 0.0
        %2372 = vmatpush1.msra.mxu0 0.0
        %2373 = vmatprep.subr.mxu0 0.0
        %2374 = vmatpush1.msra.mxu0 0.0
        %2375 = vmatprep.subr.mxu0 0.0
        %2376 = vmatpush1.msra.mxu0 0.0
        %2377 = vmatprep.subr.mxu0 0.0
        %2378 = vmatpush1.msra.mxu0 0.0
        %2379 = vmatprep.subr.mxu0 0.0
        %2380 = vmatpush1.msra.mxu0 0.0
        %2381 = vmatprep.subr.mxu0 0.0
        %2382 = vmatpush1.msra.mxu0 0.0
        %2383 = vmatprep.subr.mxu0 0.0
        %2384 = vmatpush1.msra.mxu0 0.0
        %2385 = vmatprep.subr.mxu0 0.0
        %2386 = vmatpush1.msra.mxu0 0.0
        %2387 = vmatprep.subr.mxu0 0.0
        %2388 = vmatpush1.msra.mxu0 0.0
        %2389 = vmatprep.subr.mxu0 0.0
        %2390 = vmatpush1.msra.mxu0 0.0
        %2391 = vmatprep.subr.mxu0 0.0
        %2392 = vmatpush1.msra.mxu0 0.0
        %2393 = vmatprep.subr.mxu0 0.0
        %2394 = vmatpush1.msra.mxu0 0.0
        %2395 = vmatprep.subr.mxu0 0.0
        %2396 = vmatpush1.msra.mxu0 0.0
        %2397 = vmatprep.subr.mxu0 0.0
        %2398 = vmatpush1.msra.mxu0 0.0
        %2399 = vmatprep.subr.mxu0 0.0
        %2400 = vmatpush1.msra.mxu0 0.0
        %2401 = vmatprep.subr.mxu0 0.0
        %2402 = vmatpush1.msra.mxu0 0.0
        %2403 = vmatprep.subr.mxu0 0.0
        %2404 = vmatpush1.msra.mxu0 0.0
        %2405 = vmatprep.subr.mxu0 0.0
        %2406 = vmatpush1.msra.mxu0 0.0
        %2407 = vmatprep.subr.mxu0 0.0
        %2408 = vmatpush1.msra.mxu0 0.0
        %2409 = vmatprep.subr.mxu0 0.0
        %2410 = vmatpush1.msra.mxu0 0.0
        %2411 = vmatprep.subr.mxu0 0.0
        %2412 = vmatpush1.msra.mxu0 0.0
        %2413 = vmatprep.subr.mxu0 0.0
        %2414 = vmatpush1.msra.mxu0 0.0
        %2415 = vmatprep.subr.mxu0 0.0
        %2416 = vmatpush1.msra.mxu0 0.0
        %2417 = vmatprep.subr.mxu0 0.0
        %2418 = vmatpush1.msra.mxu0 0.0
        %2419 = vmatprep.subr.mxu0 0.0
        %2420 = vmatpush1.msra.mxu0 0.0
        %2421 = vmatprep.subr.mxu0 0.0
        %2422 = vmatpush1.msra.mxu0 0.0
        %2423 = vmatprep.mubr.f32.mxu0 0.0
        %v2424 = vand.u32 %v1823, 4294901760
        %2425 = vmatmul.mubr.f32.gmra.mrb[0].mxu0 %v2424
        %v2426 = vpop.f32.mrb[0].mxu0
        %v2427 = vadd.f32 %v2334, %v2426
        %v2428 = vpop.f32.mrb[0].mxu0
        %2429 = vmatprep.mubr.f32.mxu0 0.0
        %v2430 = vand.u32 %v1826, 4294901760
        %2431 = vmatmul.mubr.f32.gmra.mrb[0].mxu0 %v2430
        %v2432 = vpop.f32.mrb[0].mxu0
        %v2433 = vadd.f32 %v2340, %v2432
        %v2434 = vpop.f32.mrb[0].mxu0
        %2435 = vmatprep.mubr.f32.mxu0 0.0
        %v2436 = vand.u32 %v1829, 4294901760
        %2437 = vmatmul.mubr.f32.gmra.mrb[0].mxu0 %v2436
        %v2438 = vpop.f32.mrb[0].mxu0
        %v2439 = vadd.f32 %v2346, %v2438
        %v2440 = vpop.f32.mrb[0].mxu0
        %2441 = vmatprep.mubr.f32.mxu0 0.0
        %v2442 = vand.u32 %v1832, 4294901760
        %2443 = vmatmul.mubr.f32.gmra.mrb[0].mxu0 %v2442
        %v2444 = vpop.f32.mrb[0].mxu0
        %v2445 = vadd.f32 %v2352, %v2444
        %v2446 = vpop.f32.mrb[0].mxu0
        %2447 = vdwg.mxu0
        %v2448 = vxor.u32 %v2427, 2147483648
        %v2449 = vxor.u32 %v2433, 2147483648
        %v2450 = vxor.u32 %v2439, 2147483648
        %v2451 = vxor.u32 %v2445, 2147483648
        %v2452 = vmul.f32 %v2448, 1.442695
        %v2453 = vpow.pop %v2452
        %v2454 = vmul.f32 %v2449, 1.442695
        %v2455 = vpow.pop %v2454
        %v2456 = vmul.f32 %v2450, 1.442695
        %v2457 = vpow.pop %v2456
        %v2458 = vmul.f32 %v2451, 1.442695
        %v2459 = vpow.pop %v2458
        %v2460 = vadd.f32 %v2453, 1.0
        %v2461 = vadd.f32 %v2455, 1.0
        %v2462 = vadd.f32 %v2457, 1.0
        %v2463 = vadd.f32 %v2459, 1.0
        %v2464 = vrcp.pop %v2460
        %v2465 = vmul.f32 1.0, %v2464
        %v2466 = vrcp.pop %v2461
        %v2467 = vmul.f32 1.0, %v2466
        %v2468 = vrcp.pop %v2462
        %v2469 = vmul.f32 1.0, %v2468
        %v2470 = vrcp.pop %v2463
        %v2471 = vmul.f32 1.0, %v2470
        %v2472 = vmul.f32 %v2427, %v2465
        %v2473 = vmul.f32 %v2433, %v2467
        %v2474 = vmul.f32 %v2439, %v2469
        %v2475 = vmul.f32 %v2445, %v2471
        %2476 = vrot.lane.b32.xlu0 %v175, 121
        %v2477 = vpop.permute.xlu0 %2476
        %2478 = vrot.lane.b32.xlu0 %v176, 121
        %v2479 = vpop.permute.xlu0 %2478
        %2480 = vrot.lane.b32.xlu0 %v177, 121
        %v2481 = vpop.permute.xlu0 %2480
        %2482 = vrot.lane.b32.xlu0 %v178, 121
        %v2483 = vpop.permute.xlu0 %2482
        %v2489 = vsel %vm1821, %v191, 0
        %v2492 = vsel %vm1821, %v192, 0
        %v2495 = vsel %vm1821, %v193, 0
        %v2498 = vsel %vm1821, %v194, 0
        %2500 = vmatprep.subr.mxu0 0.0
        %v2501 = vand.u32 %v2472, 4294901760
        %2502 = vmatpush1.msra.mxu0 %v2501
        %2503 = vmatprep.subr.mxu0 0.0
        %v2504 = vand.u32 %v2473, 4294901760
        %2505 = vmatpush1.msra.mxu0 %v2504
        %2506 = vmatprep.subr.mxu0 0.0
        %v2507 = vand.u32 %v2474, 4294901760
        %2508 = vmatpush1.msra.mxu0 %v2507
        %2509 = vmatprep.subr.mxu0 0.0
        %v2510 = vand.u32 %v2475, 4294901760
        %2511 = vmatpush1.msra.mxu0 %v2510
        %2512 = vmatprep.subr.mxu0 0.0
        %2513 = vmatpush1.msra.mxu0 0.0
        %2514 = vmatprep.subr.mxu0 0.0
        %2515 = vmatpush1.msra.mxu0 0.0
        %2516 = vmatprep.subr.mxu0 0.0
        %2517 = vmatpush1.msra.mxu0 0.0
        %2518 = vmatprep.subr.mxu0 0.0
        %2519 = vmatpush1.msra.mxu0 0.0
        %2520 = vmatprep.subr.mxu0 0.0
        %2521 = vmatpush1.msra.mxu0 0.0
        %2522 = vmatprep.subr.mxu0 0.0
        %2523 = vmatpush1.msra.mxu0 0.0
        %2524 = vmatprep.subr.mxu0 0.0
        %2525 = vmatpush1.msra.mxu0 0.0
        %2526 = vmatprep.subr.mxu0 0.0
        %2527 = vmatpush1.msra.mxu0 0.0
        %2528 = vmatprep.subr.mxu0 0.0
        %2529 = vmatpush1.msra.mxu0 0.0
        %2530 = vmatprep.subr.mxu0 0.0
        %2531 = vmatpush1.msra.mxu0 0.0
        %2532 = vmatprep.subr.mxu0 0.0
        %2533 = vmatpush1.msra.mxu0 0.0
        %2534 = vmatprep.subr.mxu0 0.0
        %2535 = vmatpush1.msra.mxu0 0.0
        %2536 = vmatprep.subr.mxu0 0.0
        %2537 = vmatpush1.msra.mxu0 0.0
        %2538 = vmatprep.subr.mxu0 0.0
        %2539 = vmatpush1.msra.mxu0 0.0
        %2540 = vmatprep.subr.mxu0 0.0
        %2541 = vmatpush1.msra.mxu0 0.0
        %2542 = vmatprep.subr.mxu0 0.0
        %2543 = vmatpush1.msra.mxu0 0.0
        %2544 = vmatprep.subr.mxu0 0.0
        %2545 = vmatpush1.msra.mxu0 0.0
        %2546 = vmatprep.subr.mxu0 0.0
        %2547 = vmatpush1.msra.mxu0 0.0
        %2548 = vmatprep.subr.mxu0 0.0
        %2549 = vmatpush1.msra.mxu0 0.0
        %2550 = vmatprep.subr.mxu0 0.0
        %2551 = vmatpush1.msra.mxu0 0.0
        %2552 = vmatprep.subr.mxu0 0.0
        %2553 = vmatpush1.msra.mxu0 0.0
        %2554 = vmatprep.subr.mxu0 0.0
        %2555 = vmatpush1.msra.mxu0 0.0
        %2556 = vmatprep.subr.mxu0 0.0
        %2557 = vmatpush1.msra.mxu0 0.0
        %2558 = vmatprep.subr.mxu0 0.0
        %2559 = vmatpush1.msra.mxu0 0.0
        %2560 = vmatprep.subr.mxu0 0.0
        %2561 = vmatpush1.msra.mxu0 0.0
        %2562 = vmatprep.subr.mxu0 0.0
        %2563 = vmatpush1.msra.mxu0 0.0
        %2564 = vmatprep.subr.mxu0 0.0
        %2565 = vmatpush1.msra.mxu0 0.0
        %2566 = vmatprep.subr.mxu0 0.0
        %2567 = vmatpush1.msra.mxu0 0.0
        %2568 = vmatprep.mubr.f32.mxu0 0.0
        %v2569 = vand.u32 %v2489, 4294901760
        %v2570 = vsub.f32 %v2489, %v2569
        %v2571 = vand.u32 %v2570, 4294901760
        %v2572 = vsub.f32 %v2570, %v2571
        %v2573 = vand.u32 %v2572, 4294901760
        %2574 = vmatmul.mubr.f32.gmra.mrb[0].mxu0 %v2573
        %v2575 = vpop.f32.mrb[0].mxu0
        %v2576 = vadd.f32 %v2477, %v2575
        %v2577 = vpop.f32.mrb[0].mxu0
        %2578 = vmatprep.mubr.f32.mxu0 0.0
        %v2579 = vand.u32 %v2492, 4294901760
        %v2580 = vsub.f32 %v2492, %v2579
        %v2581 = vand.u32 %v2580, 4294901760
        %v2582 = vsub.f32 %v2580, %v2581
        %v2583 = vand.u32 %v2582, 4294901760
        %2584 = vmatmul.mubr.f32.gmra.mrb[0].mxu0 %v2583
        %v2585 = vpop.f32.mrb[0].mxu0
        %v2586 = vadd.f32 %v2479, %v2585
        %v2587 = vpop.f32.mrb[0].mxu0
        %2588 = vmatprep.mubr.f32.mxu0 0.0
        %v2589 = vand.u32 %v2495, 4294901760
        %v2590 = vsub.f32 %v2495, %v2589
        %v2591 = vand.u32 %v2590, 4294901760
        %v2592 = vsub.f32 %v2590, %v2591
        %v2593 = vand.u32 %v2592, 4294901760
        %2594 = vmatmul.mubr.f32.gmra.mrb[0].mxu0 %v2593
        %v2595 = vpop.f32.mrb[0].mxu0
        %v2596 = vadd.f32 %v2481, %v2595
        %v2597 = vpop.f32.mrb[0].mxu0
        %2598 = vmatprep.mubr.f32.mxu0 0.0
        %v2599 = vand.u32 %v2498, 4294901760
        %v2600 = vsub.f32 %v2498, %v2599
        %v2601 = vand.u32 %v2600, 4294901760
        %v2602 = vsub.f32 %v2600, %v2601
        %v2603 = vand.u32 %v2602, 4294901760
        %2604 = vmatmul.mubr.f32.gmra.mrb[0].mxu0 %v2603
        %v2605 = vpop.f32.mrb[0].mxu0
        %v2606 = vadd.f32 %v2483, %v2605
        %v2607 = vpop.f32.mrb[0].mxu0
        %2608 = vdwg.mxu0
        %2609 = vmatprep.subr.mxu0 0.0
        %v2610 = vand.u32 %v2472, 4294901760
        %v2611 = vsub.f32 %v2472, %v2610
        %v2612 = vand.u32 %v2611, 4294901760
        %v2613 = vsub.f32 %v2611, %v2612
        %v2614 = vand.u32 %v2613, 4294901760
        %2615 = vmatpush1.msra.mxu0 %v2614
        %2616 = vmatprep.subr.mxu0 0.0
        %v2617 = vand.u32 %v2473, 4294901760
        %v2618 = vsub.f32 %v2473, %v2617
        %v2619 = vand.u32 %v2618, 4294901760
        %v2620 = vsub.f32 %v2618, %v2619
        %v2621 = vand.u32 %v2620, 4294901760
        %2622 = vmatpush1.msra.mxu0 %v2621
        %2623 = vmatprep.subr.mxu0 0.0
        %v2624 = vand.u32 %v2474, 4294901760
        %v2625 = vsub.f32 %v2474, %v2624
        %v2626 = vand.u32 %v2625, 4294901760
        %v2627 = vsub.f32 %v2625, %v2626
        %v2628 = vand.u32 %v2627, 4294901760
        %2629 = vmatpush1.msra.mxu0 %v2628
        %2630 = vmatprep.subr.mxu0 0.0
        %v2631 = vand.u32 %v2475, 4294901760
        %v2632 = vsub.f32 %v2475, %v2631
        %v2633 = vand.u32 %v2632, 4294901760
        %v2634 = vsub.f32 %v2632, %v2633
        %v2635 = vand.u32 %v2634, 4294901760
        %2636 = vmatpush1.msra.mxu0 %v2635
        %2637 = vmatprep.subr.mxu0 0.0
        %2638 = vmatpush1.msra.mxu0 0.0
        %2639 = vmatprep.subr.mxu0 0.0
        %2640 = vmatpush1.msra.mxu0 0.0
        %2641 = vmatprep.subr.mxu0 0.0
        %2642 = vmatpush1.msra.mxu0 0.0
        %2643 = vmatprep.subr.mxu0 0.0
        %2644 = vmatpush1.msra.mxu0 0.0
        %2645 = vmatprep.subr.mxu0 0.0
        %2646 = vmatpush1.msra.mxu0 0.0
        %2647 = vmatprep.subr.mxu0 0.0
        %2648 = vmatpush1.msra.mxu0 0.0
        %2649 = vmatprep.subr.mxu0 0.0
        %2650 = vmatpush1.msra.mxu0 0.0
        %2651 = vmatprep.subr.mxu0 0.0
        %2652 = vmatpush1.msra.mxu0 0.0
        %2653 = vmatprep.subr.mxu0 0.0
        %2654 = vmatpush1.msra.mxu0 0.0
        %2655 = vmatprep.subr.mxu0 0.0
        %2656 = vmatpush1.msra.mxu0 0.0
        %2657 = vmatprep.subr.mxu0 0.0
        %2658 = vmatpush1.msra.mxu0 0.0
        %2659 = vmatprep.subr.mxu0 0.0
        %2660 = vmatpush1.msra.mxu0 0.0
        %2661 = vmatprep.subr.mxu0 0.0
        %2662 = vmatpush1.msra.mxu0 0.0
        %2663 = vmatprep.subr.mxu0 0.0
        %2664 = vmatpush1.msra.mxu0 0.0
        %2665 = vmatprep.subr.mxu0 0.0
        %2666 = vmatpush1.msra.mxu0 0.0
        %2667 = vmatprep.subr.mxu0 0.0
        %2668 = vmatpush1.msra.mxu0 0.0
        %2669 = vmatprep.subr.mxu0 0.0
        %2670 = vmatpush1.msra.mxu0 0.0
        %2671 = vmatprep.subr.mxu0 0.0
        %2672 = vmatpush1.msra.mxu0 0.0
        %2673 = vmatprep.subr.mxu0 0.0
        %2674 = vmatpush1.msra.mxu0 0.0
        %2675 = vmatprep.subr.mxu0 0.0
        %2676 = vmatpush1.msra.mxu0 0.0
        %2677 = vmatprep.subr.mxu0 0.0
        %2678 = vmatpush1.msra.mxu0 0.0
        %2679 = vmatprep.subr.mxu0 0.0
        %2680 = vmatpush1.msra.mxu0 0.0
        %2681 = vmatprep.subr.mxu0 0.0
        %2682 = vmatpush1.msra.mxu0 0.0
        %2683 = vmatprep.subr.mxu0 0.0
        %2684 = vmatpush1.msra.mxu0 0.0
        %2685 = vmatprep.subr.mxu0 0.0
        %2686 = vmatpush1.msra.mxu0 0.0
        %2687 = vmatprep.subr.mxu0 0.0
        %2688 = vmatpush1.msra.mxu0 0.0
        %2689 = vmatprep.subr.mxu0 0.0
        %2690 = vmatpush1.msra.mxu0 0.0
        %2691 = vmatprep.subr.mxu0 0.0
        %2692 = vmatpush1.msra.mxu0 0.0
        %2693 = vmatprep.mubr.f32.mxu0 0.0
        %v2694 = vand.u32 %v2489, 4294901760
        %2695 = vmatmul.mubr.f32.gmra.mrb[0].mxu0 %v2694
        %v2696 = vpop.f32.mrb[0].mxu0
        %v2697 = vadd.f32 %v2576, %v2696
        %v2698 = vpop.f32.mrb[0].mxu0
        %2699 = vmatprep.mubr.f32.mxu0 0.0
        %v2700 = vand.u32 %v2492, 4294901760
        %2701 = vmatmul.mubr.f32.gmra.mrb[0].mxu0 %v2700
        %v2702 = vpop.f32.mrb[0].mxu0
        %v2703 = vadd.f32 %v2586, %v2702
        %v2704 = vpop.f32.mrb[0].mxu0
        %2705 = vmatprep.mubr.f32.mxu0 0.0
        %v2706 = vand.u32 %v2495, 4294901760
        %2707 = vmatmul.mubr.f32.gmra.mrb[0].mxu0 %v2706
        %v2708 = vpop.f32.mrb[0].mxu0
        %v2709 = vadd.f32 %v2596, %v2708
        %v2710 = vpop.f32.mrb[0].mxu0
        %2711 = vmatprep.mubr.f32.mxu0 0.0
        %v2712 = vand.u32 %v2498, 4294901760
        %2713 = vmatmul.mubr.f32.gmra.mrb[0].mxu0 %v2712
        %v2714 = vpop.f32.mrb[0].mxu0
        %v2715 = vadd.f32 %v2606, %v2714
        %v2716 = vpop.f32.mrb[0].mxu0
        %2717 = vdwg.mxu0
        %2718 = vmatprep.subr.mxu0 0.0
        %v2719 = vand.u32 %v2472, 4294901760
        %v2720 = vsub.f32 %v2472, %v2719
        %2721 = vmatpush1.msra.mxu0 %v2720
        %2722 = vmatprep.subr.mxu0 0.0
        %v2723 = vand.u32 %v2473, 4294901760
        %v2724 = vsub.f32 %v2473, %v2723
        %2725 = vmatpush1.msra.mxu0 %v2724
        %2726 = vmatprep.subr.mxu0 0.0
        %v2727 = vand.u32 %v2474, 4294901760
        %v2728 = vsub.f32 %v2474, %v2727
        %2729 = vmatpush1.msra.mxu0 %v2728
        %2730 = vmatprep.subr.mxu0 0.0
        %v2731 = vand.u32 %v2475, 4294901760
        %v2732 = vsub.f32 %v2475, %v2731
        %2733 = vmatpush1.msra.mxu0 %v2732
        %2734 = vmatprep.subr.mxu0 0.0
        %2735 = vmatpush1.msra.mxu0 0.0
        %2736 = vmatprep.subr.mxu0 0.0
        %2737 = vmatpush1.msra.mxu0 0.0
        %2738 = vmatprep.subr.mxu0 0.0
        %2739 = vmatpush1.msra.mxu0 0.0
        %2740 = vmatprep.subr.mxu0 0.0
        %2741 = vmatpush1.msra.mxu0 0.0
        %2742 = vmatprep.subr.mxu0 0.0
        %2743 = vmatpush1.msra.mxu0 0.0
        %2744 = vmatprep.subr.mxu0 0.0
        %2745 = vmatpush1.msra.mxu0 0.0
        %2746 = vmatprep.subr.mxu0 0.0
        %2747 = vmatpush1.msra.mxu0 0.0
        %2748 = vmatprep.subr.mxu0 0.0
        %2749 = vmatpush1.msra.mxu0 0.0
        %2750 = vmatprep.subr.mxu0 0.0
        %2751 = vmatpush1.msra.mxu0 0.0
        %2752 = vmatprep.subr.mxu0 0.0
        %2753 = vmatpush1.msra.mxu0 0.0
        %2754 = vmatprep.subr.mxu0 0.0
        %2755 = vmatpush1.msra.mxu0 0.0
        %2756 = vmatprep.subr.mxu0 0.0
        %2757 = vmatpush1.msra.mxu0 0.0
        %2758 = vmatprep.subr.mxu0 0.0
        %2759 = vmatpush1.msra.mxu0 0.0
        %2760 = vmatprep.subr.mxu0 0.0
        %2761 = vmatpush1.msra.mxu0 0.0
        %2762 = vmatprep.subr.mxu0 0.0
        %2763 = vmatpush1.msra.mxu0 0.0
        %2764 = vmatprep.subr.mxu0 0.0
        %2765 = vmatpush1.msra.mxu0 0.0
        %2766 = vmatprep.subr.mxu0 0.0
        %2767 = vmatpush1.msra.mxu0 0.0
        %2768 = vmatprep.subr.mxu0 0.0
        %2769 = vmatpush1.msra.mxu0 0.0
        %2770 = vmatprep.subr.mxu0 0.0
        %2771 = vmatpush1.msra.mxu0 0.0
        %2772 = vmatprep.subr.mxu0 0.0
        %2773 = vmatpush1.msra.mxu0 0.0
        %2774 = vmatprep.subr.mxu0 0.0
        %2775 = vmatpush1.msra.mxu0 0.0
        %2776 = vmatprep.subr.mxu0 0.0
        %2777 = vmatpush1.msra.mxu0 0.0
        %2778 = vmatprep.subr.mxu0 0.0
        %2779 = vmatpush1.msra.mxu0 0.0
        %2780 = vmatprep.subr.mxu0 0.0
        %2781 = vmatpush1.msra.mxu0 0.0
        %2782 = vmatprep.subr.mxu0 0.0
        %2783 = vmatpush1.msra.mxu0 0.0
        %2784 = vmatprep.subr.mxu0 0.0
        %2785 = vmatpush1.msra.mxu0 0.0
        %2786 = vmatprep.subr.mxu0 0.0
        %2787 = vmatpush1.msra.mxu0 0.0
        %2788 = vmatprep.subr.mxu0 0.0
        %2789 = vmatpush1.msra.mxu0 0.0
        %2790 = vmatprep.mubr.f32.mxu0 0.0
        %v2791 = vand.u32 %v2489, 4294901760
        %v2792 = vsub.f32 %v2489, %v2791
        %2793 = vmatmul.mubr.f32.gmra.mrb[0].mxu0 %v2792
        %v2794 = vpop.f32.mrb[0].mxu0
        %v2795 = vadd.f32 %v2697, %v2794
        %v2796 = vpop.f32.mrb[0].mxu0
        %2797 = vmatprep.mubr.f32.mxu0 0.0
        %v2798 = vand.u32 %v2492, 4294901760
        %v2799 = vsub.f32 %v2492, %v2798
        %2800 = vmatmul.mubr.f32.gmra.mrb[0].mxu0 %v2799
        %v2801 = vpop.f32.mrb[0].mxu0
        %v2802 = vadd.f32 %v2703, %v2801
        %v2803 = vpop.f32.mrb[0].mxu0
        %2804 = vmatprep.mubr.f32.mxu0 0.0
        %v2805 = vand.u32 %v2495, 4294901760
        %v2806 = vsub.f32 %v2495, %v2805
        %2807 = vmatmul.mubr.f32.gmra.mrb[0].mxu0 %v2806
        %v2808 = vpop.f32.mrb[0].mxu0
        %v2809 = vadd.f32 %v2709, %v2808
        %v2810 = vpop.f32.mrb[0].mxu0
        %2811 = vmatprep.mubr.f32.mxu0 0.0
        %v2812 = vand.u32 %v2498, 4294901760
        %v2813 = vsub.f32 %v2498, %v2812
        %2814 = vmatmul.mubr.f32.gmra.mrb[0].mxu0 %v2813
        %v2815 = vpop.f32.mrb[0].mxu0
        %v2816 = vadd.f32 %v2715, %v2815
        %v2817 = vpop.f32.mrb[0].mxu0
        %2818 = vdwg.mxu0
        %2819 = vmatprep.subr.mxu0 0.0
        %v2820 = vand.u32 %v2472, 4294901760
        %2821 = vmatpush1.msra.mxu0 %v2820
        %2822 = vmatprep.subr.mxu0 0.0
        %v2823 = vand.u32 %v2473, 4294901760
        %2824 = vmatpush1.msra.mxu0 %v2823
        %2825 = vmatprep.subr.mxu0 0.0
        %v2826 = vand.u32 %v2474, 4294901760
        %2827 = vmatpush1.msra.mxu0 %v2826
        %2828 = vmatprep.subr.mxu0 0.0
        %v2829 = vand.u32 %v2475, 4294901760
        %2830 = vmatpush1.msra.mxu0 %v2829
        %2831 = vmatprep.subr.mxu0 0.0
        %2832 = vmatpush1.msra.mxu0 0.0
        %2833 = vmatprep.subr.mxu0 0.0
        %2834 = vmatpush1.msra.mxu0 0.0
        %2835 = vmatprep.subr.mxu0 0.0
        %2836 = vmatpush1.msra.mxu0 0.0
        %2837 = vmatprep.subr.mxu0 0.0
        %2838 = vmatpush1.msra.mxu0 0.0
        %2839 = vmatprep.subr.mxu0 0.0
        %2840 = vmatpush1.msra.mxu0 0.0
        %2841 = vmatprep.subr.mxu0 0.0
        %2842 = vmatpush1.msra.mxu0 0.0
        %2843 = vmatprep.subr.mxu0 0.0
        %2844 = vmatpush1.msra.mxu0 0.0
        %2845 = vmatprep.subr.mxu0 0.0
        %2846 = vmatpush1.msra.mxu0 0.0
        %2847 = vmatprep.subr.mxu0 0.0
        %2848 = vmatpush1.msra.mxu0 0.0
        %2849 = vmatprep.subr.mxu0 0.0
        %2850 = vmatpush1.msra.mxu0 0.0
        %2851 = vmatprep.subr.mxu0 0.0
        %2852 = vmatpush1.msra.mxu0 0.0
        %2853 = vmatprep.subr.mxu0 0.0
        %2854 = vmatpush1.msra.mxu0 0.0
        %2855 = vmatprep.subr.mxu0 0.0
        %2856 = vmatpush1.msra.mxu0 0.0
        %2857 = vmatprep.subr.mxu0 0.0
        %2858 = vmatpush1.msra.mxu0 0.0
        %2859 = vmatprep.subr.mxu0 0.0
        %2860 = vmatpush1.msra.mxu0 0.0
        %2861 = vmatprep.subr.mxu0 0.0
        %2862 = vmatpush1.msra.mxu0 0.0
        %2863 = vmatprep.subr.mxu0 0.0
        %2864 = vmatpush1.msra.mxu0 0.0
        %2865 = vmatprep.subr.mxu0 0.0
        %2866 = vmatpush1.msra.mxu0 0.0
        %2867 = vmatprep.subr.mxu0 0.0
        %2868 = vmatpush1.msra.mxu0 0.0
        %2869 = vmatprep.subr.mxu0 0.0
        %2870 = vmatpush1.msra.mxu0 0.0
        %2871 = vmatprep.subr.mxu0 0.0
        %2872 = vmatpush1.msra.mxu0 0.0
        %2873 = vmatprep.subr.mxu0 0.0
        %2874 = vmatpush1.msra.mxu0 0.0
        %2875 = vmatprep.subr.mxu0 0.0
        %2876 = vmatpush1.msra.mxu0 0.0
        %2877 = vmatprep.subr.mxu0 0.0
        %2878 = vmatpush1.msra.mxu0 0.0
        %2879 = vmatprep.subr.mxu0 0.0
        %2880 = vmatpush1.msra.mxu0 0.0
        %2881 = vmatprep.subr.mxu0 0.0
        %2882 = vmatpush1.msra.mxu0 0.0
        %2883 = vmatprep.subr.mxu0 0.0
        %2884 = vmatpush1.msra.mxu0 0.0
        %2885 = vmatprep.subr.mxu0 0.0
        %2886 = vmatpush1.msra.mxu0 0.0
        %2887 = vmatprep.mubr.f32.mxu0 0.0
        %v2888 = vand.u32 %v2489, 4294901760
        %v2889 = vsub.f32 %v2489, %v2888
        %v2890 = vand.u32 %v2889, 4294901760
        %2891 = vmatmul.mubr.f32.gmra.mrb[0].mxu0 %v2890
        %v2892 = vpop.f32.mrb[0].mxu0
        %v2893 = vadd.f32 %v2795, %v2892
        %v2894 = vpop.f32.mrb[0].mxu0
        %2895 = vmatprep.mubr.f32.mxu0 0.0
        %v2896 = vand.u32 %v2492, 4294901760
        %v2897 = vsub.f32 %v2492, %v2896
        %v2898 = vand.u32 %v2897, 4294901760
        %2899 = vmatmul.mubr.f32.gmra.mrb[0].mxu0 %v2898
        %v2900 = vpop.f32.mrb[0].mxu0
        %v2901 = vadd.f32 %v2802, %v2900
        %v2902 = vpop.f32.mrb[0].mxu0
        %2903 = vmatprep.mubr.f32.mxu0 0.0
        %v2904 = vand.u32 %v2495, 4294901760
        %v2905 = vsub.f32 %v2495, %v2904
        %v2906 = vand.u32 %v2905, 4294901760
        %2907 = vmatmul.mubr.f32.gmra.mrb[0].mxu0 %v2906
        %v2908 = vpop.f32.mrb[0].mxu0
        %v2909 = vadd.f32 %v2809, %v2908
        %v2910 = vpop.f32.mrb[0].mxu0
        %2911 = vmatprep.mubr.f32.mxu0 0.0
        %v2912 = vand.u32 %v2498, 4294901760
        %v2913 = vsub.f32 %v2498, %v2912
        %v2914 = vand.u32 %v2913, 4294901760
        %2915 = vmatmul.mubr.f32.gmra.mrb[0].mxu0 %v2914
        %v2916 = vpop.f32.mrb[0].mxu0
        %v2917 = vadd.f32 %v2816, %v2916
        %v2918 = vpop.f32.mrb[0].mxu0
        %2919 = vdwg.mxu0
        %2920 = vmatprep.subr.mxu0 0.0
        %v2921 = vand.u32 %v2472, 4294901760
        %v2922 = vsub.f32 %v2472, %v2921
        %v2923 = vand.u32 %v2922, 4294901760
        %2924 = vmatpush1.msra.mxu0 %v2923
        %2925 = vmatprep.subr.mxu0 0.0
        %v2926 = vand.u32 %v2473, 4294901760
        %v2927 = vsub.f32 %v2473, %v2926
        %v2928 = vand.u32 %v2927, 4294901760
        %2929 = vmatpush1.msra.mxu0 %v2928
        %2930 = vmatprep.subr.mxu0 0.0
        %v2931 = vand.u32 %v2474, 4294901760
        %v2932 = vsub.f32 %v2474, %v2931
        %v2933 = vand.u32 %v2932, 4294901760
        %2934 = vmatpush1.msra.mxu0 %v2933
        %2935 = vmatprep.subr.mxu0 0.0
        %v2936 = vand.u32 %v2475, 4294901760
        %v2937 = vsub.f32 %v2475, %v2936
        %v2938 = vand.u32 %v2937, 4294901760
        %2939 = vmatpush1.msra.mxu0 %v2938
        %2940 = vmatprep.subr.mxu0 0.0
        %2941 = vmatpush1.msra.mxu0 0.0
        %2942 = vmatprep.subr.mxu0 0.0
        %2943 = vmatpush1.msra.mxu0 0.0
        %2944 = vmatprep.subr.mxu0 0.0
        %2945 = vmatpush1.msra.mxu0 0.0
        %2946 = vmatprep.subr.mxu0 0.0
        %2947 = vmatpush1.msra.mxu0 0.0
        %2948 = vmatprep.subr.mxu0 0.0
        %2949 = vmatpush1.msra.mxu0 0.0
        %2950 = vmatprep.subr.mxu0 0.0
        %2951 = vmatpush1.msra.mxu0 0.0
        %2952 = vmatprep.subr.mxu0 0.0
        %2953 = vmatpush1.msra.mxu0 0.0
        %2954 = vmatprep.subr.mxu0 0.0
        %2955 = vmatpush1.msra.mxu0 0.0
        %2956 = vmatprep.subr.mxu0 0.0
        %2957 = vmatpush1.msra.mxu0 0.0
        %2958 = vmatprep.subr.mxu0 0.0
        %2959 = vmatpush1.msra.mxu0 0.0
        %2960 = vmatprep.subr.mxu0 0.0
        %2961 = vmatpush1.msra.mxu0 0.0
        %2962 = vmatprep.subr.mxu0 0.0
        %2963 = vmatpush1.msra.mxu0 0.0
        %2964 = vmatprep.subr.mxu0 0.0
        %2965 = vmatpush1.msra.mxu0 0.0
        %2966 = vmatprep.subr.mxu0 0.0
        %2967 = vmatpush1.msra.mxu0 0.0
        %2968 = vmatprep.subr.mxu0 0.0
        %2969 = vmatpush1.msra.mxu0 0.0
        %2970 = vmatprep.subr.mxu0 0.0
        %2971 = vmatpush1.msra.mxu0 0.0
        %2972 = vmatprep.subr.mxu0 0.0
        %2973 = vmatpush1.msra.mxu0 0.0
        %2974 = vmatprep.subr.mxu0 0.0
        %2975 = vmatpush1.msra.mxu0 0.0
        %2976 = vmatprep.subr.mxu0 0.0
        %2977 = vmatpush1.msra.mxu0 0.0
        %2978 = vmatprep.subr.mxu0 0.0
        %2979 = vmatpush1.msra.mxu0 0.0
        %2980 = vmatprep.subr.mxu0 0.0
        %2981 = vmatpush1.msra.mxu0 0.0
        %2982 = vmatprep.subr.mxu0 0.0
        %2983 = vmatpush1.msra.mxu0 0.0
        %2984 = vmatprep.subr.mxu0 0.0
        %2985 = vmatpush1.msra.mxu0 0.0
        %2986 = vmatprep.subr.mxu0 0.0
        %2987 = vmatpush1.msra.mxu0 0.0
        %2988 = vmatprep.subr.mxu0 0.0
        %2989 = vmatpush1.msra.mxu0 0.0
        %2990 = vmatprep.subr.mxu0 0.0
        %2991 = vmatpush1.msra.mxu0 0.0
        %2992 = vmatprep.subr.mxu0 0.0
        %2993 = vmatpush1.msra.mxu0 0.0
        %2994 = vmatprep.subr.mxu0 0.0
        %2995 = vmatpush1.msra.mxu0 0.0
        %2996 = vmatprep.mubr.f32.mxu0 0.0
        %v2997 = vand.u32 %v2489, 4294901760
        %2998 = vmatmul.mubr.f32.gmra.mrb[0].mxu0 %v2997
        %v2999 = vpop.f32.mrb[0].mxu0
        %v3000 = vadd.f32 %v2893, %v2999
        %v3001 = vpop.f32.mrb[0].mxu0
        %3002 = vmatprep.mubr.f32.mxu0 0.0
        %v3003 = vand.u32 %v2492, 4294901760
        %3004 = vmatmul.mubr.f32.gmra.mrb[0].mxu0 %v3003
        %v3005 = vpop.f32.mrb[0].mxu0
        %v3006 = vadd.f32 %v2901, %v3005
        %v3007 = vpop.f32.mrb[0].mxu0
        %3008 = vmatprep.mubr.f32.mxu0 0.0
        %v3009 = vand.u32 %v2495, 4294901760
        %3010 = vmatmul.mubr.f32.gmra.mrb[0].mxu0 %v3009
        %v3011 = vpop.f32.mrb[0].mxu0
        %v3012 = vadd.f32 %v2909, %v3011
        %v3013 = vpop.f32.mrb[0].mxu0
        %3014 = vmatprep.mubr.f32.mxu0 0.0
        %v3015 = vand.u32 %v2498, 4294901760
        %3016 = vmatmul.mubr.f32.gmra.mrb[0].mxu0 %v3015
        %v3017 = vpop.f32.mrb[0].mxu0
        %v3018 = vadd.f32 %v2917, %v3017
        %v3019 = vpop.f32.mrb[0].mxu0
        %3020 = vdwg.mxu0
        %3021 = vmatprep.subr.mxu0 0.0
        %v3022 = vand.u32 %v2472, 4294901760
        %3023 = vmatpush1.msra.mxu0 %v3022
        %3024 = vmatprep.subr.mxu0 0.0
        %v3025 = vand.u32 %v2473, 4294901760
        %3026 = vmatpush1.msra.mxu0 %v3025
        %3027 = vmatprep.subr.mxu0 0.0
        %v3028 = vand.u32 %v2474, 4294901760
        %3029 = vmatpush1.msra.mxu0 %v3028
        %3030 = vmatprep.subr.mxu0 0.0
        %v3031 = vand.u32 %v2475, 4294901760
        %3032 = vmatpush1.msra.mxu0 %v3031
        %3033 = vmatprep.subr.mxu0 0.0
        %3034 = vmatpush1.msra.mxu0 0.0
        %3035 = vmatprep.subr.mxu0 0.0
        %3036 = vmatpush1.msra.mxu0 0.0
        %3037 = vmatprep.subr.mxu0 0.0
        %3038 = vmatpush1.msra.mxu0 0.0
        %3039 = vmatprep.subr.mxu0 0.0
        %3040 = vmatpush1.msra.mxu0 0.0
        %3041 = vmatprep.subr.mxu0 0.0
        %3042 = vmatpush1.msra.mxu0 0.0
        %3043 = vmatprep.subr.mxu0 0.0
        %3044 = vmatpush1.msra.mxu0 0.0
        %3045 = vmatprep.subr.mxu0 0.0
        %3046 = vmatpush1.msra.mxu0 0.0
        %3047 = vmatprep.subr.mxu0 0.0
        %3048 = vmatpush1.msra.mxu0 0.0
        %3049 = vmatprep.subr.mxu0 0.0
        %3050 = vmatpush1.msra.mxu0 0.0
        %3051 = vmatprep.subr.mxu0 0.0
        %3052 = vmatpush1.msra.mxu0 0.0
        %3053 = vmatprep.subr.mxu0 0.0
        %3054 = vmatpush1.msra.mxu0 0.0
        %3055 = vmatprep.subr.mxu0 0.0
        %3056 = vmatpush1.msra.mxu0 0.0
        %3057 = vmatprep.subr.mxu0 0.0
        %3058 = vmatpush1.msra.mxu0 0.0
        %3059 = vmatprep.subr.mxu0 0.0
        %3060 = vmatpush1.msra.mxu0 0.0
        %3061 = vmatprep.subr.mxu0 0.0
        %3062 = vmatpush1.msra.mxu0 0.0
        %3063 = vmatprep.subr.mxu0 0.0
        %3064 = vmatpush1.msra.mxu0 0.0
        %3065 = vmatprep.subr.mxu0 0.0
        %3066 = vmatpush1.msra.mxu0 0.0
        %3067 = vmatprep.subr.mxu0 0.0
        %3068 = vmatpush1.msra.mxu0 0.0
        %3069 = vmatprep.subr.mxu0 0.0
        %3070 = vmatpush1.msra.mxu0 0.0
        %3071 = vmatprep.subr.mxu0 0.0
        %3072 = vmatpush1.msra.mxu0 0.0
        %3073 = vmatprep.subr.mxu0 0.0
        %3074 = vmatpush1.msra.mxu0 0.0
        %3075 = vmatprep.subr.mxu0 0.0
        %3076 = vmatpush1.msra.mxu0 0.0
        %3077 = vmatprep.subr.mxu0 0.0
        %3078 = vmatpush1.msra.mxu0 0.0
        %3079 = vmatprep.subr.mxu0 0.0
        %3080 = vmatpush1.msra.mxu0 0.0
        %3081 = vmatprep.subr.mxu0 0.0
        %3082 = vmatpush1.msra.mxu0 0.0
        %3083 = vmatprep.subr.mxu0 0.0
        %3084 = vmatpush1.msra.mxu0 0.0
        %3085 = vmatprep.subr.mxu0 0.0
        %3086 = vmatpush1.msra.mxu0 0.0
        %3087 = vmatprep.subr.mxu0 0.0
        %3088 = vmatpush1.msra.mxu0 0.0
        %3089 = vmatprep.mubr.f32.mxu0 0.0
        %v3090 = vand.u32 %v2489, 4294901760
        %3091 = vmatmul.mubr.f32.gmra.mrb[0].mxu0 %v3090
        %v3092 = vpop.f32.mrb[0].mxu0
        %v3093 = vadd.f32 %v3000, %v3092
        %v3094 = vpop.f32.mrb[0].mxu0
        %3095 = vmatprep.mubr.f32.mxu0 0.0
        %v3096 = vand.u32 %v2492, 4294901760
        %3097 = vmatmul.mubr.f32.gmra.mrb[0].mxu0 %v3096
        %v3098 = vpop.f32.mrb[0].mxu0
        %v3099 = vadd.f32 %v3006, %v3098
        %v3100 = vpop.f32.mrb[0].mxu0
        %3101 = vmatprep.mubr.f32.mxu0 0.0
        %v3102 = vand.u32 %v2495, 4294901760
        %3103 = vmatmul.mubr.f32.gmra.mrb[0].mxu0 %v3102
        %v3104 = vpop.f32.mrb[0].mxu0
        %v3105 = vadd.f32 %v3012, %v3104
        %v3106 = vpop.f32.mrb[0].mxu0
        %3107 = vmatprep.mubr.f32.mxu0 0.0
        %v3108 = vand.u32 %v2498, 4294901760
        %3109 = vmatmul.mubr.f32.gmra.mrb[0].mxu0 %v3108
        %v3110 = vpop.f32.mrb[0].mxu0
        %v3111 = vadd.f32 %v3018, %v3110
        %v3112 = vpop.f32.mrb[0].mxu0
        %3113 = vdwg.mxu0
        %v3114 = vxor.u32 %v3093, 2147483648
        %v3115 = vxor.u32 %v3099, 2147483648
        %v3116 = vxor.u32 %v3105, 2147483648
        %v3117 = vxor.u32 %v3111, 2147483648
        %v3118 = vmul.f32 %v3114, 1.442695
        %v3119 = vpow.pop %v3118
        %v3120 = vmul.f32 %v3115, 1.442695
        %v3121 = vpow.pop %v3120
        %v3122 = vmul.f32 %v3116, 1.442695
        %v3123 = vpow.pop %v3122
        %v3124 = vmul.f32 %v3117, 1.442695
        %v3125 = vpow.pop %v3124
        %v3126 = vadd.f32 %v3119, 1.0
        %v3127 = vadd.f32 %v3121, 1.0
        %v3128 = vadd.f32 %v3123, 1.0
        %v3129 = vadd.f32 %v3125, 1.0
        %v3130 = vrcp.pop %v3126
        %v3131 = vmul.f32 1.0, %v3130
        %v3132 = vrcp.pop %v3127
        %v3133 = vmul.f32 1.0, %v3132
        %v3134 = vrcp.pop %v3128
        %v3135 = vmul.f32 1.0, %v3134
        %v3136 = vrcp.pop %v3129
        %v3137 = vmul.f32 1.0, %v3136
        %3139 = vset.pattern.permute.xlu0 0
        %3140 = vperm.xlu0 %3139, %v3131
        %v3141 = vpop.permute.xlu0 %3140
        %3144 = vset.pattern.permute.xlu0 0
        %3145 = vperm.xlu0 %3144, %v3133
        %v3146 = vpop.permute.xlu0 %3145
        %3149 = vset.pattern.permute.xlu0 0
        %3150 = vperm.xlu0 %3149, %v3135
        %v3151 = vpop.permute.xlu0 %3150
        %3154 = vset.pattern.permute.xlu0 0
        %3155 = vperm.xlu0 %3154, %v3137
        %v3156 = vpop.permute.xlu0 %3155
        %v3158 = vmul.f32 %v1785, %v3141
        %v3159 = vmul.f32 %v1786, %v3141
        %v3160 = vmul.f32 %v1787, %v3146
        %v3161 = vmul.f32 %v1788, %v3146
        %v3162 = vmul.f32 %v1789, %v3151
        %v3163 = vmul.f32 %v1790, %v3151
        %v3164 = vmul.f32 %v1791, %v3156
        %v3165 = vmul.f32 %v1792, %v3156
        %v3167 = vsel %vm1821, %v195, 0
        %v3169 = vand.u32 %v3159, 4294901760
        %3170 = vmatprep.subr.mxu0 %v3169
        %v3171 = vand.u32 %v3158, 4294901760
        %3172 = vmatpush1.msra.mxu0 %v3171
        %v3173 = vand.u32 %v3161, 4294901760
        %3174 = vmatprep.subr.mxu0 %v3173
        %v3175 = vand.u32 %v3160, 4294901760
        %3176 = vmatpush1.msra.mxu0 %v3175
        %v3177 = vand.u32 %v3163, 4294901760
        %3178 = vmatprep.subr.mxu0 %v3177
        %v3179 = vand.u32 %v3162, 4294901760
        %3180 = vmatpush1.msra.mxu0 %v3179
        %v3181 = vand.u32 %v3165, 4294901760
        %3182 = vmatprep.subr.mxu0 %v3181
        %v3183 = vand.u32 %v3164, 4294901760
        %3184 = vmatpush1.msra.mxu0 %v3183
        %3185 = vmatprep.subr.mxu0 0.0
        %3186 = vmatpush1.msra.mxu0 0.0
        %3187 = vmatprep.subr.mxu0 0.0
        %3188 = vmatpush1.msra.mxu0 0.0
        %3189 = vmatprep.subr.mxu0 0.0
        %3190 = vmatpush1.msra.mxu0 0.0
        %3191 = vmatprep.subr.mxu0 0.0
        %3192 = vmatpush1.msra.mxu0 0.0
        %3193 = vmatprep.subr.mxu0 0.0
        %3194 = vmatpush1.msra.mxu0 0.0
        %3195 = vmatprep.subr.mxu0 0.0
        %3196 = vmatpush1.msra.mxu0 0.0
        %3197 = vmatprep.subr.mxu0 0.0
        %3198 = vmatpush1.msra.mxu0 0.0
        %3199 = vmatprep.subr.mxu0 0.0
        %3200 = vmatpush1.msra.mxu0 0.0
        %3201 = vmatprep.subr.mxu0 0.0
        %3202 = vmatpush1.msra.mxu0 0.0
        %3203 = vmatprep.subr.mxu0 0.0
        %3204 = vmatpush1.msra.mxu0 0.0
        %3205 = vmatprep.subr.mxu0 0.0
        %3206 = vmatpush1.msra.mxu0 0.0
        %3207 = vmatprep.subr.mxu0 0.0
        %3208 = vmatpush1.msra.mxu0 0.0
        %3209 = vmatprep.subr.mxu0 0.0
        %3210 = vmatpush1.msra.mxu0 0.0
        %3211 = vmatprep.subr.mxu0 0.0
        %3212 = vmatpush1.msra.mxu0 0.0
        %3213 = vmatprep.subr.mxu0 0.0
        %3214 = vmatpush1.msra.mxu0 0.0
        %3215 = vmatprep.subr.mxu0 0.0
        %3216 = vmatpush1.msra.mxu0 0.0
        %3217 = vmatprep.subr.mxu0 0.0
        %3218 = vmatpush1.msra.mxu0 0.0
        %3219 = vmatprep.subr.mxu0 0.0
        %3220 = vmatpush1.msra.mxu0 0.0
        %3221 = vmatprep.subr.mxu0 0.0
        %3222 = vmatpush1.msra.mxu0 0.0
        %3223 = vmatprep.subr.mxu0 0.0
        %3224 = vmatpush1.msra.mxu0 0.0
        %3225 = vmatprep.subr.mxu0 0.0
        %3226 = vmatpush1.msra.mxu0 0.0
        %3227 = vmatprep.subr.mxu0 0.0
        %3228 = vmatpush1.msra.mxu0 0.0
        %3229 = vmatprep.subr.mxu0 0.0
        %3230 = vmatpush1.msra.mxu0 0.0
        %3231 = vmatprep.subr.mxu0 0.0
        %3232 = vmatpush1.msra.mxu0 0.0
        %3233 = vmatprep.subr.mxu0 0.0
        %3234 = vmatpush1.msra.mxu0 0.0
        %3235 = vmatprep.subr.mxu0 0.0
        %3236 = vmatpush1.msra.mxu0 0.0
        %3237 = vmatprep.subr.mxu0 0.0
        %3238 = vmatpush1.msra.mxu0 0.0
        %3239 = vmatprep.subr.mxu0 0.0
        %3240 = vmatpush1.msra.mxu0 0.0
        %3241 = vmatprep.mubr.f32.mxu0 0.0
        %v3242 = vand.u32 %v3167, 4294901760
        %v3243 = vsub.f32 %v3167, %v3242
        %v3244 = vand.u32 %v3243, 4294901760
        %v3245 = vsub.f32 %v3243, %v3244
        %v3246 = vand.u32 %v3245, 4294901760
        %3247 = vmatmul.mubr.f32.gmra.mrb[0].mxu0 %v3246
        %v3248 = vpop.f32.mrb[0].mxu0
        %v3249 = vadd.f32 %v209, %v3248
        %v3250 = vpop.f32.mrb[0].mxu0
        %v3251 = vadd.f32 %v210, %v3250
        %3252 = vdwg.mxu0
        %v3253 = vand.u32 %v3159, 4294901760
        %v3254 = vsub.f32 %v3159, %v3253
        %v3255 = vand.u32 %v3254, 4294901760
        %v3256 = vsub.f32 %v3254, %v3255
        %v3257 = vand.u32 %v3256, 4294901760
        %3258 = vmatprep.subr.mxu0 %v3257
        %v3259 = vand.u32 %v3158, 4294901760
        %v3260 = vsub.f32 %v3158, %v3259
        %v3261 = vand.u32 %v3260, 4294901760
        %v3262 = vsub.f32 %v3260, %v3261
        %v3263 = vand.u32 %v3262, 4294901760
        %3264 = vmatpush1.msra.mxu0 %v3263
        %v3265 = vand.u32 %v3161, 4294901760
        %v3266 = vsub.f32 %v3161, %v3265
        %v3267 = vand.u32 %v3266, 4294901760
        %v3268 = vsub.f32 %v3266, %v3267
        %v3269 = vand.u32 %v3268, 4294901760
        %3270 = vmatprep.subr.mxu0 %v3269
        %v3271 = vand.u32 %v3160, 4294901760
        %v3272 = vsub.f32 %v3160, %v3271
        %v3273 = vand.u32 %v3272, 4294901760
        %v3274 = vsub.f32 %v3272, %v3273
        %v3275 = vand.u32 %v3274, 4294901760
        %3276 = vmatpush1.msra.mxu0 %v3275
        %v3277 = vand.u32 %v3163, 4294901760
        %v3278 = vsub.f32 %v3163, %v3277
        %v3279 = vand.u32 %v3278, 4294901760
        %v3280 = vsub.f32 %v3278, %v3279
        %v3281 = vand.u32 %v3280, 4294901760
        %3282 = vmatprep.subr.mxu0 %v3281
        %v3283 = vand.u32 %v3162, 4294901760
        %v3284 = vsub.f32 %v3162, %v3283
        %v3285 = vand.u32 %v3284, 4294901760
        %v3286 = vsub.f32 %v3284, %v3285
        %v3287 = vand.u32 %v3286, 4294901760
        %3288 = vmatpush1.msra.mxu0 %v3287
        %v3289 = vand.u32 %v3165, 4294901760
        %v3290 = vsub.f32 %v3165, %v3289
        %v3291 = vand.u32 %v3290, 4294901760
        %v3292 = vsub.f32 %v3290, %v3291
        %v3293 = vand.u32 %v3292, 4294901760
        %3294 = vmatprep.subr.mxu0 %v3293
        %v3295 = vand.u32 %v3164, 4294901760
        %v3296 = vsub.f32 %v3164, %v3295
        %v3297 = vand.u32 %v3296, 4294901760
        %v3298 = vsub.f32 %v3296, %v3297
        %v3299 = vand.u32 %v3298, 4294901760
        %3300 = vmatpush1.msra.mxu0 %v3299
        %3301 = vmatprep.subr.mxu0 0.0
        %3302 = vmatpush1.msra.mxu0 0.0
        %3303 = vmatprep.subr.mxu0 0.0
        %3304 = vmatpush1.msra.mxu0 0.0
        %3305 = vmatprep.subr.mxu0 0.0
        %3306 = vmatpush1.msra.mxu0 0.0
        %3307 = vmatprep.subr.mxu0 0.0
        %3308 = vmatpush1.msra.mxu0 0.0
        %3309 = vmatprep.subr.mxu0 0.0
        %3310 = vmatpush1.msra.mxu0 0.0
        %3311 = vmatprep.subr.mxu0 0.0
        %3312 = vmatpush1.msra.mxu0 0.0
        %3313 = vmatprep.subr.mxu0 0.0
        %3314 = vmatpush1.msra.mxu0 0.0
        %3315 = vmatprep.subr.mxu0 0.0
        %3316 = vmatpush1.msra.mxu0 0.0
        %3317 = vmatprep.subr.mxu0 0.0
        %3318 = vmatpush1.msra.mxu0 0.0
        %3319 = vmatprep.subr.mxu0 0.0
        %3320 = vmatpush1.msra.mxu0 0.0
        %3321 = vmatprep.subr.mxu0 0.0
        %3322 = vmatpush1.msra.mxu0 0.0
        %3323 = vmatprep.subr.mxu0 0.0
        %3324 = vmatpush1.msra.mxu0 0.0
        %3325 = vmatprep.subr.mxu0 0.0
        %3326 = vmatpush1.msra.mxu0 0.0
        %3327 = vmatprep.subr.mxu0 0.0
        %3328 = vmatpush1.msra.mxu0 0.0
        %3329 = vmatprep.subr.mxu0 0.0
        %3330 = vmatpush1.msra.mxu0 0.0
        %3331 = vmatprep.subr.mxu0 0.0
        %3332 = vmatpush1.msra.mxu0 0.0
        %3333 = vmatprep.subr.mxu0 0.0
        %3334 = vmatpush1.msra.mxu0 0.0
        %3335 = vmatprep.subr.mxu0 0.0
        %3336 = vmatpush1.msra.mxu0 0.0
        %3337 = vmatprep.subr.mxu0 0.0
        %3338 = vmatpush1.msra.mxu0 0.0
        %3339 = vmatprep.subr.mxu0 0.0
        %3340 = vmatpush1.msra.mxu0 0.0
        %3341 = vmatprep.subr.mxu0 0.0
        %3342 = vmatpush1.msra.mxu0 0.0
        %3343 = vmatprep.subr.mxu0 0.0
        %3344 = vmatpush1.msra.mxu0 0.0
        %3345 = vmatprep.subr.mxu0 0.0
        %3346 = vmatpush1.msra.mxu0 0.0
        %3347 = vmatprep.subr.mxu0 0.0
        %3348 = vmatpush1.msra.mxu0 0.0
        %3349 = vmatprep.subr.mxu0 0.0
        %3350 = vmatpush1.msra.mxu0 0.0
        %3351 = vmatprep.subr.mxu0 0.0
        %3352 = vmatpush1.msra.mxu0 0.0
        %3353 = vmatprep.subr.mxu0 0.0
        %3354 = vmatpush1.msra.mxu0 0.0
        %3355 = vmatprep.subr.mxu0 0.0
        %3356 = vmatpush1.msra.mxu0 0.0
        %3357 = vmatprep.mubr.f32.mxu0 0.0
        %v3358 = vand.u32 %v3167, 4294901760
        %3359 = vmatmul.mubr.f32.gmra.mrb[0].mxu0 %v3358
        %v3360 = vpop.f32.mrb[0].mxu0
        %v3361 = vadd.f32 %v3249, %v3360
        %v3362 = vpop.f32.mrb[0].mxu0
        %v3363 = vadd.f32 %v3251, %v3362
        %3364 = vdwg.mxu0
        %v3365 = vand.u32 %v3159, 4294901760
        %v3366 = vsub.f32 %v3159, %v3365
        %3367 = vmatprep.subr.mxu0 %v3366
        %v3368 = vand.u32 %v3158, 4294901760
        %v3369 = vsub.f32 %v3158, %v3368
        %3370 = vmatpush1.msra.mxu0 %v3369
        %v3371 = vand.u32 %v3161, 4294901760
        %v3372 = vsub.f32 %v3161, %v3371
        %3373 = vmatprep.subr.mxu0 %v3372
        %v3374 = vand.u32 %v3160, 4294901760
        %v3375 = vsub.f32 %v3160, %v3374
        %3376 = vmatpush1.msra.mxu0 %v3375
        %v3377 = vand.u32 %v3163, 4294901760
        %v3378 = vsub.f32 %v3163, %v3377
        %3379 = vmatprep.subr.mxu0 %v3378
        %v3380 = vand.u32 %v3162, 4294901760
        %v3381 = vsub.f32 %v3162, %v3380
        %3382 = vmatpush1.msra.mxu0 %v3381
        %v3383 = vand.u32 %v3165, 4294901760
        %v3384 = vsub.f32 %v3165, %v3383
        %3385 = vmatprep.subr.mxu0 %v3384
        %v3386 = vand.u32 %v3164, 4294901760
        %v3387 = vsub.f32 %v3164, %v3386
        %3388 = vmatpush1.msra.mxu0 %v3387
        %3389 = vmatprep.subr.mxu0 0.0
        %3390 = vmatpush1.msra.mxu0 0.0
        %3391 = vmatprep.subr.mxu0 0.0
        %3392 = vmatpush1.msra.mxu0 0.0
        %3393 = vmatprep.subr.mxu0 0.0
        %3394 = vmatpush1.msra.mxu0 0.0
        %3395 = vmatprep.subr.mxu0 0.0
        %3396 = vmatpush1.msra.mxu0 0.0
        %3397 = vmatprep.subr.mxu0 0.0
        %3398 = vmatpush1.msra.mxu0 0.0
        %3399 = vmatprep.subr.mxu0 0.0
        %3400 = vmatpush1.msra.mxu0 0.0
        %3401 = vmatprep.subr.mxu0 0.0
        %3402 = vmatpush1.msra.mxu0 0.0
        %3403 = vmatprep.subr.mxu0 0.0
        %3404 = vmatpush1.msra.mxu0 0.0
        %3405 = vmatprep.subr.mxu0 0.0
        %3406 = vmatpush1.msra.mxu0 0.0
        %3407 = vmatprep.subr.mxu0 0.0
        %3408 = vmatpush1.msra.mxu0 0.0
        %3409 = vmatprep.subr.mxu0 0.0
        %3410 = vmatpush1.msra.mxu0 0.0
        %3411 = vmatprep.subr.mxu0 0.0
        %3412 = vmatpush1.msra.mxu0 0.0
        %3413 = vmatprep.subr.mxu0 0.0
        %3414 = vmatpush1.msra.mxu0 0.0
        %3415 = vmatprep.subr.mxu0 0.0
        %3416 = vmatpush1.msra.mxu0 0.0
        %3417 = vmatprep.subr.mxu0 0.0
        %3418 = vmatpush1.msra.mxu0 0.0
        %3419 = vmatprep.subr.mxu0 0.0
        %3420 = vmatpush1.msra.mxu0 0.0
        %3421 = vmatprep.subr.mxu0 0.0
        %3422 = vmatpush1.msra.mxu0 0.0
        %3423 = vmatprep.subr.mxu0 0.0
        %3424 = vmatpush1.msra.mxu0 0.0
        %3425 = vmatprep.subr.mxu0 0.0
        %3426 = vmatpush1.msra.mxu0 0.0
        %3427 = vmatprep.subr.mxu0 0.0
        %3428 = vmatpush1.msra.mxu0 0.0
        %3429 = vmatprep.subr.mxu0 0.0
        %3430 = vmatpush1.msra.mxu0 0.0
        %3431 = vmatprep.subr.mxu0 0.0
        %3432 = vmatpush1.msra.mxu0 0.0
        %3433 = vmatprep.subr.mxu0 0.0
        %3434 = vmatpush1.msra.mxu0 0.0
        %3435 = vmatprep.subr.mxu0 0.0
        %3436 = vmatpush1.msra.mxu0 0.0
        %3437 = vmatprep.subr.mxu0 0.0
        %3438 = vmatpush1.msra.mxu0 0.0
        %3439 = vmatprep.subr.mxu0 0.0
        %3440 = vmatpush1.msra.mxu0 0.0
        %3441 = vmatprep.subr.mxu0 0.0
        %3442 = vmatpush1.msra.mxu0 0.0
        %3443 = vmatprep.subr.mxu0 0.0
        %3444 = vmatpush1.msra.mxu0 0.0
        %3445 = vmatprep.mubr.f32.mxu0 0.0
        %v3446 = vand.u32 %v3167, 4294901760
        %v3447 = vsub.f32 %v3167, %v3446
        %3448 = vmatmul.mubr.f32.gmra.mrb[0].mxu0 %v3447
        %v3449 = vpop.f32.mrb[0].mxu0
        %v3450 = vadd.f32 %v3361, %v3449
        %v3451 = vpop.f32.mrb[0].mxu0
        %v3452 = vadd.f32 %v3363, %v3451
        %3453 = vdwg.mxu0
        %v3454 = vand.u32 %v3159, 4294901760
        %3455 = vmatprep.subr.mxu0 %v3454
        %v3456 = vand.u32 %v3158, 4294901760
        %3457 = vmatpush1.msra.mxu0 %v3456
        %v3458 = vand.u32 %v3161, 4294901760
        %3459 = vmatprep.subr.mxu0 %v3458
        %v3460 = vand.u32 %v3160, 4294901760
        %3461 = vmatpush1.msra.mxu0 %v3460
        %v3462 = vand.u32 %v3163, 4294901760
        %3463 = vmatprep.subr.mxu0 %v3462
        %v3464 = vand.u32 %v3162, 4294901760
        %3465 = vmatpush1.msra.mxu0 %v3464
        %v3466 = vand.u32 %v3165, 4294901760
        %3467 = vmatprep.subr.mxu0 %v3466
        %v3468 = vand.u32 %v3164, 4294901760
        %3469 = vmatpush1.msra.mxu0 %v3468
        %3470 = vmatprep.subr.mxu0 0.0
        %3471 = vmatpush1.msra.mxu0 0.0
        %3472 = vmatprep.subr.mxu0 0.0
        %3473 = vmatpush1.msra.mxu0 0.0
        %3474 = vmatprep.subr.mxu0 0.0
        %3475 = vmatpush1.msra.mxu0 0.0
        %3476 = vmatprep.subr.mxu0 0.0
        %3477 = vmatpush1.msra.mxu0 0.0
        %3478 = vmatprep.subr.mxu0 0.0
        %3479 = vmatpush1.msra.mxu0 0.0
        %3480 = vmatprep.subr.mxu0 0.0
        %3481 = vmatpush1.msra.mxu0 0.0
        %3482 = vmatprep.subr.mxu0 0.0
        %3483 = vmatpush1.msra.mxu0 0.0
        %3484 = vmatprep.subr.mxu0 0.0
        %3485 = vmatpush1.msra.mxu0 0.0
        %3486 = vmatprep.subr.mxu0 0.0
        %3487 = vmatpush1.msra.mxu0 0.0
        %3488 = vmatprep.subr.mxu0 0.0
        %3489 = vmatpush1.msra.mxu0 0.0
        %3490 = vmatprep.subr.mxu0 0.0
        %3491 = vmatpush1.msra.mxu0 0.0
        %3492 = vmatprep.subr.mxu0 0.0
        %3493 = vmatpush1.msra.mxu0 0.0
        %3494 = vmatprep.subr.mxu0 0.0
        %3495 = vmatpush1.msra.mxu0 0.0
        %3496 = vmatprep.subr.mxu0 0.0
        %3497 = vmatpush1.msra.mxu0 0.0
        %3498 = vmatprep.subr.mxu0 0.0
        %3499 = vmatpush1.msra.mxu0 0.0
        %3500 = vmatprep.subr.mxu0 0.0
        %3501 = vmatpush1.msra.mxu0 0.0
        %3502 = vmatprep.subr.mxu0 0.0
        %3503 = vmatpush1.msra.mxu0 0.0
        %3504 = vmatprep.subr.mxu0 0.0
        %3505 = vmatpush1.msra.mxu0 0.0
        %3506 = vmatprep.subr.mxu0 0.0
        %3507 = vmatpush1.msra.mxu0 0.0
        %3508 = vmatprep.subr.mxu0 0.0
        %3509 = vmatpush1.msra.mxu0 0.0
        %3510 = vmatprep.subr.mxu0 0.0
        %3511 = vmatpush1.msra.mxu0 0.0
        %3512 = vmatprep.subr.mxu0 0.0
        %3513 = vmatpush1.msra.mxu0 0.0
        %3514 = vmatprep.subr.mxu0 0.0
        %3515 = vmatpush1.msra.mxu0 0.0
        %3516 = vmatprep.subr.mxu0 0.0
        %3517 = vmatpush1.msra.mxu0 0.0
        %3518 = vmatprep.subr.mxu0 0.0
        %3519 = vmatpush1.msra.mxu0 0.0
        %3520 = vmatprep.subr.mxu0 0.0
        %3521 = vmatpush1.msra.mxu0 0.0
        %3522 = vmatprep.subr.mxu0 0.0
        %3523 = vmatpush1.msra.mxu0 0.0
        %3524 = vmatprep.subr.mxu0 0.0
        %3525 = vmatpush1.msra.mxu0 0.0
        %3526 = vmatprep.mubr.f32.mxu0 0.0
        %v3527 = vand.u32 %v3167, 4294901760
        %v3528 = vsub.f32 %v3167, %v3527
        %v3529 = vand.u32 %v3528, 4294901760
        %3530 = vmatmul.mubr.f32.gmra.mrb[0].mxu0 %v3529
        %v3531 = vpop.f32.mrb[0].mxu0
        %v3532 = vadd.f32 %v3450, %v3531
        %v3533 = vpop.f32.mrb[0].mxu0
        %v3534 = vadd.f32 %v3452, %v3533
        %3535 = vdwg.mxu0
        %v3536 = vand.u32 %v3159, 4294901760
        %v3537 = vsub.f32 %v3159, %v3536
        %v3538 = vand.u32 %v3537, 4294901760
        %3539 = vmatprep.subr.mxu0 %v3538
        %v3540 = vand.u32 %v3158, 4294901760
        %v3541 = vsub.f32 %v3158, %v3540
        %v3542 = vand.u32 %v3541, 4294901760
        %3543 = vmatpush1.msra.mxu0 %v3542
        %v3544 = vand.u32 %v3161, 4294901760
        %v3545 = vsub.f32 %v3161, %v3544
        %v3546 = vand.u32 %v3545, 4294901760
        %3547 = vmatprep.subr.mxu0 %v3546
        %v3548 = vand.u32 %v3160, 4294901760
        %v3549 = vsub.f32 %v3160, %v3548
        %v3550 = vand.u32 %v3549, 4294901760
        %3551 = vmatpush1.msra.mxu0 %v3550
        %v3552 = vand.u32 %v3163, 4294901760
        %v3553 = vsub.f32 %v3163, %v3552
        %v3554 = vand.u32 %v3553, 4294901760
        %3555 = vmatprep.subr.mxu0 %v3554
        %v3556 = vand.u32 %v3162, 4294901760
        %v3557 = vsub.f32 %v3162, %v3556
        %v3558 = vand.u32 %v3557, 4294901760
        %3559 = vmatpush1.msra.mxu0 %v3558
        %v3560 = vand.u32 %v3165, 4294901760
        %v3561 = vsub.f32 %v3165, %v3560
        %v3562 = vand.u32 %v3561, 4294901760
        %3563 = vmatprep.subr.mxu0 %v3562
        %v3564 = vand.u32 %v3164, 4294901760
        %v3565 = vsub.f32 %v3164, %v3564
        %v3566 = vand.u32 %v3565, 4294901760
        %3567 = vmatpush1.msra.mxu0 %v3566
        %3568 = vmatprep.subr.mxu0 0.0
        %3569 = vmatpush1.msra.mxu0 0.0
        %3570 = vmatprep.subr.mxu0 0.0
        %3571 = vmatpush1.msra.mxu0 0.0
        %3572 = vmatprep.subr.mxu0 0.0
        %3573 = vmatpush1.msra.mxu0 0.0
        %3574 = vmatprep.subr.mxu0 0.0
        %3575 = vmatpush1.msra.mxu0 0.0
        %3576 = vmatprep.subr.mxu0 0.0
        %3577 = vmatpush1.msra.mxu0 0.0
        %3578 = vmatprep.subr.mxu0 0.0
        %3579 = vmatpush1.msra.mxu0 0.0
        %3580 = vmatprep.subr.mxu0 0.0
        %3581 = vmatpush1.msra.mxu0 0.0
        %3582 = vmatprep.subr.mxu0 0.0
        %3583 = vmatpush1.msra.mxu0 0.0
        %3584 = vmatprep.subr.mxu0 0.0
        %3585 = vmatpush1.msra.mxu0 0.0
        %3586 = vmatprep.subr.mxu0 0.0
        %3587 = vmatpush1.msra.mxu0 0.0
        %3588 = vmatprep.subr.mxu0 0.0
        %3589 = vmatpush1.msra.mxu0 0.0
        %3590 = vmatprep.subr.mxu0 0.0
        %3591 = vmatpush1.msra.mxu0 0.0
        %3592 = vmatprep.subr.mxu0 0.0
        %3593 = vmatpush1.msra.mxu0 0.0
        %3594 = vmatprep.subr.mxu0 0.0
        %3595 = vmatpush1.msra.mxu0 0.0
        %3596 = vmatprep.subr.mxu0 0.0
        %3597 = vmatpush1.msra.mxu0 0.0
        %3598 = vmatprep.subr.mxu0 0.0
        %3599 = vmatpush1.msra.mxu0 0.0
        %3600 = vmatprep.subr.mxu0 0.0
        %3601 = vmatpush1.msra.mxu0 0.0
        %3602 = vmatprep.subr.mxu0 0.0
        %3603 = vmatpush1.msra.mxu0 0.0
        %3604 = vmatprep.subr.mxu0 0.0
        %3605 = vmatpush1.msra.mxu0 0.0
        %3606 = vmatprep.subr.mxu0 0.0
        %3607 = vmatpush1.msra.mxu0 0.0
        %3608 = vmatprep.subr.mxu0 0.0
        %3609 = vmatpush1.msra.mxu0 0.0
        %3610 = vmatprep.subr.mxu0 0.0
        %3611 = vmatpush1.msra.mxu0 0.0
        %3612 = vmatprep.subr.mxu0 0.0
        %3613 = vmatpush1.msra.mxu0 0.0
        %3614 = vmatprep.subr.mxu0 0.0
        %3615 = vmatpush1.msra.mxu0 0.0
        %3616 = vmatprep.subr.mxu0 0.0
        %3617 = vmatpush1.msra.mxu0 0.0
        %3618 = vmatprep.subr.mxu0 0.0
        %3619 = vmatpush1.msra.mxu0 0.0
        %3620 = vmatprep.subr.mxu0 0.0
        %3621 = vmatpush1.msra.mxu0 0.0
        %3622 = vmatprep.subr.mxu0 0.0
        %3623 = vmatpush1.msra.mxu0 0.0
        %3624 = vmatprep.mubr.f32.mxu0 0.0
        %v3625 = vand.u32 %v3167, 4294901760
        %3626 = vmatmul.mubr.f32.gmra.mrb[0].mxu0 %v3625
        %v3627 = vpop.f32.mrb[0].mxu0
        %v3628 = vadd.f32 %v3532, %v3627
        %v3629 = vpop.f32.mrb[0].mxu0
        %v3630 = vadd.f32 %v3534, %v3629
        %3631 = vdwg.mxu0
        %v3632 = vand.u32 %v3159, 4294901760
        %3633 = vmatprep.subr.mxu0 %v3632
        %v3634 = vand.u32 %v3158, 4294901760
        %3635 = vmatpush1.msra.mxu0 %v3634
        %v3636 = vand.u32 %v3161, 4294901760
        %3637 = vmatprep.subr.mxu0 %v3636
        %v3638 = vand.u32 %v3160, 4294901760
        %3639 = vmatpush1.msra.mxu0 %v3638
        %v3640 = vand.u32 %v3163, 4294901760
        %3641 = vmatprep.subr.mxu0 %v3640
        %v3642 = vand.u32 %v3162, 4294901760
        %3643 = vmatpush1.msra.mxu0 %v3642
        %v3644 = vand.u32 %v3165, 4294901760
        %3645 = vmatprep.subr.mxu0 %v3644
        %v3646 = vand.u32 %v3164, 4294901760
        %3647 = vmatpush1.msra.mxu0 %v3646
        %3648 = vmatprep.subr.mxu0 0.0
        %3649 = vmatpush1.msra.mxu0 0.0
        %3650 = vmatprep.subr.mxu0 0.0
        %3651 = vmatpush1.msra.mxu0 0.0
        %3652 = vmatprep.subr.mxu0 0.0
        %3653 = vmatpush1.msra.mxu0 0.0
        %3654 = vmatprep.subr.mxu0 0.0
        %3655 = vmatpush1.msra.mxu0 0.0
        %3656 = vmatprep.subr.mxu0 0.0
        %3657 = vmatpush1.msra.mxu0 0.0
        %3658 = vmatprep.subr.mxu0 0.0
        %3659 = vmatpush1.msra.mxu0 0.0
        %3660 = vmatprep.subr.mxu0 0.0
        %3661 = vmatpush1.msra.mxu0 0.0
        %3662 = vmatprep.subr.mxu0 0.0
        %3663 = vmatpush1.msra.mxu0 0.0
        %3664 = vmatprep.subr.mxu0 0.0
        %3665 = vmatpush1.msra.mxu0 0.0
        %3666 = vmatprep.subr.mxu0 0.0
        %3667 = vmatpush1.msra.mxu0 0.0
        %3668 = vmatprep.subr.mxu0 0.0
        %3669 = vmatpush1.msra.mxu0 0.0
        %3670 = vmatprep.subr.mxu0 0.0
        %3671 = vmatpush1.msra.mxu0 0.0
        %3672 = vmatprep.subr.mxu0 0.0
        %3673 = vmatpush1.msra.mxu0 0.0
        %3674 = vmatprep.subr.mxu0 0.0
        %3675 = vmatpush1.msra.mxu0 0.0
        %3676 = vmatprep.subr.mxu0 0.0
        %3677 = vmatpush1.msra.mxu0 0.0
        %3678 = vmatprep.subr.mxu0 0.0
        %3679 = vmatpush1.msra.mxu0 0.0
        %3680 = vmatprep.subr.mxu0 0.0
        %3681 = vmatpush1.msra.mxu0 0.0
        %3682 = vmatprep.subr.mxu0 0.0
        %3683 = vmatpush1.msra.mxu0 0.0
        %3684 = vmatprep.subr.mxu0 0.0
        %3685 = vmatpush1.msra.mxu0 0.0
        %3686 = vmatprep.subr.mxu0 0.0
        %3687 = vmatpush1.msra.mxu0 0.0
        %3688 = vmatprep.subr.mxu0 0.0
        %3689 = vmatpush1.msra.mxu0 0.0
        %3690 = vmatprep.subr.mxu0 0.0
        %3691 = vmatpush1.msra.mxu0 0.0
        %3692 = vmatprep.subr.mxu0 0.0
        %3693 = vmatpush1.msra.mxu0 0.0
        %3694 = vmatprep.subr.mxu0 0.0
        %3695 = vmatpush1.msra.mxu0 0.0
        %3696 = vmatprep.subr.mxu0 0.0
        %3697 = vmatpush1.msra.mxu0 0.0
        %3698 = vmatprep.subr.mxu0 0.0
        %3699 = vmatpush1.msra.mxu0 0.0
        %3700 = vmatprep.subr.mxu0 0.0
        %3701 = vmatpush1.msra.mxu0 0.0
        %3702 = vmatprep.subr.mxu0 0.0
        %3703 = vmatpush1.msra.mxu0 0.0
        %3704 = vmatprep.mubr.f32.mxu0 0.0
        %v3705 = vand.u32 %v3167, 4294901760
        %3706 = vmatmul.mubr.f32.gmra.mrb[0].mxu0 %v3705
        %v3707 = vpop.f32.mrb[0].mxu0
        %v3708 = vadd.f32 %v3628, %v3707
        %v3709 = vpop.f32.mrb[0].mxu0
        %v3710 = vadd.f32 %v3630, %v3709
        %3711 = vdwg.mxu0
        %3712 = vst [vmem:[%s174] sm:$0xff] %v3708
        %3713 = vst [vmem:[%s174 + $0x8] sm:$0xff] %v3710
        %s3714 = sand.u32 %s75, 1
        %s3715 = scalar_lea.sflag [#allocation4], %s3714
        %s3716 = sand.u32 %s75, 1
        %s3717 = smul.addr %s3716, 16
        %s3718 = scalar_lea.vmem [#allocation7], %s3717
        // Predicated region
        $region37: #{tpu_custom_call.1} parent=27 // pred_check
          %p3719 = pneg %p85
        $region38: #{tpu_custom_call.1} parent=27 // pred_check_branch
          %3721 = sbr.rel (%p3719) target = $region40
        $region39: #{tpu_custom_call.1} parent=27 // pred_region
          %s3723 = ssub.s32 256, 256
          %3724 = vsyncadd %s3715, %s3723
          %s3725 = smul.addr %s20, 2
          %s3726 = smul.addr %s3725, 128
          %s3727 = scalar_lea.hbm %s2, %s3726
          %s3729 = sshll.u32 %s3718, 4
          %s3730 = int_to_ptr.vmem [resolvable:$true] %s3729
          %3732 = dma.vmem_to_hbm [thread:$0]  %s3730, 256, %s3727, %s3715
        $region40: #{tpu_custom_call.1} parent=27 // pred_fallthru
          _
      $region28: #{tpu_custom_call.1} parent=5 // pred_fallthru
        _
      %p3733 = scmp.le.s32.totalorder 2, %s15
      // Predicated region
      $region41: #{tpu_custom_call.1} parent=5 // pred_check
        %p3734 = pneg %p3733
      $region42: #{tpu_custom_call.1} parent=5 // pred_check_branch
        %3736 = sbr.rel (%p3734) target = $region44
      $region43: #{tpu_custom_call.1} parent=5 // pred_region
        %s3737 = ssub.s32 %s15, 2
        // Predicated region
        $region45: #{tpu_custom_call.1} parent=43 // pred_check
          %p3738 = pneg %p91
        $region46: #{tpu_custom_call.1} parent=43 // pred_check_branch
          %3740 = sbr.rel (%p3738) target = $region48
        $region47: #{tpu_custom_call.1} parent=43 // pred_region
          %s3741 = sand.u32 %s76, 1
          %s3742 = scalar_lea.sflag [#allocation4], %s3741
          %s3743 = sand.u32 %s76, 1
          %s3744 = smul.addr %s3743, 16
          %s3745 = scalar_lea.vmem [#allocation7], %s3744
          %3746 = dma.done %s3742, 256
        $region48: #{tpu_custom_call.1} parent=43 // pred_fallthru
          _
      $region44: #{tpu_custom_call.1} parent=5 // pred_fallthru
        _
    $region6: #{tpu_custom_call.1} parent=1 // loop_footer
      %s19 = sadd.s32 1, %s15
    $region7: #{tpu_custom_call.1} parent=1 // loop_footer_branch
      %14 = sbr.rel target = $region3
    $region8: #{tpu_custom_call.1} parent=1 // loop_exit
      _
    %3747 = vsyncpa [#allocation3], 1
    %s3748 = scalar_lea.sflag [#allocation3], 1
    %3749 = vsyncpa %s3748, 1
    %3750 = vsyncpa [#allocation6], 1
    %3751 = vsyncpa [#allocation4], 1
    %s3752 = scalar_lea.sflag [#allocation4], 1
    %3753 = vsyncpa %s3752, 1

</llo_original>
